<compile_context>
chip_gen: v7x
topology: tpu7x:2x2x1
jax: 0.10.0
libtpu: 0.0.40
codegen_flags: <defaults>
</compile_context>

<pallas_src>
import functools

import jax
import jax.numpy as jnp
from jax import lax
from jax.experimental import pallas as pl
from jax.experimental.pallas import tpu as pltpu

EPS = 1e-5
LANES = 128


def _round_up(x, m):
  return (x + m - 1) // m * m


# ---------------------------------------------------------------------------
# Pass A: conv1 (3x3, stride s) [+ 1x1 shortcut conv]; raw (pre-BN) outputs
#         plus per-block partial (sum, sumsq) statistics.  One batch image per
#         grid step.
# ---------------------------------------------------------------------------
def _conv1_kernel(xph_ref, w1_ref, *rest, stride, Hout, Wout, Cinp, Cp,
                  conv_shortcut):
  if conv_shortcut:
    wsc_ref, z1_ref, zsc_ref, stats_ref, patch_ref = rest
  else:
    z1_ref, stats_ref, patch_ref = rest

  s = stride
  M = Hout * Wout

  # im2col: tap (ky, kx) of the stride-s 3x3 conv reads stride phase
  # (ky % s, kx % s) at offset (ky // s, kx // s).  Column stores land at
  # multiples of 128 lanes -> unmasked full-lane stores.
  for t, (ky, kx) in enumerate((ky, kx) for ky in range(3) for kx in range(3)):
    ph = (ky % s) * s + (kx % s)
    dy, dx = ky // s, kx // s
    tap = xph_ref[ph, 0, dy:dy + Hout, dx:dx + Wout, :]     # (Hout, Wout, Cinp)
    patch_ref[:, t * Cinp:(t + 1) * Cinp] = tap.reshape(M, Cinp)

  # One big-K MXU matmul: (M, 9*Cinp) x (9*Cinp, Cp), f32 accumulation.
  z1 = jnp.dot(patch_ref[...], w1_ref[...],
               preferred_element_type=jnp.float32)
  z1_ref[...] = z1.reshape(1, Hout, Wout, Cp)
  stats_ref[0, 0:1, :] = jnp.sum(z1, axis=0, keepdims=True)
  stats_ref[0, 1:2, :] = jnp.sum(z1 * z1, axis=0, keepdims=True)

  if conv_shortcut:
    # 1x1 stride-s conv (pad 0) == the (ky, kx) = (1, 1) tap of the stencil.
    ph = (1 % s) * s + (1 % s)
    d = 1 // s
    xs = xph_ref[ph, 0, d:d + Hout, d:d + Wout, :].reshape(M, Cinp)
    zsc = jnp.dot(xs, wsc_ref[...], preferred_element_type=jnp.float32)
    zsc_ref[...] = zsc.reshape(1, Hout, Wout, Cp)
    stats_ref[0, 2:3, :] = jnp.sum(zsc, axis=0, keepdims=True)
    stats_ref[0, 3:4, :] = jnp.sum(zsc * zsc, axis=0, keepdims=True)


# ---------------------------------------------------------------------------
# Pass B: BN1 (precomputed affine) + ReLU + conv2 (3x3, stride 1, pad 1),
#         plus per-block partial (sum, sumsq) of the conv2 output.
# ---------------------------------------------------------------------------
def _conv2_kernel(z1_ref, sc1_ref, sh1_ref, w2_ref, z2_ref, stats_ref,
                  h1pad_ref, patch_ref, *, Hout, Wout, Cp):
  M = Hout * Wout

  # BN1 affine + ReLU in f32; cast to bf16 only for the MXU operand.
  h1 = jnp.maximum(z1_ref[0] * sc1_ref[...] + sh1_ref[...], 0.0)

  # Zero only the 1-pixel halo strips of the padded scratch (not the full
  # tensor), then store the interior once.
  zrow = jnp.zeros((1, Wout + 2, Cp), jnp.bfloat16)
  zcol = jnp.zeros((Hout, 1, Cp), jnp.bfloat16)
  h1pad_ref[0:1, :, :] = zrow
  h1pad_ref[Hout + 1:Hout + 2, :, :] = zrow
  h1pad_ref[1:Hout + 1, 0:1, :] = zcol
  h1pad_ref[1:Hout + 1, Wout + 1:Wout + 2, :] = zcol
  h1pad_ref[1:Hout + 1, 1:Wout + 1, :] = h1.astype(jnp.bfloat16)

  # im2col for conv2 with lane-aligned column stores, then one big-K matmul.
  for t, (ky, kx) in enumerate((ky, kx) for ky in range(3) for kx in range(3)):
    tap = h1pad_ref[ky:ky + Hout, kx:kx + Wout, :]
    patch_ref[:, t * Cp:(t + 1) * Cp] = tap.reshape(M, Cp)

  z2 = jnp.dot(patch_ref[...], w2_ref[...],
               preferred_element_type=jnp.float32)
  z2_ref[...] = z2.reshape(1, Hout, Wout, Cp)
  stats_ref[0, 0:1, :] = jnp.sum(z2, axis=0, keepdims=True)
  stats_ref[0, 1:2, :] = jnp.sum(z2 * z2, axis=0, keepdims=True)


# ---------------------------------------------------------------------------
# Pass C: BN2 affine + shortcut (BN affine or identity) + add + ReLU.
# ---------------------------------------------------------------------------
def _combine_conv_sc_kernel(z2_ref, zsc_ref, sc2_ref, sh2_ref, scs_ref,
                            shs_ref, o_ref):
  left = z2_ref[...] * sc2_ref[...] + sh2_ref[...]
  right = zsc_ref[...] * scs_ref[...] + shs_ref[...]
  o_ref[...] = jnp.maximum(left + right, 0.0)


def _combine_identity_kernel(z2_ref, x_ref, sc2_ref, sh2_ref, o_ref):
  o_ref[...] = jnp.maximum(
      z2_ref[...] * sc2_ref[...] + sh2_ref[...] + x_ref[...], 0.0)


# ---------------------------------------------------------------------------
# Wrapper
# ---------------------------------------------------------------------------
def _bn_affine(sum_, sumsq, count, gamma, beta):
  """One-pass batch-norm finalization: per-channel scale/shift (biased var)."""
  mean = sum_ / count
  var = sumsq / count - mean * mean
  scale = gamma * lax.rsqrt(var + EPS)
  shift = beta - mean * scale
  return scale.reshape(1, -1), shift.reshape(1, -1)


def residual_block_pallas(x_nchw, params, stride):
  N, Cin, H, W = x_nchw.shape
  Cout = params["w1"].shape[-1]
  s = int(stride)
  Hout = (H - 1) // s + 1
  Wout = (W - 1) // s + 1
  conv_shortcut = (s != 1) or (Cin != Cout)

  Cinp = _round_up(Cin, LANES)       # lane-dense channels
  Cp = _round_up(Cout, LANES)
  M_blk = Hout * Wout
  M_tot = N * M_blk
  f32 = jnp.float32

  # ----------------------- layout glue (plain XLA) -------------------------
  x = jnp.transpose(x_nchw, (0, 2, 3, 1)).astype(f32)                 # NHWC
  x = jnp.pad(x, ((0, 0), (0, 0), (0, 0), (0, Cinp - Cin)))           # lane pad
  x_pad = jnp.pad(x, ((0, 0), (1, 1 + s), (1, 1 + s), (0, 0)))        # spatial
  dmax = 2 // s
  Hq, Wq = Hout + dmax, Wout + dmax
  # Stride phases of the padded input: total size ~= 1x input (no 9x taps).
  phases = [x_pad[:, py::s, px::s, :][:, :Hq, :Wq, :]
            for py in range(s) for px in range(s)]
  x_ph = jnp.stack(phases, axis=0).astype(jnp.bfloat16)  # (s*s,N,Hq,Wq,Cinp)

  def pad_w(w, cin, cinp, cout, cp):
    return jnp.zeros((w.shape[0], w.shape[1], cinp, cp),
                     f32).at[:, :, :cin, :cout].set(w)

  w1 = pad_w(params["w1"], Cin, Cinp, Cout, Cp).reshape(9 * Cinp, Cp)
  w1 = w1.astype(jnp.bfloat16)
  w2 = pad_w(params["w2"], Cout, Cp, Cout, Cp).reshape(9 * Cp, Cp)
  w2 = w2.astype(jnp.bfloat16)

  def pad_vec(v, fill):
    return jnp.concatenate(
        [v.astype(f32), jnp.full((Cp - Cout,), fill, f32)])

  g1, b1 = pad_vec(params["g1"], 1.0), pad_vec(params["b1"], 0.0)
  g2, b2 = pad_vec(params["g2"], 1.0), pad_vec(params["b2"], 0.0)

  cparams = pltpu.CompilerParams(dimension_semantics=("parallel",),
                                 vmem_limit_bytes=32 * 1024 * 1024)
  grid = (N,)

  def vec_spec():
    return pl.BlockSpec((1, Cp), lambda n: (0, 0))

  def full_spec(shape):
    nd = len(shape)
    return pl.BlockSpec(shape, lambda n: (0,) * nd)

  def img_spec(h, w, c):
    return pl.BlockSpec((1, h, w, c), lambda n: (n, 0, 0, 0))

  # --------------- pass A: conv1 (+ shortcut conv) + partial stats ----------
  n_stats_a = 4 if conv_shortcut else 2
  a_in = [x_ph, w1]
  a_in_specs = [pl.BlockSpec((s * s, 1, Hq, Wq, Cinp),
                             lambda n: (0, n, 0, 0, 0)),
                full_spec((9 * Cinp, Cp))]
  a_out_shape = [jax.ShapeDtypeStruct((N, Hout, Wout, Cp), f32)]
  a_out_specs = [img_spec(Hout, Wout, Cp)]
  if conv_shortcut:
    wsc = pad_w(params["wsc"], Cin, Cinp, Cout, Cp).reshape(Cinp, Cp)
    wsc = wsc.astype(jnp.bfloat16)
    a_in.append(wsc)
    a_in_specs.append(full_spec((Cinp, Cp)))
    a_out_shape.append(jax.ShapeDtypeStruct((N, Hout, Wout, Cp), f32))
    a_out_specs.append(img_spec(Hout, Wout, Cp))
  a_out_shape.append(jax.ShapeDtypeStruct((N, n_stats_a, Cp), f32))
  a_out_specs.append(pl.BlockSpec((1, n_stats_a, Cp), lambda n: (n, 0, 0)))

  flops_a = 2 * M_tot * (9 * Cinp) * Cp
  if conv_shortcut:
    flops_a += 2 * M_tot * Cinp * Cp
  kern_a = functools.partial(_conv1_kernel, stride=s, Hout=Hout, Wout=Wout,
                             Cinp=Cinp, Cp=Cp, conv_shortcut=conv_shortcut)
  a_res = pl.pallas_call(
      kern_a,
      grid_spec=pltpu.PrefetchScalarGridSpec(
          num_scalar_prefetch=0, grid=grid,
          in_specs=a_in_specs, out_specs=tuple(a_out_specs),
          scratch_shapes=[pltpu.VMEM((M_blk, 9 * Cinp), jnp.bfloat16)]),
      out_shape=tuple(a_out_shape),
      compiler_params=cparams,
      cost_estimate=pl.CostEstimate(
          flops=int(flops_a), transcendentals=0,
          bytes_accessed=int(x_ph.size * 2 + w1.size * 2
                             + (1 + n_stats_a // 2) * M_tot * Cp * 4)),
  )(*a_in)

  if conv_shortcut:
    z1, zsc, stats_a = a_res
  else:
    z1, stats_a = a_res
  st_a = jnp.sum(stats_a, axis=0)                       # (n_stats_a, Cp)
  scale1, shift1 = _bn_affine(st_a[0], st_a[1], M_tot, g1, b1)
  if conv_shortcut:
    gsc, bsc = pad_vec(params["gsc"], 1.0), pad_vec(params["bsc"], 0.0)
    scale_sc, shift_sc = _bn_affine(st_a[2], st_a[3], M_tot, gsc, bsc)

  # --------------- pass B: BN1 + ReLU + conv2 + partial stats ---------------
  kern_b = functools.partial(_conv2_kernel, Hout=Hout, Wout=Wout, Cp=Cp)
  z2, stats_b = pl.pallas_call(
      kern_b,
      grid_spec=pltpu.PrefetchScalarGridSpec(
          num_scalar_prefetch=0, grid=grid,
          in_specs=[img_spec(Hout, Wout, Cp), vec_spec(), vec_spec(),
                    full_spec((9 * Cp, Cp))],
          out_specs=(img_spec(Hout, Wout, Cp),
                     pl.BlockSpec((1, 2, Cp), lambda n: (n, 0, 0))),
          scratch_shapes=[pltpu.VMEM((Hout + 2, Wout + 2, Cp), jnp.bfloat16),
                          pltpu.VMEM((M_blk, 9 * Cp), jnp.bfloat16)]),
      out_shape=(jax.ShapeDtypeStruct((N, Hout, Wout, Cp), f32),
                 jax.ShapeDtypeStruct((N, 2, Cp), f32)),
      compiler_params=cparams,
      cost_estimate=pl.CostEstimate(
          flops=int(2 * M_tot * (9 * Cp) * Cp), transcendentals=0,
          bytes_accessed=int(2 * M_tot * Cp * 4 + w2.size * 2)),
  )(z1, scale1, shift1, w2)

  st_b = jnp.sum(stats_b, axis=0)
  scale2, shift2 = _bn_affine(st_b[0], st_b[1], M_tot, g2, b2)

  # --------------- pass C: BN2 + shortcut BN / identity + add + ReLU --------
  out_shape_c = jax.ShapeDtypeStruct((N, Hout, Wout, Cp), f32)
  if conv_shortcut:
    out = pl.pallas_call(
        _combine_conv_sc_kernel,
        grid_spec=pltpu.PrefetchScalarGridSpec(
            num_scalar_prefetch=0, grid=grid,
            in_specs=[img_spec(Hout, Wout, Cp), img_spec(Hout, Wout, Cp),
                      vec_spec(), vec_spec(), vec_spec(), vec_spec()],
            out_specs=img_spec(Hout, Wout, Cp)),
        out_shape=out_shape_c,
        compiler_params=cparams,
        cost_estimate=pl.CostEstimate(
            flops=int(5 * M_tot * Cp), transcendentals=0,
            bytes_accessed=int(3 * M_tot * Cp * 4)),
    )(z2, zsc, scale2, shift2, scale_sc, shift_sc)
  else:
    out = pl.pallas_call(
        _combine_identity_kernel,
        grid_spec=pltpu.PrefetchScalarGridSpec(
            num_scalar_prefetch=0, grid=grid,
            in_specs=[img_spec(Hout, Wout, Cp), img_spec(Hout, Wout, Cp),
                      vec_spec(), vec_spec()],
            out_specs=img_spec(Hout, Wout, Cp)),
        out_shape=out_shape_c,
        compiler_params=cparams,
        cost_estimate=pl.CostEstimate(
            flops=int(3 * M_tot * Cp), transcendentals=0,
            bytes_accessed=int(3 * M_tot * Cp * 4)),
    )(z2, x, scale2, shift2)

  out = out[:, :, :, :Cout]                       # lane un-pad
  return jnp.transpose(out, (0, 3, 1, 2))         # back to NCHW


# ---------------- pure-JAX reference (for correctness check) ----------------
def _ref_bn(z, g, b):
  mean = jnp.mean(z, axis=(0, 1, 2), keepdims=True)
  var = jnp.mean((z - mean) ** 2, axis=(0, 1, 2), keepdims=True)
  return (z - mean) * (g * lax.rsqrt(var + EPS)) + b


def residual_block_ref(x_nchw, params, stride):
  Cin = x_nchw.shape[1]
  Cout = params["w1"].shape[-1]
  conv_shortcut = (stride != 1) or (Cin != Cout)
  x = jnp.transpose(x_nchw, (0, 2, 3, 1)).astype(jnp.float32)

  def conv(z, w, s, pad):
    return lax.conv_general_dilated(
        z, w, window_strides=(s, s), padding=[(pad, pad), (pad, pad)],
        dimension_numbers=("NHWC", "HWIO", "NHWC"),
        precision=lax.Precision.HIGHEST)

  h1 = jnp.maximum(_ref_bn(conv(x, params["w1"], stride, 1),
                           params["g1"], params["b1"]), 0.0)
  h2 = _ref_bn(conv(h1, params["w2"], 1, 1), params["g2"], params["b2"])
  if conv_shortcut:
    sc = _ref_bn(conv(x, params["wsc"], stride, 0),
                 params["gsc"], params["bsc"])
  else:
    sc = x
  out = jnp.maximum(h2 + sc, 0.0)
  return jnp.transpose(out, (0, 3, 1, 2))


def make_params(key, cin, cout, conv_shortcut):
  ks = jax.random.split(key, 9)
  p = dict(
      w1=jax.random.normal(ks[0], (3, 3, cin, cout), jnp.float32)
         / jnp.sqrt(9.0 * cin),
      g1=1.0 + 0.1 * jax.random.normal(ks[1], (cout,), jnp.float32),
      b1=0.1 * jax.random.normal(ks[2], (cout,), jnp.float32),
      w2=jax.random.normal(ks[3], (3, 3, cout, cout), jnp.float32)
         / jnp.sqrt(9.0 * cout),
      g2=1.0 + 0.1 * jax.random.normal(ks[4], (cout,), jnp.float32),
      b2=0.1 * jax.random.normal(ks[5], (cout,), jnp.float32),
  )
  if conv_shortcut:
    p["wsc"] = (jax.random.normal(ks[6], (1, 1, cin, cout), jnp.float32)
                / jnp.sqrt(float(cin)))
    p["gsc"] = 1.0 + 0.1 * jax.random.normal(ks[7], (cout,), jnp.float32)
    p["bsc"] = 0.1 * jax.random.normal(ks[8], (cout,), jnp.float32)
  return p


if __name__ == "__main__":
  key = jax.random.PRNGKey(0)
  kx1, kx2, kp1, kp2 = jax.random.split(key, 4)

  rb = jax.jit(residual_block_pallas, static_argnums=(2,))

  # Case 1: downsampling block (stride=2, Cin != Cout) -> conv shortcut path.
  x1 = jax.random.normal(kx1, (2, 4, 16, 16), jnp.float32)
  params1 = make_params(kp1, 4, 8, conv_shortcut=True)
  y1 = rb(x1, params1, 2)
  jax.block_until_ready(y1)
  y1_ref = residual_block_ref(x1, params1, stride=2)
  assert y1.shape == (2, 8, 8, 8)
  # Kernel uses bf16 MXU operands (f32 accumulation); reference is full f32,
  # hence the relaxed tolerance.
  err1 = float(jnp.max(jnp.abs(y1 - y1_ref)))
  mae1 = float(jnp.mean(jnp.abs(y1 - y1_ref)))
  assert err1 < 5e-2, ("max abs err case1", err1)
  assert mae1 < 5e-3, ("mean abs err case1", mae1)

  # Case 2: identity-shortcut block (stride=1, Cin == Cout).
  x2 = jax.random.normal(kx2, (2, 8, 16, 16), jnp.float32)
  params2 = make_params(kp2, 8, 8, conv_shortcut=False)
  y2 = rb(x2, params2, 1)
  jax.block_until_ready(y2)
  y2_ref = residual_block_ref(x2, params2, stride=1)
  assert y2.shape == (2, 8, 16, 16)
  err2 = float(jnp.max(jnp.abs(y2 - y2_ref)))
  mae2 = float(jnp.mean(jnp.abs(y2 - y2_ref)))
  assert err2 < 5e-2, ("max abs err case2", err2)
  assert mae2 < 5e-3, ("mean abs err case2", mae2)

  print("KERNEL_OK")
</pallas_src>

<mosaic_0001>
module attributes {stable_mosaic.version = 11 : i64} {
  func.func @_conv2_kernel(%arg0: i32, %arg1: memref<1x8x8x128xf32, #tpu.memory_space<vmem>>, %arg2: memref<1x128xf32, #tpu.memory_space<vmem>>, %arg3: memref<1x128xf32, #tpu.memory_space<vmem>>, %arg4: memref<1152x128xbf16, #tpu.memory_space<vmem>>, %arg5: memref<1x8x8x128xf32, #tpu.memory_space<vmem>>, %arg6: memref<1x2x128xf32, #tpu.memory_space<vmem>>, %arg7: memref<10x10x128xbf16, #tpu.memory_space<vmem>>, %arg8: memref<64x1152xbf16, #tpu.memory_space<vmem>>) attributes {dimension_semantics = [#tpu.dimension_semantics<parallel>], iteration_bounds = array<i64: 2>, scalar_prefetch = 0 : i64, scratch_operands = 2 : i64, tpu.core_type = #tpu.core_type<tc>, window_params = [{transform_indices = @transform_0, window_bounds = array<i64: 1, 8, 8, 128>}, {pipeline_mode = #tpu.pipeline_mode<synchronous>, transform_indices = @transform_1, window_bounds = array<i64: 1, 128>}, {pipeline_mode = #tpu.pipeline_mode<synchronous>, transform_indices = @transform_2, window_bounds = array<i64: 1, 128>}, {pipeline_mode = #tpu.pipeline_mode<synchronous>, transform_indices = @transform_3, window_bounds = array<i64: 1152, 128>}, {transform_indices = @transform_4, window_bounds = array<i64: 1, 8, 8, 128>}, {transform_indices = @transform_5, window_bounds = array<i64: 1, 2, 128>}]} {
    %c0 = arith.constant 0 : index
    %c0_0 = arith.constant 0 : index
    %c0_1 = arith.constant 0 : index
    %c0_2 = arith.constant 0 : index
    %0 = vector.load %arg1[%c0, %c0_0, %c0_1, %c0_2] : memref<1x8x8x128xf32, #tpu.memory_space<vmem>>, vector<1x8x8x128xf32>
    %1 = vector.shape_cast %0 : vector<1x8x8x128xf32> to vector<8x8x128xf32>
    %c0_3 = arith.constant 0 : index
    %c0_4 = arith.constant 0 : index
    %2 = vector.load %arg2[%c0_3, %c0_4] : memref<1x128xf32, #tpu.memory_space<vmem>>, vector<1x128xf32>
    %3 = vector.shape_cast %2 : vector<1x128xf32> to vector<1x1x128xf32>
    %4 = vector.broadcast %3 : vector<1x1x128xf32> to vector<8x8x128xf32>
    %5 = arith.mulf %1, %4 : vector<8x8x128xf32>
    %c0_5 = arith.constant 0 : index
    %c0_6 = arith.constant 0 : index
    %6 = vector.load %arg3[%c0_5, %c0_6] : memref<1x128xf32, #tpu.memory_space<vmem>>, vector<1x128xf32>
    %7 = vector.shape_cast %6 : vector<1x128xf32> to vector<1x1x128xf32>
    %8 = vector.broadcast %7 : vector<1x1x128xf32> to vector<8x8x128xf32>
    %9 = arith.addf %5, %8 : vector<8x8x128xf32>
    %cst = arith.constant 0.000000e+00 : f32
    %10 = vector.broadcast %cst : f32 to vector<8x8x128xf32>
    %11 = arith.maximumf %9, %10 : vector<8x8x128xf32>
    %cst_7 = arith.constant 0.000000e+00 : bf16
    %12 = vector.broadcast %cst_7 : bf16 to vector<1x10x128xbf16>
    %cst_8 = arith.constant 0.000000e+00 : bf16
    %13 = vector.broadcast %cst_8 : bf16 to vector<8x1x128xbf16>
    %c0_9 = arith.constant 0 : index
    %c0_10 = arith.constant 0 : index
    %c0_11 = arith.constant 0 : index
    %14 = vector.load %arg7[%c0_9, %c0_10, %c0_11] : memref<10x10x128xbf16, #tpu.memory_space<vmem>>, vector<1x10x128xbf16>
    tpu.vector_store %arg7[%c0_9, %c0_10, %c0_11], %12 {strides = array<i32>} : memref<10x10x128xbf16, #tpu.memory_space<vmem>>, vector<1x10x128xbf16>,
    %c9 = arith.constant 9 : index
    %c0_12 = arith.constant 0 : index
    %c0_13 = arith.constant 0 : index
    %15 = vector.load %arg7[%c9, %c0_12, %c0_13] : memref<10x10x128xbf16, #tpu.memory_space<vmem>>, vector<1x10x128xbf16>
    tpu.vector_store %arg7[%c9, %c0_12, %c0_13], %12 {strides = array<i32>} : memref<10x10x128xbf16, #tpu.memory_space<vmem>>, vector<1x10x128xbf16>,
    %c1 = arith.constant 1 : index
    %c0_14 = arith.constant 0 : index
    %c0_15 = arith.constant 0 : index
    %16 = vector.load %arg7[%c1, %c0_14, %c0_15] : memref<10x10x128xbf16, #tpu.memory_space<vmem>>, vector<8x1x128xbf16>
    tpu.vector_store %arg7[%c1, %c0_14, %c0_15], %13 {strides = array<i32>} : memref<10x10x128xbf16, #tpu.memory_space<vmem>>, vector<8x1x128xbf16>,
    %c1_16 = arith.constant 1 : index
    %c9_17 = arith.constant 9 : index
    %c0_18 = arith.constant 0 : index
    %17 = vector.load %arg7[%c1_16, %c9_17, %c0_18] : memref<10x10x128xbf16, #tpu.memory_space<vmem>>, vector<8x1x128xbf16>
    tpu.vector_store %arg7[%c1_16, %c9_17, %c0_18], %13 {strides = array<i32>} : memref<10x10x128xbf16, #tpu.memory_space<vmem>>, vector<8x1x128xbf16>,
    %18 = arith.truncf %11 : vector<8x8x128xf32> to vector<8x8x128xbf16>
    %c1_19 = arith.constant 1 : index
    %c1_20 = arith.constant 1 : index
    %c0_21 = arith.constant 0 : index
    %19 = vector.load %arg7[%c1_19, %c1_20, %c0_21] : memref<10x10x128xbf16, #tpu.memory_space<vmem>>, vector<8x8x128xbf16>
    tpu.vector_store %arg7[%c1_19, %c1_20, %c0_21], %18 {strides = array<i32>} : memref<10x10x128xbf16, #tpu.memory_space<vmem>>, vector<8x8x128xbf16>,
    %c0_22 = arith.constant 0 : index
    %c0_23 = arith.constant 0 : index
    %c0_24 = arith.constant 0 : index
    %20 = vector.load %arg7[%c0_22, %c0_23, %c0_24] : memref<10x10x128xbf16, #tpu.memory_space<vmem>>, vector<8x8x128xbf16>
    %21 = vector.shape_cast %20 : vector<8x8x128xbf16> to vector<64x128xbf16>
    %c0_25 = arith.constant 0 : index
    %c0_26 = arith.constant 0 : index
    %22 = vector.load %arg8[%c0_25, %c0_26] : memref<64x1152xbf16, #tpu.memory_space<vmem>>, vector<64x128xbf16>
    tpu.vector_store %arg8[%c0_25, %c0_26], %21 {strides = array<i32>} : memref<64x1152xbf16, #tpu.memory_space<vmem>>, vector<64x128xbf16>,
    %c0_27 = arith.constant 0 : index
    %c1_28 = arith.constant 1 : index
    %c0_29 = arith.constant 0 : index
    %23 = vector.load %arg7[%c0_27, %c1_28, %c0_29] : memref<10x10x128xbf16, #tpu.memory_space<vmem>>, vector<8x8x128xbf16>
    %24 = vector.shape_cast %23 : vector<8x8x128xbf16> to vector<64x128xbf16>
    %c0_30 = arith.constant 0 : index
    %c128 = arith.constant 128 : index
    %25 = vector.load %arg8[%c0_30, %c128] : memref<64x1152xbf16, #tpu.memory_space<vmem>>, vector<64x128xbf16>
    tpu.vector_store %arg8[%c0_30, %c128], %24 {strides = array<i32>} : memref<64x1152xbf16, #tpu.memory_space<vmem>>, vector<64x128xbf16>,
    %c0_31 = arith.constant 0 : index
    %c2 = arith.constant 2 : index
    %c0_32 = arith.constant 0 : index
    %26 = vector.load %arg7[%c0_31, %c2, %c0_32] : memref<10x10x128xbf16, #tpu.memory_space<vmem>>, vector<8x8x128xbf16>
    %27 = vector.shape_cast %26 : vector<8x8x128xbf16> to vector<64x128xbf16>
    %c0_33 = arith.constant 0 : index
    %c256 = arith.constant 256 : index
    %28 = vector.load %arg8[%c0_33, %c256] : memref<64x1152xbf16, #tpu.memory_space<vmem>>, vector<64x128xbf16>
    tpu.vector_store %arg8[%c0_33, %c256], %27 {strides = array<i32>} : memref<64x1152xbf16, #tpu.memory_space<vmem>>, vector<64x128xbf16>,
    %c1_34 = arith.constant 1 : index
    %c0_35 = arith.constant 0 : index
    %c0_36 = arith.constant 0 : index
    %29 = vector.load %arg7[%c1_34, %c0_35, %c0_36] : memref<10x10x128xbf16, #tpu.memory_space<vmem>>, vector<8x8x128xbf16>
    %30 = vector.shape_cast %29 : vector<8x8x128xbf16> to vector<64x128xbf16>
    %c0_37 = arith.constant 0 : index
    %c384 = arith.constant 384 : index
    %31 = vector.load %arg8[%c0_37, %c384] : memref<64x1152xbf16, #tpu.memory_space<vmem>>, vector<64x128xbf16>
    tpu.vector_store %arg8[%c0_37, %c384], %30 {strides = array<i32>} : memref<64x1152xbf16, #tpu.memory_space<vmem>>, vector<64x128xbf16>,
    %c1_38 = arith.constant 1 : index
    %c1_39 = arith.constant 1 : index
    %c0_40 = arith.constant 0 : index
    %32 = vector.load %arg7[%c1_38, %c1_39, %c0_40] : memref<10x10x128xbf16, #tpu.memory_space<vmem>>, vector<8x8x128xbf16>
    %33 = vector.shape_cast %32 : vector<8x8x128xbf16> to vector<64x128xbf16>
    %c0_41 = arith.constant 0 : index
    %c512 = arith.constant 512 : index
    %34 = vector.load %arg8[%c0_41, %c512] : memref<64x1152xbf16, #tpu.memory_space<vmem>>, vector<64x128xbf16>
    tpu.vector_store %arg8[%c0_41, %c512], %33 {strides = array<i32>} : memref<64x1152xbf16, #tpu.memory_space<vmem>>, vector<64x128xbf16>,
    %c1_42 = arith.constant 1 : index
    %c2_43 = arith.constant 2 : index
    %c0_44 = arith.constant 0 : index
    %35 = vector.load %arg7[%c1_42, %c2_43, %c0_44] : memref<10x10x128xbf16, #tpu.memory_space<vmem>>, vector<8x8x128xbf16>
    %36 = vector.shape_cast %35 : vector<8x8x128xbf16> to vector<64x128xbf16>
    %c0_45 = arith.constant 0 : index
    %c640 = arith.constant 640 : index
    %37 = vector.load %arg8[%c0_45, %c640] : memref<64x1152xbf16, #tpu.memory_space<vmem>>, vector<64x128xbf16>
    tpu.vector_store %arg8[%c0_45, %c640], %36 {strides = array<i32>} : memref<64x1152xbf16, #tpu.memory_space<vmem>>, vector<64x128xbf16>,
    %c2_46 = arith.constant 2 : index
    %c0_47 = arith.constant 0 : index
    %c0_48 = arith.constant 0 : index
    %38 = vector.load %arg7[%c2_46, %c0_47, %c0_48] : memref<10x10x128xbf16, #tpu.memory_space<vmem>>, vector<8x8x128xbf16>
    %39 = vector.shape_cast %38 : vector<8x8x128xbf16> to vector<64x128xbf16>
    %c0_49 = arith.constant 0 : index
    %c768 = arith.constant 768 : index
    %40 = vector.load %arg8[%c0_49, %c768] : memref<64x1152xbf16, #tpu.memory_space<vmem>>, vector<64x128xbf16>
    tpu.vector_store %arg8[%c0_49, %c768], %39 {strides = array<i32>} : memref<64x1152xbf16, #tpu.memory_space<vmem>>, vector<64x128xbf16>,
    %c2_50 = arith.constant 2 : index
    %c1_51 = arith.constant 1 : index
    %c0_52 = arith.constant 0 : index
    %41 = vector.load %arg7[%c2_50, %c1_51, %c0_52] : memref<10x10x128xbf16, #tpu.memory_space<vmem>>, vector<8x8x128xbf16>
    %42 = vector.shape_cast %41 : vector<8x8x128xbf16> to vector<64x128xbf16>
    %c0_53 = arith.constant 0 : index
    %c896 = arith.constant 896 : index
    %43 = vector.load %arg8[%c0_53, %c896] : memref<64x1152xbf16, #tpu.memory_space<vmem>>, vector<64x128xbf16>
    tpu.vector_store %arg8[%c0_53, %c896], %42 {strides = array<i32>} : memref<64x1152xbf16, #tpu.memory_space<vmem>>, vector<64x128xbf16>,
    %c2_54 = arith.constant 2 : index
    %c2_55 = arith.constant 2 : index
    %c0_56 = arith.constant 0 : index
    %44 = vector.load %arg7[%c2_54, %c2_55, %c0_56] : memref<10x10x128xbf16, #tpu.memory_space<vmem>>, vector<8x8x128xbf16>
    %45 = vector.shape_cast %44 : vector<8x8x128xbf16> to vector<64x128xbf16>
    %c0_57 = arith.constant 0 : index
    %c1024 = arith.constant 1024 : index
    %46 = vector.load %arg8[%c0_57, %c1024] : memref<64x1152xbf16, #tpu.memory_space<vmem>>, vector<64x128xbf16>
    tpu.vector_store %arg8[%c0_57, %c1024], %45 {strides = array<i32>} : memref<64x1152xbf16, #tpu.memory_space<vmem>>, vector<64x128xbf16>,
    %c0_58 = arith.constant 0 : index
    %c0_59 = arith.constant 0 : index
    %47 = vector.load %arg8[%c0_58, %c0_59] : memref<64x1152xbf16, #tpu.memory_space<vmem>>, vector<64x1152xbf16>
    %c0_60 = arith.constant 0 : index
    %c0_61 = arith.constant 0 : index
    %48 = vector.load %arg4[%c0_60, %c0_61] : memref<1152x128xbf16, #tpu.memory_space<vmem>>, vector<1152x128xbf16>
    %cst_62 = arith.constant dense<0.000000e+00> : vector<64x128xf32>
    %49 = tpu.matmul %47, %48, %cst_62 {dimension_numbers = #tpu.dot_dimension_numbers<[1], [0], [0], [1], [0, 0, 1, 1], [], []>} : vector<64x1152xbf16>, vector<1152x128xbf16>, vector<64x128xf32> -> vector<64x128xf32>
    %50 = vector.shape_cast %49 : vector<64x128xf32> to vector<1x8x8x128xf32>
    %c0_63 = arith.constant 0 : index
    %c0_64 = arith.constant 0 : index
    %c0_65 = arith.constant 0 : index
    %c0_66 = arith.constant 0 : index
    %51 = vector.load %arg5[%c0_63, %c0_64, %c0_65, %c0_66] : memref<1x8x8x128xf32, #tpu.memory_space<vmem>>, vector<1x8x8x128xf32>
    tpu.vector_store %arg5[%c0_63, %c0_64, %c0_65, %c0_66], %50 {strides = array<i32>} : memref<1x8x8x128xf32, #tpu.memory_space<vmem>>, vector<1x8x8x128xf32>,
    %cst_67 = arith.constant dense<0.000000e+00> : vector<128xf32>
    %52 = vector.multi_reduction <add>, %49, %cst_67 [0] : vector<64x128xf32> to vector<128xf32>
    %53 = vector.shape_cast %52 : vector<128xf32> to vector<1x128xf32>
    %c0_68 = arith.constant 0 : index
    %c0_69 = arith.constant 0 : index
    %c0_70 = arith.constant 0 : index
    %54 = vector.load %arg6[%c0_68, %c0_69, %c0_70] : memref<1x2x128xf32, #tpu.memory_space<vmem>>, vector<1x1x128xf32>
    %55 = vector.shape_cast %54 : vector<1x1x128xf32> to vector<1x128xf32>
    %56 = vector.shape_cast %53 : vector<1x128xf32> to vector<1x1x128xf32>
    tpu.vector_store %arg6[%c0_68, %c0_69, %c0_70], %56 {strides = array<i32>} : memref<1x2x128xf32, #tpu.memory_space<vmem>>, vector<1x1x128xf32>,
    %57 = arith.mulf %49, %49 : vector<64x128xf32>
    %cst_71 = arith.constant dense<0.000000e+00> : vector<128xf32>
    %58 = vector.multi_reduction <add>, %57, %cst_71 [0] : vector<64x128xf32> to vector<128xf32>
    %59 = vector.shape_cast %58 : vector<128xf32> to vector<1x128xf32>
    %c0_72 = arith.constant 0 : index
    %c1_73 = arith.constant 1 : index
    %c0_74 = arith.constant 0 : index
    %60 = vector.load %arg6[%c0_72, %c1_73, %c0_74] : memref<1x2x128xf32, #tpu.memory_space<vmem>>, vector<1x1x128xf32>
    %61 = vector.shape_cast %60 : vector<1x1x128xf32> to vector<1x128xf32>
    %62 = vector.shape_cast %59 : vector<1x128xf32> to vector<1x1x128xf32>
    tpu.vector_store %arg6[%c0_72, %c1_73, %c0_74], %62 {strides = array<i32>} : memref<1x2x128xf32, #tpu.memory_space<vmem>>, vector<1x1x128xf32>,
    return
  }
  func.func @transform_0(%arg0: i32) -> (i32, i32, i32, i32) {
    %c0_i32 = arith.constant 0 : i32
    %c0_i32_0 = arith.constant 0 : i32
    %c0_i32_1 = arith.constant 0 : i32
    %c0_i32_2 = arith.constant 0 : i32
    return %arg0, %c0_i32, %c0_i32_0, %c0_i32_1 : i32, i32, i32, i32
  }
  func.func @transform_1(%arg0: i32) -> (i32, i32) {
    %c0_i32 = arith.constant 0 : i32
    %c0_i32_0 = arith.constant 0 : i32
    %c0_i32_1 = arith.constant 0 : i32
    return %c0_i32, %c0_i32_0 : i32, i32
  }
  func.func @transform_2(%arg0: i32) -> (i32, i32) {
    %c0_i32 = arith.constant 0 : i32
    %c0_i32_0 = arith.constant 0 : i32
    %c0_i32_1 = arith.constant 0 : i32
    return %c0_i32, %c0_i32_0 : i32, i32
  }
  func.func @transform_3(%arg0: i32) -> (i32, i32) {
    %c0_i32 = arith.constant 0 : i32
    %c0_i32_0 = arith.constant 0 : i32
    %c0_i32_1 = arith.constant 0 : i32
    return %c0_i32, %c0_i32_0 : i32, i32
  }
  func.func @transform_4(%arg0: i32) -> (i32, i32, i32, i32) {
    %c0_i32 = arith.constant 0 : i32
    %c0_i32_0 = arith.constant 0 : i32
    %c0_i32_1 = arith.constant 0 : i32
    %c0_i32_2 = arith.constant 0 : i32
    return %arg0, %c0_i32, %c0_i32_0, %c0_i32_1 : i32, i32, i32, i32
  }
  func.func @transform_5(%arg0: i32) -> (i32, i32, i32) {
    %c0_i32 = arith.constant 0 : i32
    %c0_i32_0 = arith.constant 0 : i32
    %c0_i32_1 = arith.constant 0 : i32
    return %arg0, %c0_i32, %c0_i32_0 : i32, i32, i32
  }
}

module attributes {stable_mosaic.version = 11 : i64} {
  func.func @_conv1_kernel(%arg0: i32, %arg1: memref<4x1x9x9x128xbf16, #tpu.memory_space<vmem>>, %arg2: memref<1152x128xbf16, #tpu.memory_space<vmem>>, %arg3: memref<128x128xbf16, #tpu.memory_space<vmem>>, %arg4: memref<1x8x8x128xf32, #tpu.memory_space<vmem>>, %arg5: memref<1x8x8x128xf32, #tpu.memory_space<vmem>>, %arg6: memref<1x4x128xf32, #tpu.memory_space<vmem>>, %arg7: memref<64x1152xbf16, #tpu.memory_space<vmem>>) attributes {dimension_semantics = [#tpu.dimension_semantics<parallel>], iteration_bounds = array<i64: 2>, scalar_prefetch = 0 : i64, scratch_operands = 1 : i64, tpu.core_type = #tpu.core_type<tc>, window_params = [{transform_indices = @transform_0, window_bounds = array<i64: 4, 1, 9, 9, 128>}, {pipeline_mode = #tpu.pipeline_mode<synchronous>, transform_indices = @transform_1, window_bounds = array<i64: 1152, 128>}, {pipeline_mode = #tpu.pipeline_mode<synchronous>, transform_indices = @transform_2, window_bounds = array<i64: 128, 128>}, {transform_indices = @transform_3, window_bounds = array<i64: 1, 8, 8, 128>}, {transform_indices = @transform_4, window_bounds = array<i64: 1, 8, 8, 128>}, {transform_indices = @transform_5, window_bounds = array<i64: 1, 4, 128>}]} {
    %c0 = arith.constant 0 : index
    %c0_0 = arith.constant 0 : index
    %c0_1 = arith.constant 0 : index
    %c0_2 = arith.constant 0 : index
    %c0_3 = arith.constant 0 : index
    %0 = vector.load %arg1[%c0, %c0_0, %c0_1, %c0_2, %c0_3] : memref<4x1x9x9x128xbf16, #tpu.memory_space<vmem>>, vector<1x1x8x8x128xbf16>
    %1 = vector.shape_cast %0 : vector<1x1x8x8x128xbf16> to vector<8x8x128xbf16>
    %2 = vector.shape_cast %1 : vector<8x8x128xbf16> to vector<64x128xbf16>
    %c0_4 = arith.constant 0 : index
    %c0_5 = arith.constant 0 : index
    %3 = vector.load %arg7[%c0_4, %c0_5] : memref<64x1152xbf16, #tpu.memory_space<vmem>>, vector<64x128xbf16>
    tpu.vector_store %arg7[%c0_4, %c0_5], %2 {strides = array<i32>} : memref<64x1152xbf16, #tpu.memory_space<vmem>>, vector<64x128xbf16>,
    %c1 = arith.constant 1 : index
    %c0_6 = arith.constant 0 : index
    %c0_7 = arith.constant 0 : index
    %c0_8 = arith.constant 0 : index
    %c0_9 = arith.constant 0 : index
    %4 = vector.load %arg1[%c1, %c0_6, %c0_7, %c0_8, %c0_9] : memref<4x1x9x9x128xbf16, #tpu.memory_space<vmem>>, vector<1x1x8x8x128xbf16>
    %5 = vector.shape_cast %4 : vector<1x1x8x8x128xbf16> to vector<8x8x128xbf16>
    %6 = vector.shape_cast %5 : vector<8x8x128xbf16> to vector<64x128xbf16>
    %c0_10 = arith.constant 0 : index
    %c128 = arith.constant 128 : index
    %7 = vector.load %arg7[%c0_10, %c128] : memref<64x1152xbf16, #tpu.memory_space<vmem>>, vector<64x128xbf16>
    tpu.vector_store %arg7[%c0_10, %c128], %6 {strides = array<i32>} : memref<64x1152xbf16, #tpu.memory_space<vmem>>, vector<64x128xbf16>,
    %c0_11 = arith.constant 0 : index
    %c0_12 = arith.constant 0 : index
    %c0_13 = arith.constant 0 : index
    %c1_14 = arith.constant 1 : index
    %c0_15 = arith.constant 0 : index
    %8 = vector.load %arg1[%c0_11, %c0_12, %c0_13, %c1_14, %c0_15] : memref<4x1x9x9x128xbf16, #tpu.memory_space<vmem>>, vector<1x1x8x8x128xbf16>
    %9 = vector.shape_cast %8 : vector<1x1x8x8x128xbf16> to vector<8x8x128xbf16>
    %10 = vector.shape_cast %9 : vector<8x8x128xbf16> to vector<64x128xbf16>
    %c0_16 = arith.constant 0 : index
    %c256 = arith.constant 256 : index
    %11 = vector.load %arg7[%c0_16, %c256] : memref<64x1152xbf16, #tpu.memory_space<vmem>>, vector<64x128xbf16>
    tpu.vector_store %arg7[%c0_16, %c256], %10 {strides = array<i32>} : memref<64x1152xbf16, #tpu.memory_space<vmem>>, vector<64x128xbf16>,
    %c2 = arith.constant 2 : index
    %c0_17 = arith.constant 0 : index
    %c0_18 = arith.constant 0 : index
    %c0_19 = arith.constant 0 : index
    %c0_20 = arith.constant 0 : index
    %12 = vector.load %arg1[%c2, %c0_17, %c0_18, %c0_19, %c0_20] : memref<4x1x9x9x128xbf16, #tpu.memory_space<vmem>>, vector<1x1x8x8x128xbf16>
    %13 = vector.shape_cast %12 : vector<1x1x8x8x128xbf16> to vector<8x8x128xbf16>
    %14 = vector.shape_cast %13 : vector<8x8x128xbf16> to vector<64x128xbf16>
    %c0_21 = arith.constant 0 : index
    %c384 = arith.constant 384 : index
    %15 = vector.load %arg7[%c0_21, %c384] : memref<64x1152xbf16, #tpu.memory_space<vmem>>, vector<64x128xbf16>
    tpu.vector_store %arg7[%c0_21, %c384], %14 {strides = array<i32>} : memref<64x1152xbf16, #tpu.memory_space<vmem>>, vector<64x128xbf16>,
    %c3 = arith.constant 3 : index
    %c0_22 = arith.constant 0 : index
    %c0_23 = arith.constant 0 : index
    %c0_24 = arith.constant 0 : index
    %c0_25 = arith.constant 0 : index
    %16 = vector.load %arg1[%c3, %c0_22, %c0_23, %c0_24, %c0_25] : memref<4x1x9x9x128xbf16, #tpu.memory_space<vmem>>, vector<1x1x8x8x128xbf16>
    %17 = vector.shape_cast %16 : vector<1x1x8x8x128xbf16> to vector<8x8x128xbf16>
    %18 = vector.shape_cast %17 : vector<8x8x128xbf16> to vector<64x128xbf16>
    %c0_26 = arith.constant 0 : index
    %c512 = arith.constant 512 : index
    %19 = vector.load %arg7[%c0_26, %c512] : memref<64x1152xbf16, #tpu.memory_space<vmem>>, vector<64x128xbf16>
    tpu.vector_store %arg7[%c0_26, %c512], %18 {strides = array<i32>} : memref<64x1152xbf16, #tpu.memory_space<vmem>>, vector<64x128xbf16>,
    %c2_27 = arith.constant 2 : index
    %c0_28 = arith.constant 0 : index
    %c0_29 = arith.constant 0 : index
    %c1_30 = arith.constant 1 : index
    %c0_31 = arith.constant 0 : index
    %20 = vector.load %arg1[%c2_27, %c0_28, %c0_29, %c1_30, %c0_31] : memref<4x1x9x9x128xbf16, #tpu.memory_space<vmem>>, vector<1x1x8x8x128xbf16>
    %21 = vector.shape_cast %20 : vector<1x1x8x8x128xbf16> to vector<8x8x128xbf16>
    %22 = vector.shape_cast %21 : vector<8x8x128xbf16> to vector<64x128xbf16>
    %c0_32 = arith.constant 0 : index
    %c640 = arith.constant 640 : index
    %23 = vector.load %arg7[%c0_32, %c640] : memref<64x1152xbf16, #tpu.memory_space<vmem>>, vector<64x128xbf16>
    tpu.vector_store %arg7[%c0_32, %c640], %22 {strides = array<i32>} : memref<64x1152xbf16, #tpu.memory_space<vmem>>, vector<64x128xbf16>,
    %c0_33 = arith.constant 0 : index
    %c0_34 = arith.constant 0 : index
    %c1_35 = arith.constant 1 : index
    %c0_36 = arith.constant 0 : index
    %c0_37 = arith.constant 0 : index
    %24 = vector.load %arg1[%c0_33, %c0_34, %c1_35, %c0_36, %c0_37] : memref<4x1x9x9x128xbf16, #tpu.memory_space<vmem>>, vector<1x1x8x8x128xbf16>
    %25 = vector.shape_cast %24 : vector<1x1x8x8x128xbf16> to vector<8x8x128xbf16>
    %26 = vector.shape_cast %25 : vector<8x8x128xbf16> to vector<64x128xbf16>
    %c0_38 = arith.constant 0 : index
    %c768 = arith.constant 768 : index
    %27 = vector.load %arg7[%c0_38, %c768] : memref<64x1152xbf16, #tpu.memory_space<vmem>>, vector<64x128xbf16>
    tpu.vector_store %arg7[%c0_38, %c768], %26 {strides = array<i32>} : memref<64x1152xbf16, #tpu.memory_space<vmem>>, vector<64x128xbf16>,
    %c1_39 = arith.constant 1 : index
    %c0_40 = arith.constant 0 : index
    %c1_41 = arith.constant 1 : index
    %c0_42 = arith.constant 0 : index
    %c0_43 = arith.constant 0 : index
    %28 = vector.load %arg1[%c1_39, %c0_40, %c1_41, %c0_42, %c0_43] : memref<4x1x9x9x128xbf16, #tpu.memory_space<vmem>>, vector<1x1x8x8x128xbf16>
    %29 = vector.shape_cast %28 : vector<1x1x8x8x128xbf16> to vector<8x8x128xbf16>
    %30 = vector.shape_cast %29 : vector<8x8x128xbf16> to vector<64x128xbf16>
    %c0_44 = arith.constant 0 : index
    %c896 = arith.constant 896 : index
    %31 = vector.load %arg7[%c0_44, %c896] : memref<64x1152xbf16, #tpu.memory_space<vmem>>, vector<64x128xbf16>
    tpu.vector_store %arg7[%c0_44, %c896], %30 {strides = array<i32>} : memref<64x1152xbf16, #tpu.memory_space<vmem>>, vector<64x128xbf16>,
    %c0_45 = arith.constant 0 : index
    %c0_46 = arith.constant 0 : index
    %c1_47 = arith.constant 1 : index
    %c1_48 = arith.constant 1 : index
    %c0_49 = arith.constant 0 : index
    %32 = vector.load %arg1[%c0_45, %c0_46, %c1_47, %c1_48, %c0_49] : memref<4x1x9x9x128xbf16, #tpu.memory_space<vmem>>, vector<1x1x8x8x128xbf16>
    %33 = vector.shape_cast %32 : vector<1x1x8x8x128xbf16> to vector<8x8x128xbf16>
    %34 = vector.shape_cast %33 : vector<8x8x128xbf16> to vector<64x128xbf16>
    %c0_50 = arith.constant 0 : index
    %c1024 = arith.constant 1024 : index
    %35 = vector.load %arg7[%c0_50, %c1024] : memref<64x1152xbf16, #tpu.memory_space<vmem>>, vector<64x128xbf16>
    tpu.vector_store %arg7[%c0_50, %c1024], %34 {strides = array<i32>} : memref<64x1152xbf16, #tpu.memory_space<vmem>>, vector<64x128xbf16>,
    %c0_51 = arith.constant 0 : index
    %c0_52 = arith.constant 0 : index
    %36 = vector.load %arg7[%c0_51, %c0_52] : memref<64x1152xbf16, #tpu.memory_space<vmem>>, vector<64x1152xbf16>
    %c0_53 = arith.constant 0 : index
    %c0_54 = arith.constant 0 : index
    %37 = vector.load %arg2[%c0_53, %c0_54] : memref<1152x128xbf16, #tpu.memory_space<vmem>>, vector<1152x128xbf16>
    %cst = arith.constant dense<0.000000e+00> : vector<64x128xf32>
    %38 = tpu.matmul %36, %37, %cst {dimension_numbers = #tpu.dot_dimension_numbers<[1], [0], [0], [1], [0, 0, 1, 1], [], []>} : vector<64x1152xbf16>, vector<1152x128xbf16>, vector<64x128xf32> -> vector<64x128xf32>
    %39 = vector.shape_cast %38 : vector<64x128xf32> to vector<1x8x8x128xf32>
    %c0_55 = arith.constant 0 : index
    %c0_56 = arith.constant 0 : index
    %c0_57 = arith.constant 0 : index
    %c0_58 = arith.constant 0 : index
    %40 = vector.load %arg4[%c0_55, %c0_56, %c0_57, %c0_58] : memref<1x8x8x128xf32, #tpu.memory_space<vmem>>, vector<1x8x8x128xf32>
    tpu.vector_store %arg4[%c0_55, %c0_56, %c0_57, %c0_58], %39 {strides = array<i32>} : memref<1x8x8x128xf32, #tpu.memory_space<vmem>>, vector<1x8x8x128xf32>,
    %cst_59 = arith.constant dense<0.000000e+00> : vector<128xf32>
    %41 = vector.multi_reduction <add>, %38, %cst_59 [0] : vector<64x128xf32> to vector<128xf32>
    %42 = vector.shape_cast %41 : vector<128xf32> to vector<1x128xf32>
    %c0_60 = arith.constant 0 : index
    %c0_61 = arith.constant 0 : index
    %c0_62 = arith.constant 0 : index
    %43 = vector.load %arg6[%c0_60, %c0_61, %c0_62] : memref<1x4x128xf32, #tpu.memory_space<vmem>>, vector<1x1x128xf32>
    %44 = vector.shape_cast %43 : vector<1x1x128xf32> to vector<1x128xf32>
    %45 = vector.shape_cast %42 : vector<1x128xf32> to vector<1x1x128xf32>
    tpu.vector_store %arg6[%c0_60, %c0_61, %c0_62], %45 {strides = array<i32>} : memref<1x4x128xf32, #tpu.memory_space<vmem>>, vector<1x1x128xf32>,
    %46 = arith.mulf %38, %38 : vector<64x128xf32>
    %cst_63 = arith.constant dense<0.000000e+00> : vector<128xf32>
    %47 = vector.multi_reduction <add>, %46, %cst_63 [0] : vector<64x128xf32> to vector<128xf32>
    %48 = vector.shape_cast %47 : vector<128xf32> to vector<1x128xf32>
    %c0_64 = arith.constant 0 : index
    %c1_65 = arith.constant 1 : index
    %c0_66 = arith.constant 0 : index
    %49 = vector.load %arg6[%c0_64, %c1_65, %c0_66] : memref<1x4x128xf32, #tpu.memory_space<vmem>>, vector<1x1x128xf32>
    %50 = vector.shape_cast %49 : vector<1x1x128xf32> to vector<1x128xf32>
    %51 = vector.shape_cast %48 : vector<1x128xf32> to vector<1x1x128xf32>
    tpu.vector_store %arg6[%c0_64, %c1_65, %c0_66], %51 {strides = array<i32>} : memref<1x4x128xf32, #tpu.memory_space<vmem>>, vector<1x1x128xf32>,
    %c3_67 = arith.constant 3 : index
    %c0_68 = arith.constant 0 : index
    %c0_69 = arith.constant 0 : index
    %c0_70 = arith.constant 0 : index
    %c0_71 = arith.constant 0 : index
    %52 = vector.load %arg1[%c3_67, %c0_68, %c0_69, %c0_70, %c0_71] : memref<4x1x9x9x128xbf16, #tpu.memory_space<vmem>>, vector<1x1x8x8x128xbf16>
    %53 = vector.shape_cast %52 : vector<1x1x8x8x128xbf16> to vector<8x8x128xbf16>
    %54 = vector.shape_cast %53 : vector<8x8x128xbf16> to vector<64x128xbf16>
    %c0_72 = arith.constant 0 : index
    %c0_73 = arith.constant 0 : index
    %55 = vector.load %arg3[%c0_72, %c0_73] : memref<128x128xbf16, #tpu.memory_space<vmem>>, vector<128x128xbf16>
    %cst_74 = arith.constant dense<0.000000e+00> : vector<64x128xf32>
    %56 = tpu.matmul %54, %55, %cst_74 {dimension_numbers = #tpu.dot_dimension_numbers<[1], [0], [0], [1], [0, 0, 1, 1], [], []>} : vector<64x128xbf16>, vector<128x128xbf16>, vector<64x128xf32> -> vector<64x128xf32>
    %57 = vector.shape_cast %56 : vector<64x128xf32> to vector<1x8x8x128xf32>
    %c0_75 = arith.constant 0 : index
    %c0_76 = arith.constant 0 : index
    %c0_77 = arith.constant 0 : index
    %c0_78 = arith.constant 0 : index
    %58 = vector.load %arg5[%c0_75, %c0_76, %c0_77, %c0_78] : memref<1x8x8x128xf32, #tpu.memory_space<vmem>>, vector<1x8x8x128xf32>
    tpu.vector_store %arg5[%c0_75, %c0_76, %c0_77, %c0_78], %57 {strides = array<i32>} : memref<1x8x8x128xf32, #tpu.memory_space<vmem>>, vector<1x8x8x128xf32>,
    %cst_79 = arith.constant dense<0.000000e+00> : vector<128xf32>
    %59 = vector.multi_reduction <add>, %56, %cst_79 [0] : vector<64x128xf32> to vector<128xf32>
    %60 = vector.shape_cast %59 : vector<128xf32> to vector<1x128xf32>
    %c0_80 = arith.constant 0 : index
    %c2_81 = arith.constant 2 : index
    %c0_82 = arith.constant 0 : index
    %61 = vector.load %arg6[%c0_80, %c2_81, %c0_82] : memref<1x4x128xf32, #tpu.memory_space<vmem>>, vector<1x1x128xf32>
    %62 = vector.shape_cast %61 : vector<1x1x128xf32> to vector<1x128xf32>
    %63 = vector.shape_cast %60 : vector<1x128xf32> to vector<1x1x128xf32>
    tpu.vector_store %arg6[%c0_80, %c2_81, %c0_82], %63 {strides = array<i32>} : memref<1x4x128xf32, #tpu.memory_space<vmem>>, vector<1x1x128xf32>,
    %64 = arith.mulf %56, %56 : vector<64x128xf32>
    %cst_83 = arith.constant dense<0.000000e+00> : vector<128xf32>
    %65 = vector.multi_reduction <add>, %64, %cst_83 [0] : vector<64x128xf32> to vector<128xf32>
    %66 = vector.shape_cast %65 : vector<128xf32> to vector<1x128xf32>
    %c0_84 = arith.constant 0 : index
    %c3_85 = arith.constant 3 : index
    %c0_86 = arith.constant 0 : index
    %67 = vector.load %arg6[%c0_84, %c3_85, %c0_86] : memref<1x4x128xf32, #tpu.memory_space<vmem>>, vector<1x1x128xf32>
    %68 = vector.shape_cast %67 : vector<1x1x128xf32> to vector<1x128xf32>
    %69 = vector.shape_cast %66 : vector<1x128xf32> to vector<1x1x128xf32>
    tpu.vector_store %arg6[%c0_84, %c3_85, %c0_86], %69 {strides = array<i32>} : memref<1x4x128xf32, #tpu.memory_space<vmem>>, vector<1x1x128xf32>,
    return
  }
  func.func @transform_0(%arg0: i32) -> (i32, i32, i32, i32, i32) {
    %c0_i32 = arith.constant 0 : i32
    %c0_i32_0 = arith.constant 0 : i32
    %c0_i32_1 = arith.constant 0 : i32
    %c0_i32_2 = arith.constant 0 : i32
    %c0_i32_3 = arith.constant 0 : i32
    return %c0_i32, %arg0, %c0_i32_0, %c0_i32_1, %c0_i32_2 : i32, i32, i32, i32, i32
  }
  func.func @transform_1(%arg0: i32) -> (i32, i32) {
    %c0_i32 = arith.constant 0 : i32
    %c0_i32_0 = arith.constant 0 : i32
    %c0_i32_1 = arith.constant 0 : i32
    return %c0_i32, %c0_i32_0 : i32, i32
  }
  func.func @transform_2(%arg0: i32) -> (i32, i32) {
    %c0_i32 = arith.constant 0 : i32
    %c0_i32_0 = arith.constant 0 : i32
    %c0_i32_1 = arith.constant 0 : i32
    return %c0_i32, %c0_i32_0 : i32, i32
  }
  func.func @transform_3(%arg0: i32) -> (i32, i32, i32, i32) {
    %c0_i32 = arith.constant 0 : i32
    %c0_i32_0 = arith.constant 0 : i32
    %c0_i32_1 = arith.constant 0 : i32
    %c0_i32_2 = arith.constant 0 : i32
    return %arg0, %c0_i32, %c0_i32_0, %c0_i32_1 : i32, i32, i32, i32
  }
  func.func @transform_4(%arg0: i32) -> (i32, i32, i32, i32) {
    %c0_i32 = arith.constant 0 : i32
    %c0_i32_0 = arith.constant 0 : i32
    %c0_i32_1 = arith.constant 0 : i32
    %c0_i32_2 = arith.constant 0 : i32
    return %arg0, %c0_i32, %c0_i32_0, %c0_i32_1 : i32, i32, i32, i32
  }
  func.func @transform_5(%arg0: i32) -> (i32, i32, i32) {
    %c0_i32 = arith.constant 0 : i32
    %c0_i32_0 = arith.constant 0 : i32
    %c0_i32_1 = arith.constant 0 : i32
    return %arg0, %c0_i32, %c0_i32_0 : i32, i32, i32
  }
}

module attributes {stable_mosaic.version = 11 : i64} {
  func.func @_combine_conv_sc_kernel(%arg0: i32, %arg1: memref<1x8x8x128xf32, #tpu.memory_space<vmem>>, %arg2: memref<1x8x8x128xf32, #tpu.memory_space<vmem>>, %arg3: memref<1x128xf32, #tpu.memory_space<vmem>>, %arg4: memref<1x128xf32, #tpu.memory_space<vmem>>, %arg5: memref<1x128xf32, #tpu.memory_space<vmem>>, %arg6: memref<1x128xf32, #tpu.memory_space<vmem>>, %arg7: memref<1x8x8x128xf32, #tpu.memory_space<vmem>>) attributes {dimension_semantics = [#tpu.dimension_semantics<parallel>], iteration_bounds = array<i64: 2>, scalar_prefetch = 0 : i64, scratch_operands = 0 : i64, tpu.core_type = #tpu.core_type<tc>, window_params = [{transform_indices = @transform_0, window_bounds = array<i64: 1, 8, 8, 128>}, {transform_indices = @transform_1, window_bounds = array<i64: 1, 8, 8, 128>}, {pipeline_mode = #tpu.pipeline_mode<synchronous>, transform_indices = @transform_2, window_bounds = array<i64: 1, 128>}, {pipeline_mode = #tpu.pipeline_mode<synchronous>, transform_indices = @transform_3, window_bounds = array<i64: 1, 128>}, {pipeline_mode = #tpu.pipeline_mode<synchronous>, transform_indices = @transform_4, window_bounds = array<i64: 1, 128>}, {pipeline_mode = #tpu.pipeline_mode<synchronous>, transform_indices = @transform_5, window_bounds = array<i64: 1, 128>}, {transform_indices = @transform_6, window_bounds = array<i64: 1, 8, 8, 128>}]} {
    %c0 = arith.constant 0 : index
    %c0_0 = arith.constant 0 : index
    %c0_1 = arith.constant 0 : index
    %c0_2 = arith.constant 0 : index
    %0 = vector.load %arg1[%c0, %c0_0, %c0_1, %c0_2] : memref<1x8x8x128xf32, #tpu.memory_space<vmem>>, vector<1x8x8x128xf32>
    %c0_3 = arith.constant 0 : index
    %c0_4 = arith.constant 0 : index
    %1 = vector.load %arg3[%c0_3, %c0_4] : memref<1x128xf32, #tpu.memory_space<vmem>>, vector<1x128xf32>
    %2 = vector.shape_cast %1 : vector<1x128xf32> to vector<1x1x1x128xf32>
    %3 = vector.broadcast %2 : vector<1x1x1x128xf32> to vector<1x8x8x128xf32>
    %4 = arith.mulf %0, %3 : vector<1x8x8x128xf32>
    %c0_5 = arith.constant 0 : index
    %c0_6 = arith.constant 0 : index
    %5 = vector.load %arg4[%c0_5, %c0_6] : memref<1x128xf32, #tpu.memory_space<vmem>>, vector<1x128xf32>
    %6 = vector.shape_cast %5 : vector<1x128xf32> to vector<1x1x1x128xf32>
    %7 = vector.broadcast %6 : vector<1x1x1x128xf32> to vector<1x8x8x128xf32>
    %8 = arith.addf %4, %7 : vector<1x8x8x128xf32>
    %c0_7 = arith.constant 0 : index
    %c0_8 = arith.constant 0 : index
    %c0_9 = arith.constant 0 : index
    %c0_10 = arith.constant 0 : index
    %9 = vector.load %arg2[%c0_7, %c0_8, %c0_9, %c0_10] : memref<1x8x8x128xf32, #tpu.memory_space<vmem>>, vector<1x8x8x128xf32>
    %c0_11 = arith.constant 0 : index
    %c0_12 = arith.constant 0 : index
    %10 = vector.load %arg5[%c0_11, %c0_12] : memref<1x128xf32, #tpu.memory_space<vmem>>, vector<1x128xf32>
    %11 = vector.shape_cast %10 : vector<1x128xf32> to vector<1x1x1x128xf32>
    %12 = vector.broadcast %11 : vector<1x1x1x128xf32> to vector<1x8x8x128xf32>
    %13 = arith.mulf %9, %12 : vector<1x8x8x128xf32>
    %c0_13 = arith.constant 0 : index
    %c0_14 = arith.constant 0 : index
    %14 = vector.load %arg6[%c0_13, %c0_14] : memref<1x128xf32, #tpu.memory_space<vmem>>, vector<1x128xf32>
    %15 = vector.shape_cast %14 : vector<1x128xf32> to vector<1x1x1x128xf32>
    %16 = vector.broadcast %15 : vector<1x1x1x128xf32> to vector<1x8x8x128xf32>
    %17 = arith.addf %13, %16 : vector<1x8x8x128xf32>
    %18 = arith.addf %8, %17 : vector<1x8x8x128xf32>
    %cst = arith.constant 0.000000e+00 : f32
    %19 = vector.broadcast %cst : f32 to vector<1x8x8x128xf32>
    %20 = arith.maximumf %18, %19 : vector<1x8x8x128xf32>
    %c0_15 = arith.constant 0 : index
    %c0_16 = arith.constant 0 : index
    %c0_17 = arith.constant 0 : index
    %c0_18 = arith.constant 0 : index
    %21 = vector.load %arg7[%c0_15, %c0_16, %c0_17, %c0_18] : memref<1x8x8x128xf32, #tpu.memory_space<vmem>>, vector<1x8x8x128xf32>
    tpu.vector_store %arg7[%c0_15, %c0_16, %c0_17, %c0_18], %20 {strides = array<i32>} : memref<1x8x8x128xf32, #tpu.memory_space<vmem>>, vector<1x8x8x128xf32>,
    return
  }
  func.func @transform_0(%arg0: i32) -> (i32, i32, i32, i32) {
    %c0_i32 = arith.constant 0 : i32
    %c0_i32_0 = arith.constant 0 : i32
    %c0_i32_1 = arith.constant 0 : i32
    %c0_i32_2 = arith.constant 0 : i32
    return %arg0, %c0_i32, %c0_i32_0, %c0_i32_1 : i32, i32, i32, i32
  }
  func.func @transform_1(%arg0: i32) -> (i32, i32, i32, i32) {
    %c0_i32 = arith.constant 0 : i32
    %c0_i32_0 = arith.constant 0 : i32
    %c0_i32_1 = arith.constant 0 : i32
    %c0_i32_2 = arith.constant 0 : i32
    return %arg0, %c0_i32, %c0_i32_0, %c0_i32_1 : i32, i32, i32, i32
  }
  func.func @transform_2(%arg0: i32) -> (i32, i32) {
    %c0_i32 = arith.constant 0 : i32
    %c0_i32_0 = arith.constant 0 : i32
    %c0_i32_1 = arith.constant 0 : i32
    return %c0_i32, %c0_i32_0 : i32, i32
  }
  func.func @transform_3(%arg0: i32) -> (i32, i32) {
    %c0_i32 = arith.constant 0 : i32
    %c0_i32_0 = arith.constant 0 : i32
    %c0_i32_1 = arith.constant 0 : i32
    return %c0_i32, %c0_i32_0 : i32, i32
  }
  func.func @transform_4(%arg0: i32) -> (i32, i32) {
    %c0_i32 = arith.constant 0 : i32
    %c0_i32_0 = arith.constant 0 : i32
    %c0_i32_1 = arith.constant 0 : i32
    return %c0_i32, %c0_i32_0 : i32, i32
  }
  func.func @transform_5(%arg0: i32) -> (i32, i32) {
    %c0_i32 = arith.constant 0 : i32
    %c0_i32_0 = arith.constant 0 : i32
    %c0_i32_1 = arith.constant 0 : i32
    return %c0_i32, %c0_i32_0 : i32, i32
  }
  func.func @transform_6(%arg0: i32) -> (i32, i32, i32, i32) {
    %c0_i32 = arith.constant 0 : i32
    %c0_i32_0 = arith.constant 0 : i32
    %c0_i32_1 = arith.constant 0 : i32
    %c0_i32_2 = arith.constant 0 : i32
    return %arg0, %c0_i32, %c0_i32_0, %c0_i32_1 : i32, i32, i32, i32
  }
}

</mosaic_0001>

<llo_original>
// kernel: residual_block_pallas.5
$region0: #{residual_block_pallas.5}
  #allocation0 [shape = 'u32[]', space=smem, size = 0x4, offset = 0x4, fixed_abs, tag = 'smem constant byte address 0x4 - core index']
  #allocation1 [shape = 'u32[144,128]{1,0:T(1,128)}', space=vmem, size = 0x12000, scoped, tag = 'internal scratch']
  %s0 = inlined_call_operand.vmem [shape: f32[2,8,8,128], index: 0, kind: input, shape index: {}]
  %s1 = inlined_call_operand.vmem [shape: f32[2,8,8,128], index: 1, kind: input, shape index: {}]
  %s2 = inlined_call_operand.vmem [shape: f32[1,128], index: 2, kind: input, shape index: {}]
  %s3 = inlined_call_operand.vmem [shape: f32[1,128], index: 3, kind: input, shape index: {}]
  %s4 = inlined_call_operand.vmem [shape: f32[1,128], index: 4, kind: input, shape index: {}]
  %s5 = inlined_call_operand.vmem [shape: f32[1,128], index: 5, kind: input, shape index: {}]
  %s6 = inlined_call_operand.vmem [shape: f32[2,8,8,128], index: 6, kind: output, shape index: {}]
  %s7 = sld [smem:[#allocation0]]
  $region57: #{residual_block_pallas.5} parent=0
    _
  %s9 = ssub.s32 1, %s7
  %s10 = scalar_select 0, %s9, %s7
  loop: start=0, step=1, limit=4
  $region2: #{residual_block_pallas.5} parent=0 // loop_pre_header
    _
  $region3: #{residual_block_pallas.5} parent=0 // loop_header
    %s12 = sphi 0, %s16
    %p13 = scmp.ge.s32.totalorder %s12, 4
    %s22 = sphi 0, %s24
    %s25 = sphi 0, %s22
    %s26 = sphi 0, %s25
    %s42 = sphi 0, %s26
    %s48 = sphi 0, %s50
    %s51 = sphi 0, %s48
    %s52 = sphi 0, %s51
    %s68 = sphi 0, %s52
    %s72 = sphi 0, %s72
    %s74 = sphi 0, %s72
    %s75 = sphi 0, %s74
    %s89 = sphi 0, %s75
    %s93 = sphi 0, %s93
    %s95 = sphi 0, %s93
    %s96 = sphi 0, %s95
    %s110 = sphi 0, %s96
    %s114 = sphi 0, %s114
    %s116 = sphi 0, %s114
    %s117 = sphi 0, %s116
    %s131 = sphi 0, %s117
    %s135 = sphi 0, %s135
    %s137 = sphi 0, %s135
    %s138 = sphi 0, %s137
    %s152 = sphi 0, %s138
    %s158 = sphi 0, %s160
    %s161 = sphi 0, %s158
    %s162 = sphi 0, %s161
    %s178 = sphi 0, %s162
  $region4: #{residual_block_pallas.5} parent=0 // loop_header_branch
    %15 = sbr.rel (%p13) target = $region8
  $region5: #{residual_block_pallas.5} parent=0 // loop_body
    %s17 = ssub.s32 %s12, 1
    %s18 = ssub.s32 %s12, 2
    %s19 = sadd.s32 %s12, 1
    %s20 = ssub.s32 %s12, %s19
    %p21 = scmp.eq.s32.totalorder %s20, 0
    %s23 = sadd.s32 %s22, 1
    %s24 = scalar_select %p21, %s22, %s23
    %p27 = pneg %p21
    %p28 = scmp.eq.s32.totalorder %s12, 1
    %p29 = por %p27, %p28
    %p30 = scmp.ne.s32.totalorder %s22, %s25
    %p31 = scmp.eq.s32.totalorder %s12, 0
    %p32 = por %p30, %p31
    %p33 = scmp.ne.s32.totalorder %s22, %s25
    %p34 = scmp.eq.s32.totalorder %s17, 1
    %p35 = por %p33, %p34
    %p36 = scmp.ne.s32.totalorder %s25, %s26
    %p37 = scmp.eq.s32.totalorder %s17, 0
    %p38 = por %p36, %p37
    %p39 = scmp.ne.s32.totalorder %s25, %s26
    %p40 = scmp.eq.s32.totalorder %s18, 1
    %p41 = por %p39, %p40
    %p43 = scmp.ne.s32.totalorder %s26, %s42
    %p44 = scmp.eq.s32.totalorder %s18, 0
    %p45 = por %p43, %p44
    %s46 = ssub.s32 %s12, %s19
    %p47 = scmp.eq.s32.totalorder %s46, 0
    %s49 = sadd.s32 %s48, 1
    %s50 = scalar_select %p47, %s48, %s49
    %p53 = pneg %p47
    %p54 = scmp.eq.s32.totalorder %s12, 1
    %p55 = por %p53, %p54
    %p56 = scmp.ne.s32.totalorder %s48, %s51
    %p57 = scmp.eq.s32.totalorder %s12, 0
    %p58 = por %p56, %p57
    %p59 = scmp.ne.s32.totalorder %s48, %s51
    %p60 = scmp.eq.s32.totalorder %s17, 1
    %p61 = por %p59, %p60
    %p62 = scmp.ne.s32.totalorder %s51, %s52
    %p63 = scmp.eq.s32.totalorder %s17, 0
    %p64 = por %p62, %p63
    %p65 = scmp.ne.s32.totalorder %s51, %s52
    %p66 = scmp.eq.s32.totalorder %s18, 1
    %p67 = por %p65, %p66
    %p69 = scmp.ne.s32.totalorder %s52, %s68
    %p70 = scmp.eq.s32.totalorder %s18, 0
    %p71 = por %p69, %p70
    %s73 = sadd.s32 %s72, 1
    %p76 = scmp.eq.s32.totalorder %s12, 1
    %p77 = scmp.ne.s32.totalorder %s72, %s74
    %p78 = scmp.eq.s32.totalorder %s12, 0
    %p79 = por %p77, %p78
    %p80 = scmp.ne.s32.totalorder %s72, %s74
    %p81 = scmp.eq.s32.totalorder %s17, 1
    %p82 = por %p80, %p81
    %p83 = scmp.ne.s32.totalorder %s74, %s75
    %p84 = scmp.eq.s32.totalorder %s17, 0
    %p85 = por %p83, %p84
    %p86 = scmp.ne.s32.totalorder %s74, %s75
    %p87 = scmp.eq.s32.totalorder %s18, 1
    %p88 = por %p86, %p87
    %p90 = scmp.ne.s32.totalorder %s75, %s89
    %p91 = scmp.eq.s32.totalorder %s18, 0
    %p92 = por %p90, %p91
    %s94 = sadd.s32 %s93, 1
    %p97 = scmp.eq.s32.totalorder %s12, 1
    %p98 = scmp.ne.s32.totalorder %s93, %s95
    %p99 = scmp.eq.s32.totalorder %s12, 0
    %p100 = por %p98, %p99
    %p101 = scmp.ne.s32.totalorder %s93, %s95
    %p102 = scmp.eq.s32.totalorder %s17, 1
    %p103 = por %p101, %p102
    %p104 = scmp.ne.s32.totalorder %s95, %s96
    %p105 = scmp.eq.s32.totalorder %s17, 0
    %p106 = por %p104, %p105
    %p107 = scmp.ne.s32.totalorder %s95, %s96
    %p108 = scmp.eq.s32.totalorder %s18, 1
    %p109 = por %p107, %p108
    %p111 = scmp.ne.s32.totalorder %s96, %s110
    %p112 = scmp.eq.s32.totalorder %s18, 0
    %p113 = por %p111, %p112
    %s115 = sadd.s32 %s114, 1
    %p118 = scmp.eq.s32.totalorder %s12, 1
    %p119 = scmp.ne.s32.totalorder %s114, %s116
    %p120 = scmp.eq.s32.totalorder %s12, 0
    %p121 = por %p119, %p120
    %p122 = scmp.ne.s32.totalorder %s114, %s116
    %p123 = scmp.eq.s32.totalorder %s17, 1
    %p124 = por %p122, %p123
    %p125 = scmp.ne.s32.totalorder %s116, %s117
    %p126 = scmp.eq.s32.totalorder %s17, 0
    %p127 = por %p125, %p126
    %p128 = scmp.ne.s32.totalorder %s116, %s117
    %p129 = scmp.eq.s32.totalorder %s18, 1
    %p130 = por %p128, %p129
    %p132 = scmp.ne.s32.totalorder %s117, %s131
    %p133 = scmp.eq.s32.totalorder %s18, 0
    %p134 = por %p132, %p133
    %s136 = sadd.s32 %s135, 1
    %p139 = scmp.eq.s32.totalorder %s12, 1
    %p140 = scmp.ne.s32.totalorder %s135, %s137
    %p141 = scmp.eq.s32.totalorder %s12, 0
    %p142 = por %p140, %p141
    %p143 = scmp.ne.s32.totalorder %s135, %s137
    %p144 = scmp.eq.s32.totalorder %s17, 1
    %p145 = por %p143, %p144
    %p146 = scmp.ne.s32.totalorder %s137, %s138
    %p147 = scmp.eq.s32.totalorder %s17, 0
    %p148 = por %p146, %p147
    %p149 = scmp.ne.s32.totalorder %s137, %s138
    %p150 = scmp.eq.s32.totalorder %s18, 1
    %p151 = por %p149, %p150
    %p153 = scmp.ne.s32.totalorder %s138, %s152
    %p154 = scmp.eq.s32.totalorder %s18, 0
    %p155 = por %p153, %p154
    %s156 = ssub.s32 %s12, %s19
    %p157 = scmp.eq.s32.totalorder %s156, 0
    %s159 = sadd.s32 %s158, 1
    %s160 = scalar_select %p157, %s158, %s159
    %p163 = pneg %p157
    %p164 = scmp.eq.s32.totalorder %s12, 1
    %p165 = por %p163, %p164
    %p166 = scmp.ne.s32.totalorder %s158, %s161
    %p167 = scmp.eq.s32.totalorder %s12, 0
    %p168 = por %p166, %p167
    %p169 = scmp.ne.s32.totalorder %s158, %s161
    %p170 = scmp.eq.s32.totalorder %s17, 1
    %p171 = por %p169, %p170
    %p172 = scmp.ne.s32.totalorder %s161, %s162
    %p173 = scmp.eq.s32.totalorder %s17, 0
    %p174 = por %p172, %p173
    %p175 = scmp.ne.s32.totalorder %s161, %s162
    %p176 = scmp.eq.s32.totalorder %s18, 1
    %p177 = por %p175, %p176
    %p179 = scmp.ne.s32.totalorder %s162, %s178
    %p180 = scmp.eq.s32.totalorder %s18, 0
    %p181 = por %p179, %p180
    %p182 = scmp.le.s32.totalorder 1, %s12
    %p183 = scmp.lt.s32.totalorder %s12, 3
    %p184 = pnand %p182, %p183
    %p185 = pneg %p184
    // Predicated region
    $region9: #{residual_block_pallas.5} parent=5 // pred_check
      _
    $region10: #{residual_block_pallas.5} parent=5 // pred_check_branch
      %187 = sbr.rel (%p184) target = $region12
    $region11: #{residual_block_pallas.5} parent=5 // pred_region
      %s188 = ssub.s32 %s12, 1
      // Predicated region
      $region13: #{residual_block_pallas.5} parent=11 // pred_check
        %p189 = pneg %p85
      $region14: #{residual_block_pallas.5} parent=11 // pred_check_branch
        %191 = sbr.rel (%p189) target = $region16
      $region15: #{residual_block_pallas.5} parent=11 // pred_region
        _
      $region16: #{residual_block_pallas.5} parent=11 // pred_fallthru
        _
      // Predicated region
      $region17: #{residual_block_pallas.5} parent=11 // pred_check
        %p192 = pneg %p106
      $region18: #{residual_block_pallas.5} parent=11 // pred_check_branch
        %194 = sbr.rel (%p192) target = $region20
      $region19: #{residual_block_pallas.5} parent=11 // pred_region
        _
      $region20: #{residual_block_pallas.5} parent=11 // pred_fallthru
        _
      // Predicated region
      $region21: #{residual_block_pallas.5} parent=11 // pred_check
        %p195 = pneg %p127
      $region22: #{residual_block_pallas.5} parent=11 // pred_check_branch
        %197 = sbr.rel (%p195) target = $region24
      $region23: #{residual_block_pallas.5} parent=11 // pred_region
        _
      $region24: #{residual_block_pallas.5} parent=11 // pred_fallthru
        _
      // Predicated region
      $region25: #{residual_block_pallas.5} parent=11 // pred_check
        %p198 = pneg %p148
      $region26: #{residual_block_pallas.5} parent=11 // pred_check_branch
        %200 = sbr.rel (%p198) target = $region28
      $region27: #{residual_block_pallas.5} parent=11 // pred_region
        _
      $region28: #{residual_block_pallas.5} parent=11 // pred_fallthru
        _
    $region12: #{residual_block_pallas.5} parent=5 // pred_fallthru
      _
    %p201 = scmp.lt.s32.totalorder %s12, 2
    // Predicated region
    $region29: #{residual_block_pallas.5} parent=5 // pred_check
      %p202 = pneg %p201
    $region30: #{residual_block_pallas.5} parent=5 // pred_check_branch
      %204 = sbr.rel (%p202) target = $region32
    $region31: #{residual_block_pallas.5} parent=5 // pred_region
      // Predicated region
      $region33: #{residual_block_pallas.5} parent=31 // pred_check
        %p205 = pneg %p32
      $region34: #{residual_block_pallas.5} parent=31 // pred_check_branch
        %207 = sbr.rel (%p205) target = $region36
      $region35: #{residual_block_pallas.5} parent=31 // pred_region
        %p208 = scmp.lt.s32.totalorder %s12, 1
        %s209 = scalar_select %p208, %s12, 1
        %s210 = smul.addr %s209, 8
        %s211 = smul.addr %s210, 8
        %s212 = scalar_lea.vmem %s0, %s211
      $region36: #{residual_block_pallas.5} parent=31 // pred_fallthru
        _
      // Predicated region
      $region37: #{residual_block_pallas.5} parent=31 // pred_check
        %p213 = pneg %p58
      $region38: #{residual_block_pallas.5} parent=31 // pred_check_branch
        %215 = sbr.rel (%p213) target = $region40
      $region39: #{residual_block_pallas.5} parent=31 // pred_region
        %p216 = scmp.lt.s32.totalorder %s12, 1
        %s217 = scalar_select %p216, %s12, 1
        %s218 = smul.addr %s217, 8
        %s219 = smul.addr %s218, 8
        %s220 = scalar_lea.vmem %s1, %s219
      $region40: #{residual_block_pallas.5} parent=31 // pred_fallthru
        _
    $region32: #{residual_block_pallas.5} parent=5 // pred_fallthru
      _
    %p221 = scmp.le.s32.totalorder 1, %s12
    %p222 = scmp.lt.s32.totalorder %s12, 3
    %p223 = pnand %p221, %p222
    %p224 = pneg %p223
    // Predicated region
    $region41: #{residual_block_pallas.5} parent=5 // pred_check
      _
    $region42: #{residual_block_pallas.5} parent=5 // pred_check_branch
      %226 = sbr.rel (%p223) target = $region44
    $region43: #{residual_block_pallas.5} parent=5 // pred_region
      %s227 = ssub.s32 %s12, 1
      %p228 = scmp.lt.s32.totalorder %s17, 1
      %s229 = scalar_select %p228, %s17, 1
      %s230 = smul.addr %s229, 8
      %s231 = smul.addr %s230, 8
      %s232 = scalar_lea.vmem %s0, %s231
      %p233 = pneg %p38
      %p234 = pneg %p35
      %p235 = scmp.lt.s32.totalorder %s17, 1
      %s236 = scalar_select %p235, %s17, 1
      %s237 = smul.addr %s236, 8
      %s238 = smul.addr %s237, 8
      %s239 = scalar_lea.vmem %s1, %s238
      %p240 = pneg %p64
      %p241 = pneg %p61
      %p242 = pneg %p85
      %p243 = pneg %p82
      %p244 = pneg %p106
      %p245 = pneg %p103
      %p246 = pneg %p127
      %p247 = pneg %p124
      %p248 = pneg %p148
      %p249 = pneg %p145
      %p250 = pneg %p174
      %p251 = pneg %p171
      %p252 = scmp.lt.s32.totalorder %s17, 1
      %s253 = scalar_select %p252, %s17, 1
      %s254 = smul.addr %s253, 8
      %s255 = smul.addr %s254, 8
      %s256 = scalar_lea.vmem %s6, %s255
      %p257 = scmp.lt.s32.totalorder %s17, 1
      %s258 = scalar_select %p257, %s17, 1
      %s259 = smul.addr %s258, 8
      %s260 = smul.addr %s259, 8
      %s261 = scalar_lea.vmem %s0, %s260
      %p262 = scmp.lt.s32.totalorder %s17, 1
      %s263 = scalar_select %p262, %s17, 1
      %s264 = smul.addr %s263, 8
      %s265 = smul.addr %s264, 8
      %s266 = scalar_lea.vmem %s1, %s265
      %p267 = scmp.lt.s32.totalorder %s17, 1
      %s268 = scalar_select %p267, %s17, 1
      %s269 = smul.addr %s268, 8
      %s270 = smul.addr %s269, 8
      %s271 = scalar_lea.vmem %s6, %s270
      %v272 = vld [vmem:[%s261] sm:$0xff]
      %v273 = vld [vmem:[%s261 + $0x8] sm:$0xff]
      %v274 = vld [vmem:[%s261 + $0x10] sm:$0xff]
      %v275 = vld [vmem:[%s261 + $0x18] sm:$0xff]
      %v276 = vld [vmem:[%s261 + $0x20] sm:$0xff]
      %v277 = vld [vmem:[%s261 + $0x28] sm:$0xff]
      %v278 = vld [vmem:[%s261 + $0x30] sm:$0xff]
      %v279 = vld [vmem:[%s261 + $0x38] sm:$0xff]
      %v280 = vld [vmem:[%s2] sm:$0x1]
      %v282 = vlaneseq
      %v283 = vshrl.u32 %v282, 7
      %v284 = vsub.s32 0, %v283
      %v285 = vrot.slane %v280, %v284
      %v287 = vmul.f32 %v272, %v285
      %v288 = vmul.f32 %v273, %v285
      %v289 = vmul.f32 %v274, %v285
      %v290 = vmul.f32 %v275, %v285
      %v291 = vmul.f32 %v276, %v285
      %v292 = vmul.f32 %v277, %v285
      %v293 = vmul.f32 %v278, %v285
      %v294 = vmul.f32 %v279, %v285
      %v295 = vld [vmem:[%s3] sm:$0x1]
      %v297 = vlaneseq
      %v298 = vshrl.u32 %v297, 7
      %v299 = vsub.s32 0, %v298
      %v300 = vrot.slane %v295, %v299
      %v302 = vadd.f32 %v287, %v300
      %v303 = vadd.f32 %v288, %v300
      %v304 = vadd.f32 %v289, %v300
      %v305 = vadd.f32 %v290, %v300
      %v306 = vadd.f32 %v291, %v300
      %v307 = vadd.f32 %v292, %v300
      %v308 = vadd.f32 %v293, %v300
      %v309 = vadd.f32 %v294, %v300
      %v310 = vld [vmem:[%s266] sm:$0xff]
      %v311 = vld [vmem:[%s266 + $0x8] sm:$0xff]
      %v312 = vld [vmem:[%s266 + $0x10] sm:$0xff]
      %v313 = vld [vmem:[%s266 + $0x18] sm:$0xff]
      %v314 = vld [vmem:[%s266 + $0x20] sm:$0xff]
      %v315 = vld [vmem:[%s266 + $0x28] sm:$0xff]
      %v316 = vld [vmem:[%s266 + $0x30] sm:$0xff]
      %v317 = vld [vmem:[%s266 + $0x38] sm:$0xff]
      %v318 = vld [vmem:[%s4] sm:$0x1]
      %v320 = vlaneseq
      %v321 = vshrl.u32 %v320, 7
      %v322 = vsub.s32 0, %v321
      %v323 = vrot.slane %v318, %v322
      %v325 = vmul.f32 %v310, %v323
      %v326 = vmul.f32 %v311, %v323
      %v327 = vmul.f32 %v312, %v323
      %v328 = vmul.f32 %v313, %v323
      %v329 = vmul.f32 %v314, %v323
      %v330 = vmul.f32 %v315, %v323
      %v331 = vmul.f32 %v316, %v323
      %v332 = vmul.f32 %v317, %v323
      %v333 = vld [vmem:[%s5] sm:$0x1]
      %v335 = vlaneseq
      %v336 = vshrl.u32 %v335, 7
      %v337 = vsub.s32 0, %v336
      %v338 = vrot.slane %v333, %v337
      %v340 = vadd.f32 %v325, %v338
      %v341 = vadd.f32 %v326, %v338
      %v342 = vadd.f32 %v327, %v338
      %v343 = vadd.f32 %v328, %v338
      %v344 = vadd.f32 %v329, %v338
      %v345 = vadd.f32 %v330, %v338
      %v346 = vadd.f32 %v331, %v338
      %v347 = vadd.f32 %v332, %v338
      %v348 = vadd.f32 %v302, %v340
      %v349 = vadd.f32 %v303, %v341
      %v350 = vadd.f32 %v304, %v342
      %v351 = vadd.f32 %v305, %v343
      %v352 = vadd.f32 %v306, %v344
      %v353 = vadd.f32 %v307, %v345
      %v354 = vadd.f32 %v308, %v346
      %v355 = vadd.f32 %v309, %v347
      %v356 = vmax.f32 %v348, 0.0
      %v357 = vmax.f32 %v349, 0.0
      %v358 = vmax.f32 %v350, 0.0
      %v359 = vmax.f32 %v351, 0.0
      %v360 = vmax.f32 %v352, 0.0
      %v361 = vmax.f32 %v353, 0.0
      %v362 = vmax.f32 %v354, 0.0
      %v363 = vmax.f32 %v355, 0.0
      %364 = vst [vmem:[%s271] sm:$0xff] %v356
      %365 = vst [vmem:[%s271 + $0x8] sm:$0xff] %v357
      %366 = vst [vmem:[%s271 + $0x10] sm:$0xff] %v358
      %367 = vst [vmem:[%s271 + $0x18] sm:$0xff] %v359
      %368 = vst [vmem:[%s271 + $0x20] sm:$0xff] %v360
      %369 = vst [vmem:[%s271 + $0x28] sm:$0xff] %v361
      %370 = vst [vmem:[%s271 + $0x30] sm:$0xff] %v362
      %371 = vst [vmem:[%s271 + $0x38] sm:$0xff] %v363
      %p372 = scmp.lt.s32.totalorder %s17, 1
      %s373 = scalar_select %p372, %s17, 1
      %s374 = smul.addr %s373, 8
      %s375 = smul.addr %s374, 8
      %s376 = scalar_lea.vmem %s6, %s375
      // Predicated region
      $region45: #{residual_block_pallas.5} parent=43 // pred_check
        %p377 = pneg %p171
      $region46: #{residual_block_pallas.5} parent=43 // pred_check_branch
        %379 = sbr.rel (%p377) target = $region48
      $region47: #{residual_block_pallas.5} parent=43 // pred_region
        _
      $region48: #{residual_block_pallas.5} parent=43 // pred_fallthru
        _
    $region44: #{residual_block_pallas.5} parent=5 // pred_fallthru
      _
    %p380 = scmp.le.s32.totalorder 2, %s12
    // Predicated region
    $region49: #{residual_block_pallas.5} parent=5 // pred_check
      %p381 = pneg %p380
    $region50: #{residual_block_pallas.5} parent=5 // pred_check_branch
      %383 = sbr.rel (%p381) target = $region52
    $region51: #{residual_block_pallas.5} parent=5 // pred_region
      %s384 = ssub.s32 %s12, 2
      // Predicated region
      $region53: #{residual_block_pallas.5} parent=51 // pred_check
        %p385 = pneg %p177
      $region54: #{residual_block_pallas.5} parent=51 // pred_check_branch
        %387 = sbr.rel (%p385) target = $region56
      $region55: #{residual_block_pallas.5} parent=51 // pred_region
        %p388 = scmp.lt.s32.totalorder %s18, 1
        %s389 = scalar_select %p388, %s18, 1
        %s390 = smul.addr %s389, 8
        %s391 = smul.addr %s390, 8
        %s392 = scalar_lea.vmem %s6, %s391
      $region56: #{residual_block_pallas.5} parent=51 // pred_fallthru
        _
    $region52: #{residual_block_pallas.5} parent=5 // pred_fallthru
      _
  $region6: #{residual_block_pallas.5} parent=0 // loop_footer
    %s16 = sadd.s32 1, %s12
  $region7: #{residual_block_pallas.5} parent=0 // loop_footer_branch
    %11 = sbr.rel target = $region3
  $region8: #{residual_block_pallas.5} parent=0 // loop_exit
    _

// kernel: residual_block_pallas.4
$region0: #{residual_block_pallas.4}
  #allocation0 [shape = 'u32[]', space=smem, size = 0x4, offset = 0x4, fixed_abs, tag = 'smem constant byte address 0x4 - core index']
  #allocation1 [shape = 'u32[144,128]{1,0:T(1,128)}', space=vmem, size = 0x12000, scoped, tag = 'internal scratch']
  #allocation2 [shape = 'bf16[10,10,128]{2,1,0:T(8,128)(2,1)}', space=vmem, size = 0xa000, scoped, tag = 'scratch operand']
  #allocation3 [shape = 'bf16[64,1152]{1,0:T(16,128)(2,1)}', space=vmem, size = 0x24000, scoped, tag = 'scratch operand']
  %s0 = inlined_call_operand.vmem [shape: f32[2,8,8,128], index: 0, kind: input, shape index: {}]
  %s1 = inlined_call_operand.vmem [shape: f32[1,128], index: 1, kind: input, shape index: {}]
  %s2 = inlined_call_operand.vmem [shape: f32[1,128], index: 2, kind: input, shape index: {}]
  %s3 = inlined_call_operand.vmem [shape: bf16[1152,128], index: 3, kind: input, shape index: {}]
  %s4 = inlined_call_operand.vmem [shape: f32[2,8,8,128], index: 4, kind: output, shape index: {0}]
  %s5 = inlined_call_operand.vmem [shape: f32[2,2,128], index: 5, kind: output, shape index: {1}]
  %6 = xla_tuple %s4, %s5
  %s7 = sld [smem:[#allocation0]]
  $region57: #{residual_block_pallas.4} parent=0
    _
  %s9 = ssub.s32 1, %s7
  %s10 = scalar_select 0, %s9, %s7
  loop: start=0, step=1, limit=4
  $region2: #{residual_block_pallas.4} parent=0 // loop_pre_header
    _
  $region3: #{residual_block_pallas.4} parent=0 // loop_header
    %s12 = sphi 0, %s16
    %p13 = scmp.ge.s32.totalorder %s12, 4
    %s22 = sphi 0, %s24
    %s25 = sphi 0, %s22
    %s26 = sphi 0, %s25
    %s42 = sphi 0, %s26
    %s46 = sphi 0, %s46
    %s48 = sphi 0, %s46
    %s49 = sphi 0, %s48
    %s63 = sphi 0, %s49
    %s67 = sphi 0, %s67
    %s69 = sphi 0, %s67
    %s70 = sphi 0, %s69
    %s84 = sphi 0, %s70
    %s88 = sphi 0, %s88
    %s90 = sphi 0, %s88
    %s91 = sphi 0, %s90
    %s105 = sphi 0, %s91
    %s111 = sphi 0, %s113
    %s114 = sphi 0, %s111
    %s115 = sphi 0, %s114
    %s131 = sphi 0, %s115
    %s137 = sphi 0, %s139
    %s140 = sphi 0, %s137
    %s141 = sphi 0, %s140
    %s157 = sphi 0, %s141
  $region4: #{residual_block_pallas.4} parent=0 // loop_header_branch
    %15 = sbr.rel (%p13) target = $region8
  $region5: #{residual_block_pallas.4} parent=0 // loop_body
    %s17 = ssub.s32 %s12, 1
    %s18 = ssub.s32 %s12, 2
    %s19 = sadd.s32 %s12, 1
    %s20 = ssub.s32 %s12, %s19
    %p21 = scmp.eq.s32.totalorder %s20, 0
    %s23 = sadd.s32 %s22, 1
    %s24 = scalar_select %p21, %s22, %s23
    %p27 = pneg %p21
    %p28 = scmp.eq.s32.totalorder %s12, 1
    %p29 = por %p27, %p28
    %p30 = scmp.ne.s32.totalorder %s22, %s25
    %p31 = scmp.eq.s32.totalorder %s12, 0
    %p32 = por %p30, %p31
    %p33 = scmp.ne.s32.totalorder %s22, %s25
    %p34 = scmp.eq.s32.totalorder %s17, 1
    %p35 = por %p33, %p34
    %p36 = scmp.ne.s32.totalorder %s25, %s26
    %p37 = scmp.eq.s32.totalorder %s17, 0
    %p38 = por %p36, %p37
    %p39 = scmp.ne.s32.totalorder %s25, %s26
    %p40 = scmp.eq.s32.totalorder %s18, 1
    %p41 = por %p39, %p40
    %p43 = scmp.ne.s32.totalorder %s26, %s42
    %p44 = scmp.eq.s32.totalorder %s18, 0
    %p45 = por %p43, %p44
    %s47 = sadd.s32 %s46, 1
    %p50 = scmp.eq.s32.totalorder %s12, 1
    %p51 = scmp.ne.s32.totalorder %s46, %s48
    %p52 = scmp.eq.s32.totalorder %s12, 0
    %p53 = por %p51, %p52
    %p54 = scmp.ne.s32.totalorder %s46, %s48
    %p55 = scmp.eq.s32.totalorder %s17, 1
    %p56 = por %p54, %p55
    %p57 = scmp.ne.s32.totalorder %s48, %s49
    %p58 = scmp.eq.s32.totalorder %s17, 0
    %p59 = por %p57, %p58
    %p60 = scmp.ne.s32.totalorder %s48, %s49
    %p61 = scmp.eq.s32.totalorder %s18, 1
    %p62 = por %p60, %p61
    %p64 = scmp.ne.s32.totalorder %s49, %s63
    %p65 = scmp.eq.s32.totalorder %s18, 0
    %p66 = por %p64, %p65
    %s68 = sadd.s32 %s67, 1
    %p71 = scmp.eq.s32.totalorder %s12, 1
    %p72 = scmp.ne.s32.totalorder %s67, %s69
    %p73 = scmp.eq.s32.totalorder %s12, 0
    %p74 = por %p72, %p73
    %p75 = scmp.ne.s32.totalorder %s67, %s69
    %p76 = scmp.eq.s32.totalorder %s17, 1
    %p77 = por %p75, %p76
    %p78 = scmp.ne.s32.totalorder %s69, %s70
    %p79 = scmp.eq.s32.totalorder %s17, 0
    %p80 = por %p78, %p79
    %p81 = scmp.ne.s32.totalorder %s69, %s70
    %p82 = scmp.eq.s32.totalorder %s18, 1
    %p83 = por %p81, %p82
    %p85 = scmp.ne.s32.totalorder %s70, %s84
    %p86 = scmp.eq.s32.totalorder %s18, 0
    %p87 = por %p85, %p86
    %s89 = sadd.s32 %s88, 1
    %p92 = scmp.eq.s32.totalorder %s12, 1
    %p93 = scmp.ne.s32.totalorder %s88, %s90
    %p94 = scmp.eq.s32.totalorder %s12, 0
    %p95 = por %p93, %p94
    %p96 = scmp.ne.s32.totalorder %s88, %s90
    %p97 = scmp.eq.s32.totalorder %s17, 1
    %p98 = por %p96, %p97
    %p99 = scmp.ne.s32.totalorder %s90, %s91
    %p100 = scmp.eq.s32.totalorder %s17, 0
    %p101 = por %p99, %p100
    %p102 = scmp.ne.s32.totalorder %s90, %s91
    %p103 = scmp.eq.s32.totalorder %s18, 1
    %p104 = por %p102, %p103
    %p106 = scmp.ne.s32.totalorder %s91, %s105
    %p107 = scmp.eq.s32.totalorder %s18, 0
    %p108 = por %p106, %p107
    %s109 = ssub.s32 %s12, %s19
    %p110 = scmp.eq.s32.totalorder %s109, 0
    %s112 = sadd.s32 %s111, 1
    %s113 = scalar_select %p110, %s111, %s112
    %p116 = pneg %p110
    %p117 = scmp.eq.s32.totalorder %s12, 1
    %p118 = por %p116, %p117
    %p119 = scmp.ne.s32.totalorder %s111, %s114
    %p120 = scmp.eq.s32.totalorder %s12, 0
    %p121 = por %p119, %p120
    %p122 = scmp.ne.s32.totalorder %s111, %s114
    %p123 = scmp.eq.s32.totalorder %s17, 1
    %p124 = por %p122, %p123
    %p125 = scmp.ne.s32.totalorder %s114, %s115
    %p126 = scmp.eq.s32.totalorder %s17, 0
    %p127 = por %p125, %p126
    %p128 = scmp.ne.s32.totalorder %s114, %s115
    %p129 = scmp.eq.s32.totalorder %s18, 1
    %p130 = por %p128, %p129
    %p132 = scmp.ne.s32.totalorder %s115, %s131
    %p133 = scmp.eq.s32.totalorder %s18, 0
    %p134 = por %p132, %p133
    %s135 = ssub.s32 %s12, %s19
    %p136 = scmp.eq.s32.totalorder %s135, 0
    %s138 = sadd.s32 %s137, 1
    %s139 = scalar_select %p136, %s137, %s138
    %p142 = pneg %p136
    %p143 = scmp.eq.s32.totalorder %s12, 1
    %p144 = por %p142, %p143
    %p145 = scmp.ne.s32.totalorder %s137, %s140
    %p146 = scmp.eq.s32.totalorder %s12, 0
    %p147 = por %p145, %p146
    %p148 = scmp.ne.s32.totalorder %s137, %s140
    %p149 = scmp.eq.s32.totalorder %s17, 1
    %p150 = por %p148, %p149
    %p151 = scmp.ne.s32.totalorder %s140, %s141
    %p152 = scmp.eq.s32.totalorder %s17, 0
    %p153 = por %p151, %p152
    %p154 = scmp.ne.s32.totalorder %s140, %s141
    %p155 = scmp.eq.s32.totalorder %s18, 1
    %p156 = por %p154, %p155
    %p158 = scmp.ne.s32.totalorder %s141, %s157
    %p159 = scmp.eq.s32.totalorder %s18, 0
    %p160 = por %p158, %p159
    %p161 = scmp.le.s32.totalorder 1, %s12
    %p162 = scmp.lt.s32.totalorder %s12, 3
    %p163 = pnand %p161, %p162
    %p164 = pneg %p163
    // Predicated region
    $region9: #{residual_block_pallas.4} parent=5 // pred_check
      _
    $region10: #{residual_block_pallas.4} parent=5 // pred_check_branch
      %166 = sbr.rel (%p163) target = $region12
    $region11: #{residual_block_pallas.4} parent=5 // pred_region
      %s167 = ssub.s32 %s12, 1
      // Predicated region
      $region13: #{residual_block_pallas.4} parent=11 // pred_check
        %p168 = pneg %p59
      $region14: #{residual_block_pallas.4} parent=11 // pred_check_branch
        %170 = sbr.rel (%p168) target = $region16
      $region15: #{residual_block_pallas.4} parent=11 // pred_region
        _
      $region16: #{residual_block_pallas.4} parent=11 // pred_fallthru
        _
      // Predicated region
      $region17: #{residual_block_pallas.4} parent=11 // pred_check
        %p171 = pneg %p80
      $region18: #{residual_block_pallas.4} parent=11 // pred_check_branch
        %173 = sbr.rel (%p171) target = $region20
      $region19: #{residual_block_pallas.4} parent=11 // pred_region
        _
      $region20: #{residual_block_pallas.4} parent=11 // pred_fallthru
        _
      // Predicated region
      $region21: #{residual_block_pallas.4} parent=11 // pred_check
        %p174 = pneg %p101
      $region22: #{residual_block_pallas.4} parent=11 // pred_check_branch
        %176 = sbr.rel (%p174) target = $region24
      $region23: #{residual_block_pallas.4} parent=11 // pred_region
        _
      $region24: #{residual_block_pallas.4} parent=11 // pred_fallthru
        _
    $region12: #{residual_block_pallas.4} parent=5 // pred_fallthru
      _
    %p177 = scmp.lt.s32.totalorder %s12, 2
    // Predicated region
    $region25: #{residual_block_pallas.4} parent=5 // pred_check
      %p178 = pneg %p177
    $region26: #{residual_block_pallas.4} parent=5 // pred_check_branch
      %180 = sbr.rel (%p178) target = $region28
    $region27: #{residual_block_pallas.4} parent=5 // pred_region
      // Predicated region
      $region29: #{residual_block_pallas.4} parent=27 // pred_check
        %p181 = pneg %p32
      $region30: #{residual_block_pallas.4} parent=27 // pred_check_branch
        %183 = sbr.rel (%p181) target = $region32
      $region31: #{residual_block_pallas.4} parent=27 // pred_region
        %p184 = scmp.lt.s32.totalorder %s12, 1
        %s185 = scalar_select %p184, %s12, 1
        %s186 = smul.addr %s185, 8
        %s187 = smul.addr %s186, 8
        %s188 = scalar_lea.vmem %s0, %s187
      $region32: #{residual_block_pallas.4} parent=27 // pred_fallthru
        _
    $region28: #{residual_block_pallas.4} parent=5 // pred_fallthru
      _
    %p189 = scmp.le.s32.totalorder 1, %s12
    %p190 = scmp.lt.s32.totalorder %s12, 3
    %p191 = pnand %p189, %p190
    %p192 = pneg %p191
    // Predicated region
    $region33: #{residual_block_pallas.4} parent=5 // pred_check
      _
    $region34: #{residual_block_pallas.4} parent=5 // pred_check_branch
      %194 = sbr.rel (%p191) target = $region36
    $region35: #{residual_block_pallas.4} parent=5 // pred_region
      %s195 = ssub.s32 %s12, 1
      %p196 = scmp.lt.s32.totalorder %s17, 1
      %s197 = scalar_select %p196, %s17, 1
      %s198 = smul.addr %s197, 8
      %s199 = smul.addr %s198, 8
      %s200 = scalar_lea.vmem %s0, %s199
      %p201 = pneg %p38
      %p202 = pneg %p35
      %p203 = pneg %p59
      %p204 = pneg %p56
      %p205 = pneg %p80
      %p206 = pneg %p77
      %p207 = pneg %p101
      %p208 = pneg %p98
      %p209 = pneg %p127
      %p210 = pneg %p124
      %p211 = scmp.lt.s32.totalorder %s17, 1
      %s212 = scalar_select %p211, %s17, 1
      %s213 = smul.addr %s212, 8
      %s214 = smul.addr %s213, 8
      %s215 = scalar_lea.vmem %s4, %s214
      %p216 = pneg %p153
      %p217 = pneg %p150
      %p218 = scmp.lt.s32.totalorder %s17, 1
      %s219 = scalar_select %p218, %s17, 1
      %s220 = smul.addr %s219, 2
      %s221 = scalar_lea.vmem %s5, %s220
      %p222 = scmp.lt.s32.totalorder %s17, 1
      %s223 = scalar_select %p222, %s17, 1
      %s224 = smul.addr %s223, 8
      %s225 = smul.addr %s224, 8
      %s226 = scalar_lea.vmem %s0, %s225
      %p227 = scmp.lt.s32.totalorder %s17, 1
      %s228 = scalar_select %p227, %s17, 1
      %s229 = smul.addr %s228, 8
      %s230 = smul.addr %s229, 8
      %s231 = scalar_lea.vmem %s4, %s230
      %p232 = scmp.lt.s32.totalorder %s17, 1
      %s233 = scalar_select %p232, %s17, 1
      %s234 = smul.addr %s233, 2
      %s235 = scalar_lea.vmem %s5, %s234
      %v237 = vld [vmem:[%s226] sm:$0xff]
      %v238 = vld [vmem:[%s226 + $0x8] sm:$0xff]
      %v239 = vld [vmem:[%s226 + $0x10] sm:$0xff]
      %v240 = vld [vmem:[%s226 + $0x18] sm:$0xff]
      %v241 = vld [vmem:[%s226 + $0x20] sm:$0xff]
      %v242 = vld [vmem:[%s226 + $0x28] sm:$0xff]
      %v243 = vld [vmem:[%s226 + $0x30] sm:$0xff]
      %v244 = vld [vmem:[%s226 + $0x38] sm:$0xff]
      %v245 = vld [vmem:[%s1] sm:$0x1]
      %v247 = vlaneseq
      %v248 = vshrl.u32 %v247, 7
      %v249 = vsub.s32 0, %v248
      %v250 = vrot.slane %v245, %v249
      %v252 = vmul.f32 %v237, %v250
      %v253 = vmul.f32 %v238, %v250
      %v254 = vmul.f32 %v239, %v250
      %v255 = vmul.f32 %v240, %v250
      %v256 = vmul.f32 %v241, %v250
      %v257 = vmul.f32 %v242, %v250
      %v258 = vmul.f32 %v243, %v250
      %v259 = vmul.f32 %v244, %v250
      %v260 = vld [vmem:[%s2] sm:$0x1]
      %v262 = vlaneseq
      %v263 = vshrl.u32 %v262, 7
      %v264 = vsub.s32 0, %v263
      %v265 = vrot.slane %v260, %v264
      %v267 = vadd.f32 %v252, %v265
      %v268 = vadd.f32 %v253, %v265
      %v269 = vadd.f32 %v254, %v265
      %v270 = vadd.f32 %v255, %v265
      %v271 = vadd.f32 %v256, %v265
      %v272 = vadd.f32 %v257, %v265
      %v273 = vadd.f32 %v258, %v265
      %v274 = vadd.f32 %v259, %v265
      %v275 = vmax.f32 %v267, 0.0
      %v276 = vmax.f32 %v268, 0.0
      %v277 = vmax.f32 %v269, 0.0
      %v278 = vmax.f32 %v270, 0.0
      %v279 = vmax.f32 %v271, 0.0
      %v280 = vmax.f32 %v272, 0.0
      %v281 = vmax.f32 %v273, 0.0
      %v282 = vmax.f32 %v274, 0.0
      %283 = vst [vmem:[#allocation2] sm:$0xf] 0
      %284 = vst [vmem:[#allocation2 + $0x4] sm:$0x1] 0
      %s285 = scalar_lea.vmem [#allocation2], 72
      %286 = vst [vmem:[%s285] sm:$0xf] 0
      %287 = vst [vmem:[%s285 + $0x4] sm:$0x1] 0
      %s288 = scalar_lea.vmem [#allocation2], 8
      %vm289 = vcmask 1040384
      %vm290 = vsmask.f32 256
      %vm291 = vmand %vm289, %vm290
      %v292 = vld [vmem:[%s288] sm:$0x1]
      %v293 = vsel %vm291, 0, %v292
      %294 = vst [vmem:[%s288] sm:$0x1] %v293
      %v295 = vld [vmem:[%s288 + $0x8] sm:$0x1]
      %v296 = vsel %vm291, 0, %v295
      %297 = vst [vmem:[%s288 + $0x8] sm:$0x1] %v296
      %v298 = vld [vmem:[%s288 + $0x10] sm:$0x1]
      %v299 = vsel %vm291, 0, %v298
      %300 = vst [vmem:[%s288 + $0x10] sm:$0x1] %v299
      %v301 = vld [vmem:[%s288 + $0x18] sm:$0x1]
      %v302 = vsel %vm291, 0, %v301
      %303 = vst [vmem:[%s288 + $0x18] sm:$0x1] %v302
      %v304 = vld [vmem:[%s288 + $0x20] sm:$0x1]
      %v305 = vsel %vm291, 0, %v304
      %306 = vst [vmem:[%s288 + $0x20] sm:$0x1] %v305
      %v307 = vld [vmem:[%s288 + $0x28] sm:$0x1]
      %v308 = vsel %vm291, 0, %v307
      %309 = vst [vmem:[%s288 + $0x28] sm:$0x1] %v308
      %v310 = vld [vmem:[%s288 + $0x30] sm:$0x1]
      %v311 = vsel %vm291, 0, %v310
      %312 = vst [vmem:[%s288 + $0x30] sm:$0x1] %v311
      %v313 = vld [vmem:[%s288 + $0x38] sm:$0x1]
      %v314 = vsel %vm291, 0, %v313
      %315 = vst [vmem:[%s288 + $0x38] sm:$0x1] %v314
      %vm316 = vsmask.f32 7938
      %vm317 = vmand %vm289, %vm316
      %v318 = vld [vmem:[%s288 + $0x4] sm:$0x1]
      %v319 = vsel %vm317, 0, %v318
      %320 = vst [vmem:[%s288 + $0x4] sm:$0x1] %v319
      %v321 = vld [vmem:[%s288 + $0xc] sm:$0x1]
      %v322 = vsel %vm317, 0, %v321
      %323 = vst [vmem:[%s288 + $0xc] sm:$0x1] %v322
      %v324 = vld [vmem:[%s288 + $0x14] sm:$0x1]
      %v325 = vsel %vm317, 0, %v324
      %326 = vst [vmem:[%s288 + $0x14] sm:$0x1] %v325
      %v327 = vld [vmem:[%s288 + $0x1c] sm:$0x1]
      %v328 = vsel %vm317, 0, %v327
      %329 = vst [vmem:[%s288 + $0x1c] sm:$0x1] %v328
      %v330 = vld [vmem:[%s288 + $0x24] sm:$0x1]
      %v331 = vsel %vm317, 0, %v330
      %332 = vst [vmem:[%s288 + $0x24] sm:$0x1] %v331
      %v333 = vld [vmem:[%s288 + $0x2c] sm:$0x1]
      %v334 = vsel %vm317, 0, %v333
      %335 = vst [vmem:[%s288 + $0x2c] sm:$0x1] %v334
      %v336 = vld [vmem:[%s288 + $0x34] sm:$0x1]
      %v337 = vsel %vm317, 0, %v336
      %338 = vst [vmem:[%s288 + $0x34] sm:$0x1] %v337
      %v339 = vld [vmem:[%s288 + $0x3c] sm:$0x1]
      %v340 = vsel %vm317, 0, %v339
      %341 = vst [vmem:[%s288 + $0x3c] sm:$0x1] %v340
      %v342 = vpack.c.bf16 %v275, %v275
      %v343 = vpack.c.bf16 %v276, %v276
      %v344 = vpack.c.bf16 %v277, %v277
      %v345 = vpack.c.bf16 %v278, %v278
      %v346 = vpack.c.bf16 %v279, %v279
      %v347 = vpack.c.bf16 %v280, %v280
      %v348 = vpack.c.bf16 %v281, %v281
      %v349 = vpack.c.bf16 %v282, %v282
      %v358 = vunpack.c.l.b16 %v342
      %v359 = vunpack.c.l.b16 %v343
      %v360 = vunpack.c.l.b16 %v344
      %v361 = vunpack.c.l.b16 %v345
      %v362 = vunpack.c.l.b16 %v346
      %v363 = vunpack.c.l.b16 %v347
      %v364 = vunpack.c.l.b16 %v348
      %v365 = vunpack.c.l.b16 %v349
      %v366 = vpack.c.b16 %v358, %v358
      %v367 = vpack.c.b16 %v359, %v359
      %v368 = vpack.c.b16 %v360, %v360
      %v369 = vpack.c.b16 %v361, %v361
      %v370 = vpack.c.b16 %v362, %v362
      %v371 = vpack.c.b16 %v363, %v363
      %v372 = vpack.c.b16 %v364, %v364
      %v373 = vpack.c.b16 %v365, %v365
      %v375 = vshrl.u32 %v366, 16
      %v377 = vrot.slane %v375, 7
      %v378 = vshll.u32 %v366, 16
      %v380 = vor.u32 %v377, %v378
      %v381 = vrot.slane %v377, 4
      %v383 = vshrl.u32 %v367, 16
      %v385 = vrot.slane %v383, 7
      %v386 = vshll.u32 %v367, 16
      %v388 = vor.u32 %v385, %v386
      %v389 = vrot.slane %v385, 4
      %v391 = vshrl.u32 %v368, 16
      %v393 = vrot.slane %v391, 7
      %v394 = vshll.u32 %v368, 16
      %v396 = vor.u32 %v393, %v394
      %v397 = vrot.slane %v393, 4
      %v399 = vshrl.u32 %v369, 16
      %v401 = vrot.slane %v399, 7
      %v402 = vshll.u32 %v369, 16
      %v404 = vor.u32 %v401, %v402
      %v405 = vrot.slane %v401, 4
      %v407 = vshrl.u32 %v370, 16
      %v409 = vrot.slane %v407, 7
      %v410 = vshll.u32 %v370, 16
      %v412 = vor.u32 %v409, %v410
      %v413 = vrot.slane %v409, 4
      %v415 = vshrl.u32 %v371, 16
      %v417 = vrot.slane %v415, 7
      %v418 = vshll.u32 %v371, 16
      %v420 = vor.u32 %v417, %v418
      %v421 = vrot.slane %v417, 4
      %v423 = vshrl.u32 %v372, 16
      %v425 = vrot.slane %v423, 7
      %v426 = vshll.u32 %v372, 16
      %v428 = vor.u32 %v425, %v426
      %v429 = vrot.slane %v425, 4
      %v431 = vshrl.u32 %v373, 16
      %v433 = vrot.slane %v431, 7
      %v434 = vshll.u32 %v373, 16
      %v436 = vor.u32 %v433, %v434
      %v437 = vrot.slane %v433, 4
      %vm454 = vcmask 1043456
      %vm455 = vmand %vm454, %vm316
      %v456 = vld [vmem:[%s288] sm:$0xf]
      %v457 = vsel %vm455, %v380, %v456
      %458 = vst [vmem:[%s288] sm:$0xf] %v457
      %v459 = vld [vmem:[%s288 + $0x4] sm:$0x1]
      %v460 = vsel %vm291, %v381, %v459
      %461 = vst [vmem:[%s288 + $0x4] sm:$0x1] %v460
      %v462 = vld [vmem:[%s288 + $0x8] sm:$0xf]
      %v463 = vsel %vm455, %v388, %v462
      %464 = vst [vmem:[%s288 + $0x8] sm:$0xf] %v463
      %v465 = vld [vmem:[%s288 + $0xc] sm:$0x1]
      %v466 = vsel %vm291, %v389, %v465
      %467 = vst [vmem:[%s288 + $0xc] sm:$0x1] %v466
      %v468 = vld [vmem:[%s288 + $0x10] sm:$0xf]
      %v469 = vsel %vm455, %v396, %v468
      %470 = vst [vmem:[%s288 + $0x10] sm:$0xf] %v469
      %v471 = vld [vmem:[%s288 + $0x14] sm:$0x1]
      %v472 = vsel %vm291, %v397, %v471
      %473 = vst [vmem:[%s288 + $0x14] sm:$0x1] %v472
      %v474 = vld [vmem:[%s288 + $0x18] sm:$0xf]
      %v475 = vsel %vm455, %v404, %v474
      %476 = vst [vmem:[%s288 + $0x18] sm:$0xf] %v475
      %v477 = vld [vmem:[%s288 + $0x1c] sm:$0x1]
      %v478 = vsel %vm291, %v405, %v477
      %479 = vst [vmem:[%s288 + $0x1c] sm:$0x1] %v478
      %v480 = vld [vmem:[%s288 + $0x20] sm:$0xf]
      %v481 = vsel %vm455, %v412, %v480
      %482 = vst [vmem:[%s288 + $0x20] sm:$0xf] %v481
      %v483 = vld [vmem:[%s288 + $0x24] sm:$0x1]
      %v484 = vsel %vm291, %v413, %v483
      %485 = vst [vmem:[%s288 + $0x24] sm:$0x1] %v484
      %v486 = vld [vmem:[%s288 + $0x28] sm:$0xf]
      %v487 = vsel %vm455, %v420, %v486
      %488 = vst [vmem:[%s288 + $0x28] sm:$0xf] %v487
      %v489 = vld [vmem:[%s288 + $0x2c] sm:$0x1]
      %v490 = vsel %vm291, %v421, %v489
      %491 = vst [vmem:[%s288 + $0x2c] sm:$0x1] %v490
      %v492 = vld [vmem:[%s288 + $0x30] sm:$0xf]
      %v493 = vsel %vm455, %v428, %v492
      %494 = vst [vmem:[%s288 + $0x30] sm:$0xf] %v493
      %v495 = vld [vmem:[%s288 + $0x34] sm:$0x1]
      %v496 = vsel %vm291, %v429, %v495
      %497 = vst [vmem:[%s288 + $0x34] sm:$0x1] %v496
      %v498 = vld [vmem:[%s288 + $0x38] sm:$0xf]
      %v499 = vsel %vm455, %v436, %v498
      %500 = vst [vmem:[%s288 + $0x38] sm:$0xf] %v499
      %v501 = vld [vmem:[%s288 + $0x3c] sm:$0x1]
      %v502 = vsel %vm291, %v437, %v501
      %503 = vst [vmem:[%s288 + $0x3c] sm:$0x1] %v502
      %v504 = vld [vmem:[#allocation2] sm:$0xf]
      %v505 = vld [vmem:[#allocation2 + $0x8] sm:$0xf]
      %v506 = vld [vmem:[#allocation2 + $0x10] sm:$0xf]
      %v507 = vld [vmem:[#allocation2 + $0x18] sm:$0xf]
      %v508 = vld [vmem:[#allocation2 + $0x20] sm:$0xf]
      %v509 = vld [vmem:[#allocation2 + $0x28] sm:$0xf]
      %v510 = vld [vmem:[#allocation2 + $0x30] sm:$0xf]
      %v511 = vld [vmem:[#allocation2 + $0x38] sm:$0xf]
      %v520 = vunpack.c.l.b16 %v504
      %v521 = vunpack.c.l.b16 %v505
      %v522 = vunpack.c.l.b16 %v506
      %v523 = vunpack.c.l.b16 %v507
      %v524 = vunpack.c.l.b16 %v508
      %v525 = vunpack.c.l.b16 %v509
      %v526 = vunpack.c.l.b16 %v510
      %v527 = vunpack.c.l.b16 %v511
      %v528 = vpack.c.b16 %v521, %v520
      %v529 = vpack.c.b16 %v523, %v522
      %v530 = vpack.c.b16 %v525, %v524
      %v531 = vpack.c.b16 %v527, %v526
      %536 = vst [vmem:[#allocation3] sm:$0xff] %v528
      %537 = vst [vmem:[#allocation3 + $0x48] sm:$0xff] %v529
      %538 = vst [vmem:[#allocation3 + $0x90] sm:$0xff] %v530
      %539 = vst [vmem:[#allocation3 + $0xd8] sm:$0xff] %v531
      %v540 = vld [vmem:[#allocation2] sm:$0xf]
      %v541 = vld [vmem:[#allocation2 + $0x4] sm:$0x1]
      %v542 = vld [vmem:[#allocation2 + $0x8] sm:$0xf]
      %v543 = vld [vmem:[#allocation2 + $0xc] sm:$0x1]
      %v544 = vld [vmem:[#allocation2 + $0x10] sm:$0xf]
      %v545 = vld [vmem:[#allocation2 + $0x14] sm:$0x1]
      %v546 = vld [vmem:[#allocation2 + $0x18] sm:$0xf]
      %v547 = vld [vmem:[#allocation2 + $0x1c] sm:$0x1]
      %v548 = vld [vmem:[#allocation2 + $0x20] sm:$0xf]
      %v549 = vld [vmem:[#allocation2 + $0x24] sm:$0x1]
      %v550 = vld [vmem:[#allocation2 + $0x28] sm:$0xf]
      %v551 = vld [vmem:[#allocation2 + $0x2c] sm:$0x1]
      %v552 = vld [vmem:[#allocation2 + $0x30] sm:$0xf]
      %v553 = vld [vmem:[#allocation2 + $0x34] sm:$0x1]
      %v554 = vld [vmem:[#allocation2 + $0x38] sm:$0xf]
      %v555 = vld [vmem:[#allocation2 + $0x3c] sm:$0x1]
      %vm556 = vsmask.f32 3328
      %vm557 = vsmask.f32 7440
      %vm558 = vmor %vm556, %vm557
      %v560 = vshrl.u32 %v540, 16
      %v562 = vrot.slane %v560, 4
      %v563 = vshll.u32 %v540, 16
      %v565 = vrot.slane %v563, 5
      %v566 = vor.u32 %v562, %v565
      %v567 = vrot.slane %v566, 4
      %v569 = vshll.u32 %v541, 16
      %v571 = vrot.slane %v569, 5
      %v572 = vsel %vm558, %v567, %v571
      %v574 = vshrl.u32 %v542, 16
      %v576 = vrot.slane %v574, 4
      %v577 = vshll.u32 %v542, 16
      %v579 = vrot.slane %v577, 5
      %v580 = vor.u32 %v576, %v579
      %v581 = vrot.slane %v580, 4
      %v583 = vshll.u32 %v543, 16
      %v585 = vrot.slane %v583, 5
      %v586 = vsel %vm558, %v581, %v585
      %v588 = vshrl.u32 %v544, 16
      %v590 = vrot.slane %v588, 4
      %v591 = vshll.u32 %v544, 16
      %v593 = vrot.slane %v591, 5
      %v594 = vor.u32 %v590, %v593
      %v595 = vrot.slane %v594, 4
      %v597 = vshll.u32 %v545, 16
      %v599 = vrot.slane %v597, 5
      %v600 = vsel %vm558, %v595, %v599
      %v602 = vshrl.u32 %v546, 16
      %v604 = vrot.slane %v602, 4
      %v605 = vshll.u32 %v546, 16
      %v607 = vrot.slane %v605, 5
      %v608 = vor.u32 %v604, %v607
      %v609 = vrot.slane %v608, 4
      %v611 = vshll.u32 %v547, 16
      %v613 = vrot.slane %v611, 5
      %v614 = vsel %vm558, %v609, %v613
      %v616 = vshrl.u32 %v548, 16
      %v618 = vrot.slane %v616, 4
      %v619 = vshll.u32 %v548, 16
      %v621 = vrot.slane %v619, 5
      %v622 = vor.u32 %v618, %v621
      %v623 = vrot.slane %v622, 4
      %v625 = vshll.u32 %v549, 16
      %v627 = vrot.slane %v625, 5
      %v628 = vsel %vm558, %v623, %v627
      %v630 = vshrl.u32 %v550, 16
      %v632 = vrot.slane %v630, 4
      %v633 = vshll.u32 %v550, 16
      %v635 = vrot.slane %v633, 5
      %v636 = vor.u32 %v632, %v635
      %v637 = vrot.slane %v636, 4
      %v639 = vshll.u32 %v551, 16
      %v641 = vrot.slane %v639, 5
      %v642 = vsel %vm558, %v637, %v641
      %v644 = vshrl.u32 %v552, 16
      %v646 = vrot.slane %v644, 4
      %v647 = vshll.u32 %v552, 16
      %v649 = vrot.slane %v647, 5
      %v650 = vor.u32 %v646, %v649
      %v651 = vrot.slane %v650, 4
      %v653 = vshll.u32 %v553, 16
      %v655 = vrot.slane %v653, 5
      %v656 = vsel %vm558, %v651, %v655
      %v658 = vshrl.u32 %v554, 16
      %v660 = vrot.slane %v658, 4
      %v661 = vshll.u32 %v554, 16
      %v663 = vrot.slane %v661, 5
      %v664 = vor.u32 %v660, %v663
      %v665 = vrot.slane %v664, 4
      %v667 = vshll.u32 %v555, 16
      %v669 = vrot.slane %v667, 5
      %v670 = vsel %vm558, %v665, %v669
      %v671 = vunpack.c.l.b16 %v572
      %v672 = vunpack.c.l.b16 %v586
      %v673 = vunpack.c.l.b16 %v600
      %v674 = vunpack.c.l.b16 %v614
      %v675 = vunpack.c.l.b16 %v628
      %v676 = vunpack.c.l.b16 %v642
      %v677 = vunpack.c.l.b16 %v656
      %v678 = vunpack.c.l.b16 %v670
      %v679 = vpack.c.b16 %v672, %v671
      %v680 = vpack.c.b16 %v674, %v673
      %v681 = vpack.c.b16 %v676, %v675
      %v682 = vpack.c.b16 %v678, %v677
      %687 = vst [vmem:[#allocation3 + $0x8] sm:$0xff] %v679
      %688 = vst [vmem:[#allocation3 + $0x50] sm:$0xff] %v680
      %689 = vst [vmem:[#allocation3 + $0x98] sm:$0xff] %v681
      %690 = vst [vmem:[#allocation3 + $0xe0] sm:$0xff] %v682
      %v691 = vld [vmem:[#allocation2] sm:$0xe]
      %v692 = vld [vmem:[#allocation2 + $0x4] sm:$0x1]
      %v693 = vld [vmem:[#allocation2 + $0x8] sm:$0xe]
      %v694 = vld [vmem:[#allocation2 + $0xc] sm:$0x1]
      %v695 = vld [vmem:[#allocation2 + $0x10] sm:$0xe]
      %v696 = vld [vmem:[#allocation2 + $0x14] sm:$0x1]
      %v697 = vld [vmem:[#allocation2 + $0x18] sm:$0xe]
      %v698 = vld [vmem:[#allocation2 + $0x1c] sm:$0x1]
      %v699 = vld [vmem:[#allocation2 + $0x20] sm:$0xe]
      %v700 = vld [vmem:[#allocation2 + $0x24] sm:$0x1]
      %v701 = vld [vmem:[#allocation2 + $0x28] sm:$0xe]
      %v702 = vld [vmem:[#allocation2 + $0x2c] sm:$0x1]
      %v703 = vld [vmem:[#allocation2 + $0x30] sm:$0xe]
      %v704 = vld [vmem:[#allocation2 + $0x34] sm:$0x1]
      %v705 = vld [vmem:[#allocation2 + $0x38] sm:$0xe]
      %v706 = vld [vmem:[#allocation2 + $0x3c] sm:$0x1]
      %vm723 = vcmask 1042432
      %vm724 = vcmask 1046532
      %vm725 = vmor %vm723, %vm724
      %v726 = vrot.slane %v691, 5
      %v727 = vrot.slane %v726, 4
      %v728 = vrot.slane %v692, 5
      %v729 = vsel %vm725, %v727, %v728
      %v730 = vrot.slane %v693, 5
      %v731 = vrot.slane %v730, 4
      %v732 = vrot.slane %v694, 5
      %v733 = vsel %vm725, %v731, %v732
      %v734 = vrot.slane %v695, 5
      %v735 = vrot.slane %v734, 4
      %v736 = vrot.slane %v696, 5
      %v737 = vsel %vm725, %v735, %v736
      %v738 = vrot.slane %v697, 5
      %v739 = vrot.slane %v738, 4
      %v740 = vrot.slane %v698, 5
      %v741 = vsel %vm725, %v739, %v740
      %v742 = vrot.slane %v699, 5
      %v743 = vrot.slane %v742, 4
      %v744 = vrot.slane %v700, 5
      %v745 = vsel %vm725, %v743, %v744
      %v746 = vrot.slane %v701, 5
      %v747 = vrot.slane %v746, 4
      %v748 = vrot.slane %v702, 5
      %v749 = vsel %vm725, %v747, %v748
      %v750 = vrot.slane %v703, 5
      %v751 = vrot.slane %v750, 4
      %v752 = vrot.slane %v704, 5
      %v753 = vsel %vm725, %v751, %v752
      %v754 = vrot.slane %v705, 5
      %v755 = vrot.slane %v754, 4
      %v756 = vrot.slane %v706, 5
      %v757 = vsel %vm725, %v755, %v756
      %v758 = vunpack.c.l.b16 %v729
      %v759 = vunpack.c.l.b16 %v733
      %v760 = vunpack.c.l.b16 %v737
      %v761 = vunpack.c.l.b16 %v741
      %v762 = vunpack.c.l.b16 %v745
      %v763 = vunpack.c.l.b16 %v749
      %v764 = vunpack.c.l.b16 %v753
      %v765 = vunpack.c.l.b16 %v757
      %v766 = vpack.c.b16 %v759, %v758
      %v767 = vpack.c.b16 %v761, %v760
      %v768 = vpack.c.b16 %v763, %v762
      %v769 = vpack.c.b16 %v765, %v764
      %774 = vst [vmem:[#allocation3 + $0x10] sm:$0xff] %v766
      %775 = vst [vmem:[#allocation3 + $0x58] sm:$0xff] %v767
      %776 = vst [vmem:[#allocation3 + $0xa0] sm:$0xff] %v768
      %777 = vst [vmem:[#allocation3 + $0xe8] sm:$0xff] %v769
      %v778 = vld [vmem:[%s288] sm:$0xf]
      %v779 = vld [vmem:[%s288 + $0x8] sm:$0xf]
      %v780 = vld [vmem:[%s288 + $0x10] sm:$0xf]
      %v781 = vld [vmem:[%s288 + $0x18] sm:$0xf]
      %v782 = vld [vmem:[%s288 + $0x20] sm:$0xf]
      %v783 = vld [vmem:[%s288 + $0x28] sm:$0xf]
      %v784 = vld [vmem:[%s288 + $0x30] sm:$0xf]
      %v785 = vld [vmem:[%s288 + $0x38] sm:$0xf]
      %v794 = vunpack.c.l.b16 %v778
      %v795 = vunpack.c.l.b16 %v779
      %v796 = vunpack.c.l.b16 %v780
      %v797 = vunpack.c.l.b16 %v781
      %v798 = vunpack.c.l.b16 %v782
      %v799 = vunpack.c.l.b16 %v783
      %v800 = vunpack.c.l.b16 %v784
      %v801 = vunpack.c.l.b16 %v785
      %v802 = vpack.c.b16 %v795, %v794
      %v803 = vpack.c.b16 %v797, %v796
      %v804 = vpack.c.b16 %v799, %v798
      %v805 = vpack.c.b16 %v801, %v800
      %810 = vst [vmem:[#allocation3 + $0x18] sm:$0xff] %v802
      %811 = vst [vmem:[#allocation3 + $0x60] sm:$0xff] %v803
      %812 = vst [vmem:[#allocation3 + $0xa8] sm:$0xff] %v804
      %813 = vst [vmem:[#allocation3 + $0xf0] sm:$0xff] %v805
      %v814 = vld [vmem:[%s288] sm:$0xf]
      %v815 = vld [vmem:[%s288 + $0x4] sm:$0x1]
      %v816 = vld [vmem:[%s288 + $0x8] sm:$0xf]
      %v817 = vld [vmem:[%s288 + $0xc] sm:$0x1]
      %v818 = vld [vmem:[%s288 + $0x10] sm:$0xf]
      %v819 = vld [vmem:[%s288 + $0x14] sm:$0x1]
      %v820 = vld [vmem:[%s288 + $0x18] sm:$0xf]
      %v821 = vld [vmem:[%s288 + $0x1c] sm:$0x1]
      %v822 = vld [vmem:[%s288 + $0x20] sm:$0xf]
      %v823 = vld [vmem:[%s288 + $0x24] sm:$0x1]
      %v824 = vld [vmem:[%s288 + $0x28] sm:$0xf]
      %v825 = vld [vmem:[%s288 + $0x2c] sm:$0x1]
      %v826 = vld [vmem:[%s288 + $0x30] sm:$0xf]
      %v827 = vld [vmem:[%s288 + $0x34] sm:$0x1]
      %v828 = vld [vmem:[%s288 + $0x38] sm:$0xf]
      %v829 = vld [vmem:[%s288 + $0x3c] sm:$0x1]
      %v831 = vshrl.u32 %v814, 16
      %v833 = vrot.slane %v831, 4
      %v834 = vshll.u32 %v814, 16
      %v836 = vrot.slane %v834, 5
      %v837 = vor.u32 %v833, %v836
      %v838 = vrot.slane %v837, 4
      %v840 = vshll.u32 %v815, 16
      %v842 = vrot.slane %v840, 5
      %v843 = vsel %vm558, %v838, %v842
      %v845 = vshrl.u32 %v816, 16
      %v847 = vrot.slane %v845, 4
      %v848 = vshll.u32 %v816, 16
      %v850 = vrot.slane %v848, 5
      %v851 = vor.u32 %v847, %v850
      %v852 = vrot.slane %v851, 4
      %v854 = vshll.u32 %v817, 16
      %v856 = vrot.slane %v854, 5
      %v857 = vsel %vm558, %v852, %v856
      %v859 = vshrl.u32 %v818, 16
      %v861 = vrot.slane %v859, 4
      %v862 = vshll.u32 %v818, 16
      %v864 = vrot.slane %v862, 5
      %v865 = vor.u32 %v861, %v864
      %v866 = vrot.slane %v865, 4
      %v868 = vshll.u32 %v819, 16
      %v870 = vrot.slane %v868, 5
      %v871 = vsel %vm558, %v866, %v870
      %v873 = vshrl.u32 %v820, 16
      %v875 = vrot.slane %v873, 4
      %v876 = vshll.u32 %v820, 16
      %v878 = vrot.slane %v876, 5
      %v879 = vor.u32 %v875, %v878
      %v880 = vrot.slane %v879, 4
      %v882 = vshll.u32 %v821, 16
      %v884 = vrot.slane %v882, 5
      %v885 = vsel %vm558, %v880, %v884
      %v887 = vshrl.u32 %v822, 16
      %v889 = vrot.slane %v887, 4
      %v890 = vshll.u32 %v822, 16
      %v892 = vrot.slane %v890, 5
      %v893 = vor.u32 %v889, %v892
      %v894 = vrot.slane %v893, 4
      %v896 = vshll.u32 %v823, 16
      %v898 = vrot.slane %v896, 5
      %v899 = vsel %vm558, %v894, %v898
      %v901 = vshrl.u32 %v824, 16
      %v903 = vrot.slane %v901, 4
      %v904 = vshll.u32 %v824, 16
      %v906 = vrot.slane %v904, 5
      %v907 = vor.u32 %v903, %v906
      %v908 = vrot.slane %v907, 4
      %v910 = vshll.u32 %v825, 16
      %v912 = vrot.slane %v910, 5
      %v913 = vsel %vm558, %v908, %v912
      %v915 = vshrl.u32 %v826, 16
      %v917 = vrot.slane %v915, 4
      %v918 = vshll.u32 %v826, 16
      %v920 = vrot.slane %v918, 5
      %v921 = vor.u32 %v917, %v920
      %v922 = vrot.slane %v921, 4
      %v924 = vshll.u32 %v827, 16
      %v926 = vrot.slane %v924, 5
      %v927 = vsel %vm558, %v922, %v926
      %v929 = vshrl.u32 %v828, 16
      %v931 = vrot.slane %v929, 4
      %v932 = vshll.u32 %v828, 16
      %v934 = vrot.slane %v932, 5
      %v935 = vor.u32 %v931, %v934
      %v936 = vrot.slane %v935, 4
      %v938 = vshll.u32 %v829, 16
      %v940 = vrot.slane %v938, 5
      %v941 = vsel %vm558, %v936, %v940
      %v942 = vunpack.c.l.b16 %v843
      %v943 = vunpack.c.l.b16 %v857
      %v944 = vunpack.c.l.b16 %v871
      %v945 = vunpack.c.l.b16 %v885
      %v946 = vunpack.c.l.b16 %v899
      %v947 = vunpack.c.l.b16 %v913
      %v948 = vunpack.c.l.b16 %v927
      %v949 = vunpack.c.l.b16 %v941
      %v950 = vpack.c.b16 %v943, %v942
      %v951 = vpack.c.b16 %v945, %v944
      %v952 = vpack.c.b16 %v947, %v946
      %v953 = vpack.c.b16 %v949, %v948
      %958 = vst [vmem:[#allocation3 + $0x20] sm:$0xff] %v950
      %959 = vst [vmem:[#allocation3 + $0x68] sm:$0xff] %v951
      %960 = vst [vmem:[#allocation3 + $0xb0] sm:$0xff] %v952
      %961 = vst [vmem:[#allocation3 + $0xf8] sm:$0xff] %v953
      %v962 = vld [vmem:[%s288] sm:$0xe]
      %v963 = vld [vmem:[%s288 + $0x4] sm:$0x1]
      %v964 = vld [vmem:[%s288 + $0x8] sm:$0xe]
      %v965 = vld [vmem:[%s288 + $0xc] sm:$0x1]
      %v966 = vld [vmem:[%s288 + $0x10] sm:$0xe]
      %v967 = vld [vmem:[%s288 + $0x14] sm:$0x1]
      %v968 = vld [vmem:[%s288 + $0x18] sm:$0xe]
      %v969 = vld [vmem:[%s288 + $0x1c] sm:$0x1]
      %v970 = vld [vmem:[%s288 + $0x20] sm:$0xe]
      %v971 = vld [vmem:[%s288 + $0x24] sm:$0x1]
      %v972 = vld [vmem:[%s288 + $0x28] sm:$0xe]
      %v973 = vld [vmem:[%s288 + $0x2c] sm:$0x1]
      %v974 = vld [vmem:[%s288 + $0x30] sm:$0xe]
      %v975 = vld [vmem:[%s288 + $0x34] sm:$0x1]
      %v976 = vld [vmem:[%s288 + $0x38] sm:$0xe]
      %v977 = vld [vmem:[%s288 + $0x3c] sm:$0x1]
      %v994 = vrot.slane %v962, 5
      %v995 = vrot.slane %v994, 4
      %v996 = vrot.slane %v963, 5
      %v997 = vsel %vm725, %v995, %v996
      %v998 = vrot.slane %v964, 5
      %v999 = vrot.slane %v998, 4
      %v1000 = vrot.slane %v965, 5
      %v1001 = vsel %vm725, %v999, %v1000
      %v1002 = vrot.slane %v966, 5
      %v1003 = vrot.slane %v1002, 4
      %v1004 = vrot.slane %v967, 5
      %v1005 = vsel %vm725, %v1003, %v1004
      %v1006 = vrot.slane %v968, 5
      %v1007 = vrot.slane %v1006, 4
      %v1008 = vrot.slane %v969, 5
      %v1009 = vsel %vm725, %v1007, %v1008
      %v1010 = vrot.slane %v970, 5
      %v1011 = vrot.slane %v1010, 4
      %v1012 = vrot.slane %v971, 5
      %v1013 = vsel %vm725, %v1011, %v1012
      %v1014 = vrot.slane %v972, 5
      %v1015 = vrot.slane %v1014, 4
      %v1016 = vrot.slane %v973, 5
      %v1017 = vsel %vm725, %v1015, %v1016
      %v1018 = vrot.slane %v974, 5
      %v1019 = vrot.slane %v1018, 4
      %v1020 = vrot.slane %v975, 5
      %v1021 = vsel %vm725, %v1019, %v1020
      %v1022 = vrot.slane %v976, 5
      %v1023 = vrot.slane %v1022, 4
      %v1024 = vrot.slane %v977, 5
      %v1025 = vsel %vm725, %v1023, %v1024
      %v1026 = vunpack.c.l.b16 %v997
      %v1027 = vunpack.c.l.b16 %v1001
      %v1028 = vunpack.c.l.b16 %v1005
      %v1029 = vunpack.c.l.b16 %v1009
      %v1030 = vunpack.c.l.b16 %v1013
      %v1031 = vunpack.c.l.b16 %v1017
      %v1032 = vunpack.c.l.b16 %v1021
      %v1033 = vunpack.c.l.b16 %v1025
      %v1034 = vpack.c.b16 %v1027, %v1026
      %v1035 = vpack.c.b16 %v1029, %v1028
      %v1036 = vpack.c.b16 %v1031, %v1030
      %v1037 = vpack.c.b16 %v1033, %v1032
      %1042 = vst [vmem:[#allocation3 + $0x28] sm:$0xff] %v1034
      %1043 = vst [vmem:[#allocation3 + $0x70] sm:$0xff] %v1035
      %1044 = vst [vmem:[#allocation3 + $0xb8] sm:$0xff] %v1036
      %1045 = vst [vmem:[#allocation3 + $0x100] sm:$0xff] %v1037
      %s1046 = scalar_lea.vmem [#allocation2], 16
      %v1047 = vld [vmem:[%s1046] sm:$0xf]
      %v1048 = vld [vmem:[%s1046 + $0x8] sm:$0xf]
      %v1049 = vld [vmem:[%s1046 + $0x10] sm:$0xf]
      %v1050 = vld [vmem:[%s1046 + $0x18] sm:$0xf]
      %v1051 = vld [vmem:[%s1046 + $0x20] sm:$0xf]
      %v1052 = vld [vmem:[%s1046 + $0x28] sm:$0xf]
      %v1053 = vld [vmem:[%s1046 + $0x30] sm:$0xf]
      %v1054 = vld [vmem:[%s1046 + $0x38] sm:$0xf]
      %v1063 = vunpack.c.l.b16 %v1047
      %v1064 = vunpack.c.l.b16 %v1048
      %v1065 = vunpack.c.l.b16 %v1049
      %v1066 = vunpack.c.l.b16 %v1050
      %v1067 = vunpack.c.l.b16 %v1051
      %v1068 = vunpack.c.l.b16 %v1052
      %v1069 = vunpack.c.l.b16 %v1053
      %v1070 = vunpack.c.l.b16 %v1054
      %v1071 = vpack.c.b16 %v1064, %v1063
      %v1072 = vpack.c.b16 %v1066, %v1065
      %v1073 = vpack.c.b16 %v1068, %v1067
      %v1074 = vpack.c.b16 %v1070, %v1069
      %1079 = vst [vmem:[#allocation3 + $0x30] sm:$0xff] %v1071
      %1080 = vst [vmem:[#allocation3 + $0x78] sm:$0xff] %v1072
      %1081 = vst [vmem:[#allocation3 + $0xc0] sm:$0xff] %v1073
      %1082 = vst [vmem:[#allocation3 + $0x108] sm:$0xff] %v1074
      %v1083 = vld [vmem:[%s1046] sm:$0xf]
      %v1084 = vld [vmem:[%s1046 + $0x4] sm:$0x1]
      %v1085 = vld [vmem:[%s1046 + $0x8] sm:$0xf]
      %v1086 = vld [vmem:[%s1046 + $0xc] sm:$0x1]
      %v1087 = vld [vmem:[%s1046 + $0x10] sm:$0xf]
      %v1088 = vld [vmem:[%s1046 + $0x14] sm:$0x1]
      %v1089 = vld [vmem:[%s1046 + $0x18] sm:$0xf]
      %v1090 = vld [vmem:[%s1046 + $0x1c] sm:$0x1]
      %v1091 = vld [vmem:[%s1046 + $0x20] sm:$0xf]
      %v1092 = vld [vmem:[%s1046 + $0x24] sm:$0x1]
      %v1093 = vld [vmem:[%s1046 + $0x28] sm:$0xf]
      %v1094 = vld [vmem:[%s1046 + $0x2c] sm:$0x1]
      %v1095 = vld [vmem:[%s1046 + $0x30] sm:$0xf]
      %v1096 = vld [vmem:[%s1046 + $0x34] sm:$0x1]
      %v1097 = vld [vmem:[%s1046 + $0x38] sm:$0xf]
      %v1098 = vld [vmem:[%s1046 + $0x3c] sm:$0x1]
      %v1100 = vshrl.u32 %v1083, 16
      %v1102 = vrot.slane %v1100, 4
      %v1103 = vshll.u32 %v1083, 16
      %v1105 = vrot.slane %v1103, 5
      %v1106 = vor.u32 %v1102, %v1105
      %v1107 = vrot.slane %v1106, 4
      %v1109 = vshll.u32 %v1084, 16
      %v1111 = vrot.slane %v1109, 5
      %v1112 = vsel %vm558, %v1107, %v1111
      %v1114 = vshrl.u32 %v1085, 16
      %v1116 = vrot.slane %v1114, 4
      %v1117 = vshll.u32 %v1085, 16
      %v1119 = vrot.slane %v1117, 5
      %v1120 = vor.u32 %v1116, %v1119
      %v1121 = vrot.slane %v1120, 4
      %v1123 = vshll.u32 %v1086, 16
      %v1125 = vrot.slane %v1123, 5
      %v1126 = vsel %vm558, %v1121, %v1125
      %v1128 = vshrl.u32 %v1087, 16
      %v1130 = vrot.slane %v1128, 4
      %v1131 = vshll.u32 %v1087, 16
      %v1133 = vrot.slane %v1131, 5
      %v1134 = vor.u32 %v1130, %v1133
      %v1135 = vrot.slane %v1134, 4
      %v1137 = vshll.u32 %v1088, 16
      %v1139 = vrot.slane %v1137, 5
      %v1140 = vsel %vm558, %v1135, %v1139
      %v1142 = vshrl.u32 %v1089, 16
      %v1144 = vrot.slane %v1142, 4
      %v1145 = vshll.u32 %v1089, 16
      %v1147 = vrot.slane %v1145, 5
      %v1148 = vor.u32 %v1144, %v1147
      %v1149 = vrot.slane %v1148, 4
      %v1151 = vshll.u32 %v1090, 16
      %v1153 = vrot.slane %v1151, 5
      %v1154 = vsel %vm558, %v1149, %v1153
      %v1156 = vshrl.u32 %v1091, 16
      %v1158 = vrot.slane %v1156, 4
      %v1159 = vshll.u32 %v1091, 16
      %v1161 = vrot.slane %v1159, 5
      %v1162 = vor.u32 %v1158, %v1161
      %v1163 = vrot.slane %v1162, 4
      %v1165 = vshll.u32 %v1092, 16
      %v1167 = vrot.slane %v1165, 5
      %v1168 = vsel %vm558, %v1163, %v1167
      %v1170 = vshrl.u32 %v1093, 16
      %v1172 = vrot.slane %v1170, 4
      %v1173 = vshll.u32 %v1093, 16
      %v1175 = vrot.slane %v1173, 5
      %v1176 = vor.u32 %v1172, %v1175
      %v1177 = vrot.slane %v1176, 4
      %v1179 = vshll.u32 %v1094, 16
      %v1181 = vrot.slane %v1179, 5
      %v1182 = vsel %vm558, %v1177, %v1181
      %v1184 = vshrl.u32 %v1095, 16
      %v1186 = vrot.slane %v1184, 4
      %v1187 = vshll.u32 %v1095, 16
      %v1189 = vrot.slane %v1187, 5
      %v1190 = vor.u32 %v1186, %v1189
      %v1191 = vrot.slane %v1190, 4
      %v1193 = vshll.u32 %v1096, 16
      %v1195 = vrot.slane %v1193, 5
      %v1196 = vsel %vm558, %v1191, %v1195
      %v1198 = vshrl.u32 %v1097, 16
      %v1200 = vrot.slane %v1198, 4
      %v1201 = vshll.u32 %v1097, 16
      %v1203 = vrot.slane %v1201, 5
      %v1204 = vor.u32 %v1200, %v1203
      %v1205 = vrot.slane %v1204, 4
      %v1207 = vshll.u32 %v1098, 16
      %v1209 = vrot.slane %v1207, 5
      %v1210 = vsel %vm558, %v1205, %v1209
      %v1211 = vunpack.c.l.b16 %v1112
      %v1212 = vunpack.c.l.b16 %v1126
      %v1213 = vunpack.c.l.b16 %v1140
      %v1214 = vunpack.c.l.b16 %v1154
      %v1215 = vunpack.c.l.b16 %v1168
      %v1216 = vunpack.c.l.b16 %v1182
      %v1217 = vunpack.c.l.b16 %v1196
      %v1218 = vunpack.c.l.b16 %v1210
      %v1219 = vpack.c.b16 %v1212, %v1211
      %v1220 = vpack.c.b16 %v1214, %v1213
      %v1221 = vpack.c.b16 %v1216, %v1215
      %v1222 = vpack.c.b16 %v1218, %v1217
      %1227 = vst [vmem:[#allocation3 + $0x38] sm:$0xff] %v1219
      %1228 = vst [vmem:[#allocation3 + $0x80] sm:$0xff] %v1220
      %1229 = vst [vmem:[#allocation3 + $0xc8] sm:$0xff] %v1221
      %1230 = vst [vmem:[#allocation3 + $0x110] sm:$0xff] %v1222
      %v1231 = vld [vmem:[%s1046] sm:$0xe]
      %v1232 = vld [vmem:[%s1046 + $0x4] sm:$0x1]
      %v1233 = vld [vmem:[%s1046 + $0x8] sm:$0xe]
      %v1234 = vld [vmem:[%s1046 + $0xc] sm:$0x1]
      %v1235 = vld [vmem:[%s1046 + $0x10] sm:$0xe]
      %v1236 = vld [vmem:[%s1046 + $0x14] sm:$0x1]
      %v1237 = vld [vmem:[%s1046 + $0x18] sm:$0xe]
      %v1238 = vld [vmem:[%s1046 + $0x1c] sm:$0x1]
      %v1239 = vld [vmem:[%s1046 + $0x20] sm:$0xe]
      %v1240 = vld [vmem:[%s1046 + $0x24] sm:$0x1]
      %v1241 = vld [vmem:[%s1046 + $0x28] sm:$0xe]
      %v1242 = vld [vmem:[%s1046 + $0x2c] sm:$0x1]
      %v1243 = vld [vmem:[%s1046 + $0x30] sm:$0xe]
      %v1244 = vld [vmem:[%s1046 + $0x34] sm:$0x1]
      %v1245 = vld [vmem:[%s1046 + $0x38] sm:$0xe]
      %v1246 = vld [vmem:[%s1046 + $0x3c] sm:$0x1]
      %v1263 = vrot.slane %v1231, 5
      %v1264 = vrot.slane %v1263, 4
      %v1265 = vrot.slane %v1232, 5
      %v1266 = vsel %vm725, %v1264, %v1265
      %v1267 = vrot.slane %v1233, 5
      %v1268 = vrot.slane %v1267, 4
      %v1269 = vrot.slane %v1234, 5
      %v1270 = vsel %vm725, %v1268, %v1269
      %v1271 = vrot.slane %v1235, 5
      %v1272 = vrot.slane %v1271, 4
      %v1273 = vrot.slane %v1236, 5
      %v1274 = vsel %vm725, %v1272, %v1273
      %v1275 = vrot.slane %v1237, 5
      %v1276 = vrot.slane %v1275, 4
      %v1277 = vrot.slane %v1238, 5
      %v1278 = vsel %vm725, %v1276, %v1277
      %v1279 = vrot.slane %v1239, 5
      %v1280 = vrot.slane %v1279, 4
      %v1281 = vrot.slane %v1240, 5
      %v1282 = vsel %vm725, %v1280, %v1281
      %v1283 = vrot.slane %v1241, 5
      %v1284 = vrot.slane %v1283, 4
      %v1285 = vrot.slane %v1242, 5
      %v1286 = vsel %vm725, %v1284, %v1285
      %v1287 = vrot.slane %v1243, 5
      %v1288 = vrot.slane %v1287, 4
      %v1289 = vrot.slane %v1244, 5
      %v1290 = vsel %vm725, %v1288, %v1289
      %v1291 = vrot.slane %v1245, 5
      %v1292 = vrot.slane %v1291, 4
      %v1293 = vrot.slane %v1246, 5
      %v1294 = vsel %vm725, %v1292, %v1293
      %v1295 = vunpack.c.l.b16 %v1266
      %v1296 = vunpack.c.l.b16 %v1270
      %v1297 = vunpack.c.l.b16 %v1274
      %v1298 = vunpack.c.l.b16 %v1278
      %v1299 = vunpack.c.l.b16 %v1282
      %v1300 = vunpack.c.l.b16 %v1286
      %v1301 = vunpack.c.l.b16 %v1290
      %v1302 = vunpack.c.l.b16 %v1294
      %v1303 = vpack.c.b16 %v1296, %v1295
      %v1304 = vpack.c.b16 %v1298, %v1297
      %v1305 = vpack.c.b16 %v1300, %v1299
      %v1306 = vpack.c.b16 %v1302, %v1301
      %1311 = vst [vmem:[#allocation3 + $0x40] sm:$0xff] %v1303
      %1312 = vst [vmem:[#allocation3 + $0x88] sm:$0xff] %v1304
      %1313 = vst [vmem:[#allocation3 + $0xd0] sm:$0xff] %v1305
      %1314 = vst [vmem:[#allocation3 + $0x118] sm:$0xff] %v1306
      %v1315 = vld [vmem:[#allocation3] sm:$0xff]
      %v1316 = vld [vmem:[#allocation3 + $0x8] sm:$0xff]
      %v1317 = vld [vmem:[#allocation3 + $0x10] sm:$0xff]
      %v1318 = vld [vmem:[#allocation3 + $0x18] sm:$0xff]
      %v1319 = vld [vmem:[#allocation3 + $0x20] sm:$0xff]
      %v1320 = vld [vmem:[#allocation3 + $0x28] sm:$0xff]
      %v1321 = vld [vmem:[#allocation3 + $0x30] sm:$0xff]
      %v1322 = vld [vmem:[#allocation3 + $0x38] sm:$0xff]
      %v1323 = vld [vmem:[#allocation3 + $0x40] sm:$0xff]
      %v1324 = vld [vmem:[#allocation3 + $0x48] sm:$0xff]
      %v1325 = vld [vmem:[#allocation3 + $0x50] sm:$0xff]
      %v1326 = vld [vmem:[#allocation3 + $0x58] sm:$0xff]
      %v1327 = vld [vmem:[#allocation3 + $0x60] sm:$0xff]
      %v1328 = vld [vmem:[#allocation3 + $0x68] sm:$0xff]
      %v1329 = vld [vmem:[#allocation3 + $0x70] sm:$0xff]
      %v1330 = vld [vmem:[#allocation3 + $0x78] sm:$0xff]
      %v1331 = vld [vmem:[#allocation3 + $0x80] sm:$0xff]
      %v1332 = vld [vmem:[#allocation3 + $0x88] sm:$0xff]
      %v1333 = vld [vmem:[#allocation3 + $0x90] sm:$0xff]
      %v1334 = vld [vmem:[#allocation3 + $0x98] sm:$0xff]
      %v1335 = vld [vmem:[#allocation3 + $0xa0] sm:$0xff]
      %v1336 = vld [vmem:[#allocation3 + $0xa8] sm:$0xff]
      %v1337 = vld [vmem:[#allocation3 + $0xb0] sm:$0xff]
      %v1338 = vld [vmem:[#allocation3 + $0xb8] sm:$0xff]
      %v1339 = vld [vmem:[#allocation3 + $0xc0] sm:$0xff]
      %v1340 = vld [vmem:[#allocation3 + $0xc8] sm:$0xff]
      %v1341 = vld [vmem:[#allocation3 + $0xd0] sm:$0xff]
      %v1342 = vld [vmem:[#allocation3 + $0xd8] sm:$0xff]
      %v1343 = vld [vmem:[#allocation3 + $0xe0] sm:$0xff]
      %v1344 = vld [vmem:[#allocation3 + $0xe8] sm:$0xff]
      %v1345 = vld [vmem:[#allocation3 + $0xf0] sm:$0xff]
      %v1346 = vld [vmem:[#allocation3 + $0xf8] sm:$0xff]
      %v1347 = vld [vmem:[#allocation3 + $0x100] sm:$0xff]
      %v1348 = vld [vmem:[#allocation3 + $0x108] sm:$0xff]
      %v1349 = vld [vmem:[#allocation3 + $0x110] sm:$0xff]
      %v1350 = vld [vmem:[#allocation3 + $0x118] sm:$0xff]
      %v1351 = vld [vmem:[%s3] sm:$0xf]
      %v1352 = vld [vmem:[%s3 + $0x4] sm:$0xf]
      %v1353 = vld [vmem:[%s3 + $0x8] sm:$0xf]
      %v1354 = vld [vmem:[%s3 + $0xc] sm:$0xf]
      %v1355 = vld [vmem:[%s3 + $0x10] sm:$0xf]
      %v1356 = vld [vmem:[%s3 + $0x14] sm:$0xf]
      %v1357 = vld [vmem:[%s3 + $0x18] sm:$0xf]
      %v1358 = vld [vmem:[%s3 + $0x1c] sm:$0xf]
      %v1359 = vld [vmem:[%s3 + $0x20] sm:$0xf]
      %v1360 = vld [vmem:[%s3 + $0x24] sm:$0xf]
      %v1361 = vld [vmem:[%s3 + $0x28] sm:$0xf]
      %v1362 = vld [vmem:[%s3 + $0x2c] sm:$0xf]
      %v1363 = vld [vmem:[%s3 + $0x30] sm:$0xf]
      %v1364 = vld [vmem:[%s3 + $0x34] sm:$0xf]
      %v1365 = vld [vmem:[%s3 + $0x38] sm:$0xf]
      %v1366 = vld [vmem:[%s3 + $0x3c] sm:$0xf]
      %v1367 = vld [vmem:[%s3 + $0x40] sm:$0xf]
      %v1368 = vld [vmem:[%s3 + $0x44] sm:$0xf]
      %v1369 = vld [vmem:[%s3 + $0x48] sm:$0xf]
      %v1370 = vld [vmem:[%s3 + $0x4c] sm:$0xf]
      %v1371 = vld [vmem:[%s3 + $0x50] sm:$0xf]
      %v1372 = vld [vmem:[%s3 + $0x54] sm:$0xf]
      %v1373 = vld [vmem:[%s3 + $0x58] sm:$0xf]
      %v1374 = vld [vmem:[%s3 + $0x5c] sm:$0xf]
      %v1375 = vld [vmem:[%s3 + $0x60] sm:$0xf]
      %v1376 = vld [vmem:[%s3 + $0x64] sm:$0xf]
      %v1377 = vld [vmem:[%s3 + $0x68] sm:$0xf]
      %v1378 = vld [vmem:[%s3 + $0x6c] sm:$0xf]
      %v1379 = vld [vmem:[%s3 + $0x70] sm:$0xf]
      %v1380 = vld [vmem:[%s3 + $0x74] sm:$0xf]
      %v1381 = vld [vmem:[%s3 + $0x78] sm:$0xf]
      %v1382 = vld [vmem:[%s3 + $0x7c] sm:$0xf]
      %v1383 = vld [vmem:[%s3 + $0x80] sm:$0xf]
      %v1384 = vld [vmem:[%s3 + $0x84] sm:$0xf]
      %v1385 = vld [vmem:[%s3 + $0x88] sm:$0xf]
      %v1386 = vld [vmem:[%s3 + $0x8c] sm:$0xf]
      %v1387 = vld [vmem:[%s3 + $0x90] sm:$0xf]
      %v1388 = vld [vmem:[%s3 + $0x94] sm:$0xf]
      %v1389 = vld [vmem:[%s3 + $0x98] sm:$0xf]
      %v1390 = vld [vmem:[%s3 + $0x9c] sm:$0xf]
      %v1391 = vld [vmem:[%s3 + $0xa0] sm:$0xf]
      %v1392 = vld [vmem:[%s3 + $0xa4] sm:$0xf]
      %v1393 = vld [vmem:[%s3 + $0xa8] sm:$0xf]
      %v1394 = vld [vmem:[%s3 + $0xac] sm:$0xf]
      %v1395 = vld [vmem:[%s3 + $0xb0] sm:$0xf]
      %v1396 = vld [vmem:[%s3 + $0xb4] sm:$0xf]
      %v1397 = vld [vmem:[%s3 + $0xb8] sm:$0xf]
      %v1398 = vld [vmem:[%s3 + $0xbc] sm:$0xf]
      %v1399 = vld [vmem:[%s3 + $0xc0] sm:$0xf]
      %v1400 = vld [vmem:[%s3 + $0xc4] sm:$0xf]
      %v1401 = vld [vmem:[%s3 + $0xc8] sm:$0xf]
      %v1402 = vld [vmem:[%s3 + $0xcc] sm:$0xf]
      %v1403 = vld [vmem:[%s3 + $0xd0] sm:$0xf]
      %v1404 = vld [vmem:[%s3 + $0xd4] sm:$0xf]
      %v1405 = vld [vmem:[%s3 + $0xd8] sm:$0xf]
      %v1406 = vld [vmem:[%s3 + $0xdc] sm:$0xf]
      %v1407 = vld [vmem:[%s3 + $0xe0] sm:$0xf]
      %v1408 = vld [vmem:[%s3 + $0xe4] sm:$0xf]
      %v1409 = vld [vmem:[%s3 + $0xe8] sm:$0xf]
      %v1410 = vld [vmem:[%s3 + $0xec] sm:$0xf]
      %v1411 = vld [vmem:[%s3 + $0xf0] sm:$0xf]
      %v1412 = vld [vmem:[%s3 + $0xf4] sm:$0xf]
      %v1413 = vld [vmem:[%s3 + $0xf8] sm:$0xf]
      %v1414 = vld [vmem:[%s3 + $0xfc] sm:$0xf]
      %v1415 = vld [vmem:[%s3 + $0x100] sm:$0xf]
      %v1416 = vld [vmem:[%s3 + $0x104] sm:$0xf]
      %v1417 = vld [vmem:[%s3 + $0x108] sm:$0xf]
      %v1418 = vld [vmem:[%s3 + $0x10c] sm:$0xf]
      %v1419 = vld [vmem:[%s3 + $0x110] sm:$0xf]
      %v1420 = vld [vmem:[%s3 + $0x114] sm:$0xf]
      %v1421 = vld [vmem:[%s3 + $0x118] sm:$0xf]
      %v1422 = vld [vmem:[%s3 + $0x11c] sm:$0xf]
      %v1423 = vld [vmem:[%s3 + $0x120] sm:$0xf]
      %v1424 = vld [vmem:[%s3 + $0x124] sm:$0xf]
      %v1425 = vld [vmem:[%s3 + $0x128] sm:$0xf]
      %v1426 = vld [vmem:[%s3 + $0x12c] sm:$0xf]
      %v1427 = vld [vmem:[%s3 + $0x130] sm:$0xf]
      %v1428 = vld [vmem:[%s3 + $0x134] sm:$0xf]
      %v1429 = vld [vmem:[%s3 + $0x138] sm:$0xf]
      %v1430 = vld [vmem:[%s3 + $0x13c] sm:$0xf]
      %v1431 = vld [vmem:[%s3 + $0x140] sm:$0xf]
      %v1432 = vld [vmem:[%s3 + $0x144] sm:$0xf]
      %v1433 = vld [vmem:[%s3 + $0x148] sm:$0xf]
      %v1434 = vld [vmem:[%s3 + $0x14c] sm:$0xf]
      %v1435 = vld [vmem:[%s3 + $0x150] sm:$0xf]
      %v1436 = vld [vmem:[%s3 + $0x154] sm:$0xf]
      %v1437 = vld [vmem:[%s3 + $0x158] sm:$0xf]
      %v1438 = vld [vmem:[%s3 + $0x15c] sm:$0xf]
      %v1439 = vld [vmem:[%s3 + $0x160] sm:$0xf]
      %v1440 = vld [vmem:[%s3 + $0x164] sm:$0xf]
      %v1441 = vld [vmem:[%s3 + $0x168] sm:$0xf]
      %v1442 = vld [vmem:[%s3 + $0x16c] sm:$0xf]
      %v1443 = vld [vmem:[%s3 + $0x170] sm:$0xf]
      %v1444 = vld [vmem:[%s3 + $0x174] sm:$0xf]
      %v1445 = vld [vmem:[%s3 + $0x178] sm:$0xf]
      %v1446 = vld [vmem:[%s3 + $0x17c] sm:$0xf]
      %v1447 = vld [vmem:[%s3 + $0x180] sm:$0xf]
      %v1448 = vld [vmem:[%s3 + $0x184] sm:$0xf]
      %v1449 = vld [vmem:[%s3 + $0x188] sm:$0xf]
      %v1450 = vld [vmem:[%s3 + $0x18c] sm:$0xf]
      %v1451 = vld [vmem:[%s3 + $0x190] sm:$0xf]
      %v1452 = vld [vmem:[%s3 + $0x194] sm:$0xf]
      %v1453 = vld [vmem:[%s3 + $0x198] sm:$0xf]
      %v1454 = vld [vmem:[%s3 + $0x19c] sm:$0xf]
      %v1455 = vld [vmem:[%s3 + $0x1a0] sm:$0xf]
      %v1456 = vld [vmem:[%s3 + $0x1a4] sm:$0xf]
      %v1457 = vld [vmem:[%s3 + $0x1a8] sm:$0xf]
      %v1458 = vld [vmem:[%s3 + $0x1ac] sm:$0xf]
      %v1459 = vld [vmem:[%s3 + $0x1b0] sm:$0xf]
      %v1460 = vld [vmem:[%s3 + $0x1b4] sm:$0xf]
      %v1461 = vld [vmem:[%s3 + $0x1b8] sm:$0xf]
      %v1462 = vld [vmem:[%s3 + $0x1bc] sm:$0xf]
      %v1463 = vld [vmem:[%s3 + $0x1c0] sm:$0xf]
      %v1464 = vld [vmem:[%s3 + $0x1c4] sm:$0xf]
      %v1465 = vld [vmem:[%s3 + $0x1c8] sm:$0xf]
      %v1466 = vld [vmem:[%s3 + $0x1cc] sm:$0xf]
      %v1467 = vld [vmem:[%s3 + $0x1d0] sm:$0xf]
      %v1468 = vld [vmem:[%s3 + $0x1d4] sm:$0xf]
      %v1469 = vld [vmem:[%s3 + $0x1d8] sm:$0xf]
      %v1470 = vld [vmem:[%s3 + $0x1dc] sm:$0xf]
      %v1471 = vld [vmem:[%s3 + $0x1e0] sm:$0xf]
      %v1472 = vld [vmem:[%s3 + $0x1e4] sm:$0xf]
      %v1473 = vld [vmem:[%s3 + $0x1e8] sm:$0xf]
      %v1474 = vld [vmem:[%s3 + $0x1ec] sm:$0xf]
      %v1475 = vld [vmem:[%s3 + $0x1f0] sm:$0xf]
      %v1476 = vld [vmem:[%s3 + $0x1f4] sm:$0xf]
      %v1477 = vld [vmem:[%s3 + $0x1f8] sm:$0xf]
      %v1478 = vld [vmem:[%s3 + $0x1fc] sm:$0xf]
      %v1479 = vld [vmem:[%s3 + $0x200] sm:$0xf]
      %v1480 = vld [vmem:[%s3 + $0x204] sm:$0xf]
      %v1481 = vld [vmem:[%s3 + $0x208] sm:$0xf]
      %v1482 = vld [vmem:[%s3 + $0x20c] sm:$0xf]
      %v1483 = vld [vmem:[%s3 + $0x210] sm:$0xf]
      %v1484 = vld [vmem:[%s3 + $0x214] sm:$0xf]
      %v1485 = vld [vmem:[%s3 + $0x218] sm:$0xf]
      %v1486 = vld [vmem:[%s3 + $0x21c] sm:$0xf]
      %v1487 = vld [vmem:[%s3 + $0x220] sm:$0xf]
      %v1488 = vld [vmem:[%s3 + $0x224] sm:$0xf]
      %v1489 = vld [vmem:[%s3 + $0x228] sm:$0xf]
      %v1490 = vld [vmem:[%s3 + $0x22c] sm:$0xf]
      %v1491 = vld [vmem:[%s3 + $0x230] sm:$0xf]
      %v1492 = vld [vmem:[%s3 + $0x234] sm:$0xf]
      %v1493 = vld [vmem:[%s3 + $0x238] sm:$0xf]
      %v1494 = vld [vmem:[%s3 + $0x23c] sm:$0xf]
      %v1639 = vunpack.c.l.b16 %v1351
      %v1640 = vunpack.c.l.b16 %v1352
      %v1641 = vunpack.c.l.b16 %v1353
      %v1642 = vunpack.c.l.b16 %v1354
      %v1643 = vunpack.c.l.b16 %v1355
      %v1644 = vunpack.c.l.b16 %v1356
      %v1645 = vunpack.c.l.b16 %v1357
      %v1646 = vunpack.c.l.b16 %v1358
      %v1647 = vunpack.c.l.b16 %v1359
      %v1648 = vunpack.c.l.b16 %v1360
      %v1649 = vunpack.c.l.b16 %v1361
      %v1650 = vunpack.c.l.b16 %v1362
      %v1651 = vunpack.c.l.b16 %v1363
      %v1652 = vunpack.c.l.b16 %v1364
      %v1653 = vunpack.c.l.b16 %v1365
      %v1654 = vunpack.c.l.b16 %v1366
      %v1655 = vunpack.c.l.b16 %v1367
      %v1656 = vunpack.c.l.b16 %v1368
      %v1657 = vunpack.c.l.b16 %v1369
      %v1658 = vunpack.c.l.b16 %v1370
      %v1659 = vunpack.c.l.b16 %v1371
      %v1660 = vunpack.c.l.b16 %v1372
      %v1661 = vunpack.c.l.b16 %v1373
      %v1662 = vunpack.c.l.b16 %v1374
      %v1663 = vunpack.c.l.b16 %v1375
      %v1664 = vunpack.c.l.b16 %v1376
      %v1665 = vunpack.c.l.b16 %v1377
      %v1666 = vunpack.c.l.b16 %v1378
      %v1667 = vunpack.c.l.b16 %v1379
      %v1668 = vunpack.c.l.b16 %v1380
      %v1669 = vunpack.c.l.b16 %v1381
      %v1670 = vunpack.c.l.b16 %v1382
      %v1671 = vunpack.c.l.b16 %v1383
      %v1672 = vunpack.c.l.b16 %v1384
      %v1673 = vunpack.c.l.b16 %v1385
      %v1674 = vunpack.c.l.b16 %v1386
      %v1675 = vunpack.c.l.b16 %v1387
      %v1676 = vunpack.c.l.b16 %v1388
      %v1677 = vunpack.c.l.b16 %v1389
      %v1678 = vunpack.c.l.b16 %v1390
      %v1679 = vunpack.c.l.b16 %v1391
      %v1680 = vunpack.c.l.b16 %v1392
      %v1681 = vunpack.c.l.b16 %v1393
      %v1682 = vunpack.c.l.b16 %v1394
      %v1683 = vunpack.c.l.b16 %v1395
      %v1684 = vunpack.c.l.b16 %v1396
      %v1685 = vunpack.c.l.b16 %v1397
      %v1686 = vunpack.c.l.b16 %v1398
      %v1687 = vunpack.c.l.b16 %v1399
      %v1688 = vunpack.c.l.b16 %v1400
      %v1689 = vunpack.c.l.b16 %v1401
      %v1690 = vunpack.c.l.b16 %v1402
      %v1691 = vunpack.c.l.b16 %v1403
      %v1692 = vunpack.c.l.b16 %v1404
      %v1693 = vunpack.c.l.b16 %v1405
      %v1694 = vunpack.c.l.b16 %v1406
      %v1695 = vunpack.c.l.b16 %v1407
      %v1696 = vunpack.c.l.b16 %v1408
      %v1697 = vunpack.c.l.b16 %v1409
      %v1698 = vunpack.c.l.b16 %v1410
      %v1699 = vunpack.c.l.b16 %v1411
      %v1700 = vunpack.c.l.b16 %v1412
      %v1701 = vunpack.c.l.b16 %v1413
      %v1702 = vunpack.c.l.b16 %v1414
      %v1703 = vunpack.c.l.b16 %v1415
      %v1704 = vunpack.c.l.b16 %v1416
      %v1705 = vunpack.c.l.b16 %v1417
      %v1706 = vunpack.c.l.b16 %v1418
      %v1707 = vunpack.c.l.b16 %v1419
      %v1708 = vunpack.c.l.b16 %v1420
      %v1709 = vunpack.c.l.b16 %v1421
      %v1710 = vunpack.c.l.b16 %v1422
      %v1711 = vunpack.c.l.b16 %v1423
      %v1712 = vunpack.c.l.b16 %v1424
      %v1713 = vunpack.c.l.b16 %v1425
      %v1714 = vunpack.c.l.b16 %v1426
      %v1715 = vunpack.c.l.b16 %v1427
      %v1716 = vunpack.c.l.b16 %v1428
      %v1717 = vunpack.c.l.b16 %v1429
      %v1718 = vunpack.c.l.b16 %v1430
      %v1719 = vunpack.c.l.b16 %v1431
      %v1720 = vunpack.c.l.b16 %v1432
      %v1721 = vunpack.c.l.b16 %v1433
      %v1722 = vunpack.c.l.b16 %v1434
      %v1723 = vunpack.c.l.b16 %v1435
      %v1724 = vunpack.c.l.b16 %v1436
      %v1725 = vunpack.c.l.b16 %v1437
      %v1726 = vunpack.c.l.b16 %v1438
      %v1727 = vunpack.c.l.b16 %v1439
      %v1728 = vunpack.c.l.b16 %v1440
      %v1729 = vunpack.c.l.b16 %v1441
      %v1730 = vunpack.c.l.b16 %v1442
      %v1731 = vunpack.c.l.b16 %v1443
      %v1732 = vunpack.c.l.b16 %v1444
      %v1733 = vunpack.c.l.b16 %v1445
      %v1734 = vunpack.c.l.b16 %v1446
      %v1735 = vunpack.c.l.b16 %v1447
      %v1736 = vunpack.c.l.b16 %v1448
      %v1737 = vunpack.c.l.b16 %v1449
      %v1738 = vunpack.c.l.b16 %v1450
      %v1739 = vunpack.c.l.b16 %v1451
      %v1740 = vunpack.c.l.b16 %v1452
      %v1741 = vunpack.c.l.b16 %v1453
      %v1742 = vunpack.c.l.b16 %v1454
      %v1743 = vunpack.c.l.b16 %v1455
      %v1744 = vunpack.c.l.b16 %v1456
      %v1745 = vunpack.c.l.b16 %v1457
      %v1746 = vunpack.c.l.b16 %v1458
      %v1747 = vunpack.c.l.b16 %v1459
      %v1748 = vunpack.c.l.b16 %v1460
      %v1749 = vunpack.c.l.b16 %v1461
      %v1750 = vunpack.c.l.b16 %v1462
      %v1751 = vunpack.c.l.b16 %v1463
      %v1752 = vunpack.c.l.b16 %v1464
      %v1753 = vunpack.c.l.b16 %v1465
      %v1754 = vunpack.c.l.b16 %v1466
      %v1755 = vunpack.c.l.b16 %v1467
      %v1756 = vunpack.c.l.b16 %v1468
      %v1757 = vunpack.c.l.b16 %v1469
      %v1758 = vunpack.c.l.b16 %v1470
      %v1759 = vunpack.c.l.b16 %v1471
      %v1760 = vunpack.c.l.b16 %v1472
      %v1761 = vunpack.c.l.b16 %v1473
      %v1762 = vunpack.c.l.b16 %v1474
      %v1763 = vunpack.c.l.b16 %v1475
      %v1764 = vunpack.c.l.b16 %v1476
      %v1765 = vunpack.c.l.b16 %v1477
      %v1766 = vunpack.c.l.b16 %v1478
      %v1767 = vunpack.c.l.b16 %v1479
      %v1768 = vunpack.c.l.b16 %v1480
      %v1769 = vunpack.c.l.b16 %v1481
      %v1770 = vunpack.c.l.b16 %v1482
      %v1771 = vunpack.c.l.b16 %v1483
      %v1772 = vunpack.c.l.b16 %v1484
      %v1773 = vunpack.c.l.b16 %v1485
      %v1774 = vunpack.c.l.b16 %v1486
      %v1775 = vunpack.c.l.b16 %v1487
      %v1776 = vunpack.c.l.b16 %v1488
      %v1777 = vunpack.c.l.b16 %v1489
      %v1778 = vunpack.c.l.b16 %v1490
      %v1779 = vunpack.c.l.b16 %v1491
      %v1780 = vunpack.c.l.b16 %v1492
      %v1781 = vunpack.c.l.b16 %v1493
      %v1782 = vunpack.c.l.b16 %v1494
      %v1783 = vpack.c.b16 %v1640, %v1639
      %v1784 = vpack.c.b16 %v1642, %v1641
      %v1785 = vpack.c.b16 %v1644, %v1643
      %v1786 = vpack.c.b16 %v1646, %v1645
      %v1787 = vpack.c.b16 %v1648, %v1647
      %v1788 = vpack.c.b16 %v1650, %v1649
      %v1789 = vpack.c.b16 %v1652, %v1651
      %v1790 = vpack.c.b16 %v1654, %v1653
      %v1791 = vpack.c.b16 %v1656, %v1655
      %v1792 = vpack.c.b16 %v1658, %v1657
      %v1793 = vpack.c.b16 %v1660, %v1659
      %v1794 = vpack.c.b16 %v1662, %v1661
      %v1795 = vpack.c.b16 %v1664, %v1663
      %v1796 = vpack.c.b16 %v1666, %v1665
      %v1797 = vpack.c.b16 %v1668, %v1667
      %v1798 = vpack.c.b16 %v1670, %v1669
      %v1799 = vpack.c.b16 %v1672, %v1671
      %v1800 = vpack.c.b16 %v1674, %v1673
      %v1801 = vpack.c.b16 %v1676, %v1675
      %v1802 = vpack.c.b16 %v1678, %v1677
      %v1803 = vpack.c.b16 %v1680, %v1679
      %v1804 = vpack.c.b16 %v1682, %v1681
      %v1805 = vpack.c.b16 %v1684, %v1683
      %v1806 = vpack.c.b16 %v1686, %v1685
      %v1807 = vpack.c.b16 %v1688, %v1687
      %v1808 = vpack.c.b16 %v1690, %v1689
      %v1809 = vpack.c.b16 %v1692, %v1691
      %v1810 = vpack.c.b16 %v1694, %v1693
      %v1811 = vpack.c.b16 %v1696, %v1695
      %v1812 = vpack.c.b16 %v1698, %v1697
      %v1813 = vpack.c.b16 %v1700, %v1699
      %v1814 = vpack.c.b16 %v1702, %v1701
      %v1815 = vpack.c.b16 %v1704, %v1703
      %v1816 = vpack.c.b16 %v1706, %v1705
      %v1817 = vpack.c.b16 %v1708, %v1707
      %v1818 = vpack.c.b16 %v1710, %v1709
      %v1819 = vpack.c.b16 %v1712, %v1711
      %v1820 = vpack.c.b16 %v1714, %v1713
      %v1821 = vpack.c.b16 %v1716, %v1715
      %v1822 = vpack.c.b16 %v1718, %v1717
      %v1823 = vpack.c.b16 %v1720, %v1719
      %v1824 = vpack.c.b16 %v1722, %v1721
      %v1825 = vpack.c.b16 %v1724, %v1723
      %v1826 = vpack.c.b16 %v1726, %v1725
      %v1827 = vpack.c.b16 %v1728, %v1727
      %v1828 = vpack.c.b16 %v1730, %v1729
      %v1829 = vpack.c.b16 %v1732, %v1731
      %v1830 = vpack.c.b16 %v1734, %v1733
      %v1831 = vpack.c.b16 %v1736, %v1735
      %v1832 = vpack.c.b16 %v1738, %v1737
      %v1833 = vpack.c.b16 %v1740, %v1739
      %v1834 = vpack.c.b16 %v1742, %v1741
      %v1835 = vpack.c.b16 %v1744, %v1743
      %v1836 = vpack.c.b16 %v1746, %v1745
      %v1837 = vpack.c.b16 %v1748, %v1747
      %v1838 = vpack.c.b16 %v1750, %v1749
      %v1839 = vpack.c.b16 %v1752, %v1751
      %v1840 = vpack.c.b16 %v1754, %v1753
      %v1841 = vpack.c.b16 %v1756, %v1755
      %v1842 = vpack.c.b16 %v1758, %v1757
      %v1843 = vpack.c.b16 %v1760, %v1759
      %v1844 = vpack.c.b16 %v1762, %v1761
      %v1845 = vpack.c.b16 %v1764, %v1763
      %v1846 = vpack.c.b16 %v1766, %v1765
      %v1847 = vpack.c.b16 %v1768, %v1767
      %v1848 = vpack.c.b16 %v1770, %v1769
      %v1849 = vpack.c.b16 %v1772, %v1771
      %v1850 = vpack.c.b16 %v1774, %v1773
      %v1851 = vpack.c.b16 %v1776, %v1775
      %v1852 = vpack.c.b16 %v1778, %v1777
      %v1853 = vpack.c.b16 %v1780, %v1779
      %v1854 = vpack.c.b16 %v1782, %v1781
      %1927 = vmatprep.subr.bf16.mxu0 0
      %1928 = vmatpush1.bf16.msra.mxu0 %v1783
      %1929 = vmatprep.subr.bf16.mxu0 0
      %1930 = vmatpush1.bf16.msra.mxu0 %v1784
      %1931 = vmatprep.subr.bf16.mxu0 0
      %1932 = vmatpush1.bf16.msra.mxu0 %v1785
      %1933 = vmatprep.subr.bf16.mxu0 0
      %1934 = vmatpush1.bf16.msra.mxu0 %v1786
      %1935 = vmatprep.subr.bf16.mxu0 0
      %1936 = vmatpush1.bf16.msra.mxu0 %v1787
      %1937 = vmatprep.subr.bf16.mxu0 0
      %1938 = vmatpush1.bf16.msra.mxu0 %v1788
      %1939 = vmatprep.subr.bf16.mxu0 0
      %1940 = vmatpush1.bf16.msra.mxu0 %v1789
      %1941 = vmatprep.subr.bf16.mxu0 0
      %1942 = vmatpush1.bf16.msra.mxu0 %v1790
      %1943 = vmatprep.subr.bf16.mxu0 0
      %1944 = vmatpush1.bf16.msra.mxu0 %v1791
      %1945 = vmatprep.subr.bf16.mxu0 0
      %1946 = vmatpush1.bf16.msra.mxu0 %v1792
      %1947 = vmatprep.subr.bf16.mxu0 0
      %1948 = vmatpush1.bf16.msra.mxu0 %v1793
      %1949 = vmatprep.subr.bf16.mxu0 0
      %1950 = vmatpush1.bf16.msra.mxu0 %v1794
      %1951 = vmatprep.subr.bf16.mxu0 0
      %1952 = vmatpush1.bf16.msra.mxu0 %v1795
      %1953 = vmatprep.subr.bf16.mxu0 0
      %1954 = vmatpush1.bf16.msra.mxu0 %v1796
      %1955 = vmatprep.subr.bf16.mxu0 0
      %1956 = vmatpush1.bf16.msra.mxu0 %v1797
      %1957 = vmatprep.subr.bf16.mxu0 0
      %1958 = vmatpush1.bf16.msra.mxu0 %v1798
      %1959 = vmatprep.mubr.bf16.mxu0 %v1316
      %1960 = vmatmul.mubr.bf16.gmra.mrb[0].mxu0 %v1315
      %v1961 = vpop.f32.mrb[0].mxu0
      %v1962 = vadd.f32 0.0, %v1961
      %v1963 = vpop.f32.mrb[0].mxu0
      %v1964 = vpop.f32.mrb[0].mxu0
      %v1965 = vadd.f32 0.0, %v1964
      %v1966 = vpop.f32.mrb[0].mxu0
      %1967 = vmatprep.mubr.bf16.mxu0 %v1325
      %1968 = vmatmul.mubr.bf16.gmra.mrb[0].mxu0 %v1324
      %v1969 = vpop.f32.mrb[0].mxu0
      %v1970 = vadd.f32 0.0, %v1969
      %v1971 = vpop.f32.mrb[0].mxu0
      %v1972 = vpop.f32.mrb[0].mxu0
      %v1973 = vadd.f32 0.0, %v1972
      %v1974 = vpop.f32.mrb[0].mxu0
      %1975 = vmatprep.mubr.bf16.mxu0 %v1334
      %1976 = vmatmul.mubr.bf16.gmra.mrb[0].mxu0 %v1333
      %v1977 = vpop.f32.mrb[0].mxu0
      %v1978 = vadd.f32 0.0, %v1977
      %v1979 = vpop.f32.mrb[0].mxu0
      %v1980 = vpop.f32.mrb[0].mxu0
      %v1981 = vadd.f32 0.0, %v1980
      %v1982 = vpop.f32.mrb[0].mxu0
      %1983 = vmatprep.mubr.bf16.mxu0 %v1343
      %1984 = vmatmul.mubr.bf16.gmra.mrb[0].mxu0 %v1342
      %v1985 = vpop.f32.mrb[0].mxu0
      %v1986 = vadd.f32 0.0, %v1985
      %v1987 = vpop.f32.mrb[0].mxu0
      %v1988 = vpop.f32.mrb[0].mxu0
      %v1989 = vadd.f32 0.0, %v1988
      %v1990 = vpop.f32.mrb[0].mxu0
      %1991 = vdwg.mxu0
      %1992 = vmatprep.subr.bf16.mxu0 0
      %1993 = vmatpush1.bf16.msra.mxu0 %v1799
      %1994 = vmatprep.subr.bf16.mxu0 0
      %1995 = vmatpush1.bf16.msra.mxu0 %v1800
      %1996 = vmatprep.subr.bf16.mxu0 0
      %1997 = vmatpush1.bf16.msra.mxu0 %v1801
      %1998 = vmatprep.subr.bf16.mxu0 0
      %1999 = vmatpush1.bf16.msra.mxu0 %v1802
      %2000 = vmatprep.subr.bf16.mxu0 0
      %2001 = vmatpush1.bf16.msra.mxu0 %v1803
      %2002 = vmatprep.subr.bf16.mxu0 0
      %2003 = vmatpush1.bf16.msra.mxu0 %v1804
      %2004 = vmatprep.subr.bf16.mxu0 0
      %2005 = vmatpush1.bf16.msra.mxu0 %v1805
      %2006 = vmatprep.subr.bf16.mxu0 0
      %2007 = vmatpush1.bf16.msra.mxu0 %v1806
      %2008 = vmatprep.subr.bf16.mxu0 0
      %2009 = vmatpush1.bf16.msra.mxu0 %v1807
      %2010 = vmatprep.subr.bf16.mxu0 0
      %2011 = vmatpush1.bf16.msra.mxu0 %v1808
      %2012 = vmatprep.subr.bf16.mxu0 0
      %2013 = vmatpush1.bf16.msra.mxu0 %v1809
      %2014 = vmatprep.subr.bf16.mxu0 0
      %2015 = vmatpush1.bf16.msra.mxu0 %v1810
      %2016 = vmatprep.subr.bf16.mxu0 0
      %2017 = vmatpush1.bf16.msra.mxu0 %v1811
      %2018 = vmatprep.subr.bf16.mxu0 0
      %2019 = vmatpush1.bf16.msra.mxu0 %v1812
      %2020 = vmatprep.subr.bf16.mxu0 0
      %2021 = vmatpush1.bf16.msra.mxu0 %v1813
      %2022 = vmatprep.subr.bf16.mxu0 0
      %2023 = vmatpush1.bf16.msra.mxu0 %v1814
      %2024 = vmatprep.mubr.bf16.mxu0 %v1318
      %2025 = vmatmul.mubr.bf16.gmra.mrb[0].mxu0 %v1317
      %v2026 = vpop.f32.mrb[0].mxu0
      %v2027 = vadd.f32 %v1962, %v2026
      %v2028 = vpop.f32.mrb[0].mxu0
      %v2029 = vpop.f32.mrb[0].mxu0
      %v2030 = vadd.f32 %v1965, %v2029
      %v2031 = vpop.f32.mrb[0].mxu0
      %2032 = vmatprep.mubr.bf16.mxu0 %v1327
      %2033 = vmatmul.mubr.bf16.gmra.mrb[0].mxu0 %v1326
      %v2034 = vpop.f32.mrb[0].mxu0
      %v2035 = vadd.f32 %v1970, %v2034
      %v2036 = vpop.f32.mrb[0].mxu0
      %v2037 = vpop.f32.mrb[0].mxu0
      %v2038 = vadd.f32 %v1973, %v2037
      %v2039 = vpop.f32.mrb[0].mxu0
      %2040 = vmatprep.mubr.bf16.mxu0 %v1336
      %2041 = vmatmul.mubr.bf16.gmra.mrb[0].mxu0 %v1335
      %v2042 = vpop.f32.mrb[0].mxu0
      %v2043 = vadd.f32 %v1978, %v2042
      %v2044 = vpop.f32.mrb[0].mxu0
      %v2045 = vpop.f32.mrb[0].mxu0
      %v2046 = vadd.f32 %v1981, %v2045
      %v2047 = vpop.f32.mrb[0].mxu0
      %2048 = vmatprep.mubr.bf16.mxu0 %v1345
      %2049 = vmatmul.mubr.bf16.gmra.mrb[0].mxu0 %v1344
      %v2050 = vpop.f32.mrb[0].mxu0
      %v2051 = vadd.f32 %v1986, %v2050
      %v2052 = vpop.f32.mrb[0].mxu0
      %v2053 = vpop.f32.mrb[0].mxu0
      %v2054 = vadd.f32 %v1989, %v2053
      %v2055 = vpop.f32.mrb[0].mxu0
      %2056 = vdwg.mxu0
      %2057 = vmatprep.subr.bf16.mxu0 0
      %2058 = vmatpush1.bf16.msra.mxu0 %v1815
      %2059 = vmatprep.subr.bf16.mxu0 0
      %2060 = vmatpush1.bf16.msra.mxu0 %v1816
      %2061 = vmatprep.subr.bf16.mxu0 0
      %2062 = vmatpush1.bf16.msra.mxu0 %v1817
      %2063 = vmatprep.subr.bf16.mxu0 0
      %2064 = vmatpush1.bf16.msra.mxu0 %v1818
      %2065 = vmatprep.subr.bf16.mxu0 0
      %2066 = vmatpush1.bf16.msra.mxu0 %v1819
      %2067 = vmatprep.subr.bf16.mxu0 0
      %2068 = vmatpush1.bf16.msra.mxu0 %v1820
      %2069 = vmatprep.subr.bf16.mxu0 0
      %2070 = vmatpush1.bf16.msra.mxu0 %v1821
      %2071 = vmatprep.subr.bf16.mxu0 0
      %2072 = vmatpush1.bf16.msra.mxu0 %v1822
      %2073 = vmatprep.subr.bf16.mxu0 0
      %2074 = vmatpush1.bf16.msra.mxu0 %v1823
      %2075 = vmatprep.subr.bf16.mxu0 0
      %2076 = vmatpush1.bf16.msra.mxu0 %v1824
      %2077 = vmatprep.subr.bf16.mxu0 0
      %2078 = vmatpush1.bf16.msra.mxu0 %v1825
      %2079 = vmatprep.subr.bf16.mxu0 0
      %2080 = vmatpush1.bf16.msra.mxu0 %v1826
      %2081 = vmatprep.subr.bf16.mxu0 0
      %2082 = vmatpush1.bf16.msra.mxu0 %v1827
      %2083 = vmatprep.subr.bf16.mxu0 0
      %2084 = vmatpush1.bf16.msra.mxu0 %v1828
      %2085 = vmatprep.subr.bf16.mxu0 0
      %2086 = vmatpush1.bf16.msra.mxu0 %v1829
      %2087 = vmatprep.subr.bf16.mxu0 0
      %2088 = vmatpush1.bf16.msra.mxu0 %v1830
      %2089 = vmatprep.mubr.bf16.mxu0 %v1320
      %2090 = vmatmul.mubr.bf16.gmra.mrb[0].mxu0 %v1319
      %v2091 = vpop.f32.mrb[0].mxu0
      %v2092 = vadd.f32 %v2027, %v2091
      %v2093 = vpop.f32.mrb[0].mxu0
      %v2094 = vpop.f32.mrb[0].mxu0
      %v2095 = vadd.f32 %v2030, %v2094
      %v2096 = vpop.f32.mrb[0].mxu0
      %2097 = vmatprep.mubr.bf16.mxu0 %v1329
      %2098 = vmatmul.mubr.bf16.gmra.mrb[0].mxu0 %v1328
      %v2099 = vpop.f32.mrb[0].mxu0
      %v2100 = vadd.f32 %v2035, %v2099
      %v2101 = vpop.f32.mrb[0].mxu0
      %v2102 = vpop.f32.mrb[0].mxu0
      %v2103 = vadd.f32 %v2038, %v2102
      %v2104 = vpop.f32.mrb[0].mxu0
      %2105 = vmatprep.mubr.bf16.mxu0 %v1338
      %2106 = vmatmul.mubr.bf16.gmra.mrb[0].mxu0 %v1337
      %v2107 = vpop.f32.mrb[0].mxu0
      %v2108 = vadd.f32 %v2043, %v2107
      %v2109 = vpop.f32.mrb[0].mxu0
      %v2110 = vpop.f32.mrb[0].mxu0
      %v2111 = vadd.f32 %v2046, %v2110
      %v2112 = vpop.f32.mrb[0].mxu0
      %2113 = vmatprep.mubr.bf16.mxu0 %v1347
      %2114 = vmatmul.mubr.bf16.gmra.mrb[0].mxu0 %v1346
      %v2115 = vpop.f32.mrb[0].mxu0
      %v2116 = vadd.f32 %v2051, %v2115
      %v2117 = vpop.f32.mrb[0].mxu0
      %v2118 = vpop.f32.mrb[0].mxu0
      %v2119 = vadd.f32 %v2054, %v2118
      %v2120 = vpop.f32.mrb[0].mxu0
      %2121 = vdwg.mxu0
      %2122 = vmatprep.subr.bf16.mxu0 0
      %2123 = vmatpush1.bf16.msra.mxu0 %v1831
      %2124 = vmatprep.subr.bf16.mxu0 0
      %2125 = vmatpush1.bf16.msra.mxu0 %v1832
      %2126 = vmatprep.subr.bf16.mxu0 0
      %2127 = vmatpush1.bf16.msra.mxu0 %v1833
      %2128 = vmatprep.subr.bf16.mxu0 0
      %2129 = vmatpush1.bf16.msra.mxu0 %v1834
      %2130 = vmatprep.subr.bf16.mxu0 0
      %2131 = vmatpush1.bf16.msra.mxu0 %v1835
      %2132 = vmatprep.subr.bf16.mxu0 0
      %2133 = vmatpush1.bf16.msra.mxu0 %v1836
      %2134 = vmatprep.subr.bf16.mxu0 0
      %2135 = vmatpush1.bf16.msra.mxu0 %v1837
      %2136 = vmatprep.subr.bf16.mxu0 0
      %2137 = vmatpush1.bf16.msra.mxu0 %v1838
      %2138 = vmatprep.subr.bf16.mxu0 0
      %2139 = vmatpush1.bf16.msra.mxu0 %v1839
      %2140 = vmatprep.subr.bf16.mxu0 0
      %2141 = vmatpush1.bf16.msra.mxu0 %v1840
      %2142 = vmatprep.subr.bf16.mxu0 0
      %2143 = vmatpush1.bf16.msra.mxu0 %v1841
      %2144 = vmatprep.subr.bf16.mxu0 0
      %2145 = vmatpush1.bf16.msra.mxu0 %v1842
      %2146 = vmatprep.subr.bf16.mxu0 0
      %2147 = vmatpush1.bf16.msra.mxu0 %v1843
      %2148 = vmatprep.subr.bf16.mxu0 0
      %2149 = vmatpush1.bf16.msra.mxu0 %v1844
      %2150 = vmatprep.subr.bf16.mxu0 0
      %2151 = vmatpush1.bf16.msra.mxu0 %v1845
      %2152 = vmatprep.subr.bf16.mxu0 0
      %2153 = vmatpush1.bf16.msra.mxu0 %v1846
      %2154 = vmatprep.mubr.bf16.mxu0 %v1322
      %2155 = vmatmul.mubr.bf16.gmra.mrb[0].mxu0 %v1321
      %v2156 = vpop.f32.mrb[0].mxu0
      %v2157 = vadd.f32 %v2092, %v2156
      %v2158 = vpop.f32.mrb[0].mxu0
      %v2159 = vpop.f32.mrb[0].mxu0
      %v2160 = vadd.f32 %v2095, %v2159
      %v2161 = vpop.f32.mrb[0].mxu0
      %2162 = vmatprep.mubr.bf16.mxu0 %v1331
      %2163 = vmatmul.mubr.bf16.gmra.mrb[0].mxu0 %v1330
      %v2164 = vpop.f32.mrb[0].mxu0
      %v2165 = vadd.f32 %v2100, %v2164
      %v2166 = vpop.f32.mrb[0].mxu0
      %v2167 = vpop.f32.mrb[0].mxu0
      %v2168 = vadd.f32 %v2103, %v2167
      %v2169 = vpop.f32.mrb[0].mxu0
      %2170 = vmatprep.mubr.bf16.mxu0 %v1340
      %2171 = vmatmul.mubr.bf16.gmra.mrb[0].mxu0 %v1339
      %v2172 = vpop.f32.mrb[0].mxu0
      %v2173 = vadd.f32 %v2108, %v2172
      %v2174 = vpop.f32.mrb[0].mxu0
      %v2175 = vpop.f32.mrb[0].mxu0
      %v2176 = vadd.f32 %v2111, %v2175
      %v2177 = vpop.f32.mrb[0].mxu0
      %2178 = vmatprep.mubr.bf16.mxu0 %v1349
      %2179 = vmatmul.mubr.bf16.gmra.mrb[0].mxu0 %v1348
      %v2180 = vpop.f32.mrb[0].mxu0
      %v2181 = vadd.f32 %v2116, %v2180
      %v2182 = vpop.f32.mrb[0].mxu0
      %v2183 = vpop.f32.mrb[0].mxu0
      %v2184 = vadd.f32 %v2119, %v2183
      %v2185 = vpop.f32.mrb[0].mxu0
      %2186 = vdwg.mxu0
      %2187 = vmatprep.subr.bf16.mxu0 0
      %2188 = vmatpush1.bf16.msra.mxu0 %v1847
      %2189 = vmatprep.subr.bf16.mxu0 0
      %2190 = vmatpush1.bf16.msra.mxu0 %v1848
      %2191 = vmatprep.subr.bf16.mxu0 0
      %2192 = vmatpush1.bf16.msra.mxu0 %v1849
      %2193 = vmatprep.subr.bf16.mxu0 0
      %2194 = vmatpush1.bf16.msra.mxu0 %v1850
      %2195 = vmatprep.subr.bf16.mxu0 0
      %2196 = vmatpush1.bf16.msra.mxu0 %v1851
      %2197 = vmatprep.subr.bf16.mxu0 0
      %2198 = vmatpush1.bf16.msra.mxu0 %v1852
      %2199 = vmatprep.subr.bf16.mxu0 0
      %2200 = vmatpush1.bf16.msra.mxu0 %v1853
      %2201 = vmatprep.subr.bf16.mxu0 0
      %2202 = vmatpush1.bf16.msra.mxu0 %v1854
      %2203 = vmatprep.subr.bf16.mxu0 0
      %2204 = vmatpush1.bf16.msra.mxu0 0
      %2205 = vmatprep.subr.bf16.mxu0 0
      %2206 = vmatpush1.bf16.msra.mxu0 0
      %2207 = vmatprep.subr.bf16.mxu0 0
      %2208 = vmatpush1.bf16.msra.mxu0 0
      %2209 = vmatprep.subr.bf16.mxu0 0
      %2210 = vmatpush1.bf16.msra.mxu0 0
      %2211 = vmatprep.subr.bf16.mxu0 0
      %2212 = vmatpush1.bf16.msra.mxu0 0
      %2213 = vmatprep.subr.bf16.mxu0 0
      %2214 = vmatpush1.bf16.msra.mxu0 0
      %2215 = vmatprep.subr.bf16.mxu0 0
      %2216 = vmatpush1.bf16.msra.mxu0 0
      %2217 = vmatprep.subr.bf16.mxu0 0
      %2218 = vmatpush1.bf16.msra.mxu0 0
      %2219 = vmatprep.mubr.bf16.mxu0 0
      %2220 = vmatmul.mubr.bf16.gmra.mrb[0].mxu0 %v1323
      %v2221 = vpop.f32.mrb[0].mxu0
      %v2222 = vadd.f32 %v2157, %v2221
      %v2223 = vpop.f32.mrb[0].mxu0
      %v2224 = vpop.f32.mrb[0].mxu0
      %v2225 = vadd.f32 %v2160, %v2224
      %v2226 = vpop.f32.mrb[0].mxu0
      %2227 = vmatprep.mubr.bf16.mxu0 0
      %2228 = vmatmul.mubr.bf16.gmra.mrb[0].mxu0 %v1332
      %v2229 = vpop.f32.mrb[0].mxu0
      %v2230 = vadd.f32 %v2165, %v2229
      %v2231 = vpop.f32.mrb[0].mxu0
      %v2232 = vpop.f32.mrb[0].mxu0
      %v2233 = vadd.f32 %v2168, %v2232
      %v2234 = vpop.f32.mrb[0].mxu0
      %2235 = vmatprep.mubr.bf16.mxu0 0
      %2236 = vmatmul.mubr.bf16.gmra.mrb[0].mxu0 %v1341
      %v2237 = vpop.f32.mrb[0].mxu0
      %v2238 = vadd.f32 %v2173, %v2237
      %v2239 = vpop.f32.mrb[0].mxu0
      %v2240 = vpop.f32.mrb[0].mxu0
      %v2241 = vadd.f32 %v2176, %v2240
      %v2242 = vpop.f32.mrb[0].mxu0
      %2243 = vmatprep.mubr.bf16.mxu0 0
      %2244 = vmatmul.mubr.bf16.gmra.mrb[0].mxu0 %v1350
      %v2245 = vpop.f32.mrb[0].mxu0
      %v2246 = vadd.f32 %v2181, %v2245
      %v2247 = vpop.f32.mrb[0].mxu0
      %v2248 = vpop.f32.mrb[0].mxu0
      %v2249 = vadd.f32 %v2184, %v2248
      %v2250 = vpop.f32.mrb[0].mxu0
      %2251 = vdwg.mxu0
      %2252 = vst [vmem:[%s231] sm:$0xff] %v2222
      %2253 = vst [vmem:[%s231 + $0x8] sm:$0xff] %v2225
      %2254 = vst [vmem:[%s231 + $0x10] sm:$0xff] %v2230
      %2255 = vst [vmem:[%s231 + $0x18] sm:$0xff] %v2233
      %2256 = vst [vmem:[%s231 + $0x20] sm:$0xff] %v2238
      %2257 = vst [vmem:[%s231 + $0x28] sm:$0xff] %v2241
      %2258 = vst [vmem:[%s231 + $0x30] sm:$0xff] %v2246
      %2259 = vst [vmem:[%s231 + $0x38] sm:$0xff] %v2249
      %v2260 = vadd.f32 %v2222, %v2225
      %v2261 = vadd.f32 %v2260, %v2230
      %v2262 = vadd.f32 %v2261, %v2233
      %v2263 = vadd.f32 %v2262, %v2238
      %v2264 = vadd.f32 %v2263, %v2241
      %v2265 = vadd.f32 %v2264, %v2246
      %v2266 = vadd.f32 %v2265, %v2249
      %v2267 = vrot.slane %v2266, 4
      %v2268 = vadd.f32 %v2266, %v2267
      %v2269 = vrot.slane %v2268, 2
      %v2270 = vadd.f32 %v2268, %v2269
      %v2271 = vrot.slane %v2270, 1
      %v2272 = vadd.f32 %v2270, %v2271
      %2273 = vst [vmem:[%s235] sm:$0x1] %v2272
      %v2274 = vmul.f32 %v2222, %v2222
      %v2275 = vmul.f32 %v2225, %v2225
      %v2276 = vmul.f32 %v2230, %v2230
      %v2277 = vmul.f32 %v2233, %v2233
      %v2278 = vmul.f32 %v2238, %v2238
      %v2279 = vmul.f32 %v2241, %v2241
      %v2280 = vmul.f32 %v2246, %v2246
      %v2281 = vmul.f32 %v2249, %v2249
      %v2282 = vadd.f32 %v2274, %v2275
      %v2283 = vadd.f32 %v2282, %v2276
      %v2284 = vadd.f32 %v2283, %v2277
      %v2285 = vadd.f32 %v2284, %v2278
      %v2286 = vadd.f32 %v2285, %v2279
      %v2287 = vadd.f32 %v2286, %v2280
      %v2288 = vadd.f32 %v2287, %v2281
      %v2289 = vrot.slane %v2288, 4
      %v2290 = vadd.f32 %v2288, %v2289
      %v2291 = vrot.slane %v2290, 2
      %v2292 = vadd.f32 %v2290, %v2291
      %v2293 = vrot.slane %v2292, 1
      %v2294 = vadd.f32 %v2292, %v2293
      %2295 = vst [vmem:[%s235 + $0x1] sm:$0x1] %v2294
      %p2296 = scmp.lt.s32.totalorder %s17, 1
      %s2297 = scalar_select %p2296, %s17, 1
      %s2298 = smul.addr %s2297, 8
      %s2299 = smul.addr %s2298, 8
      %s2300 = scalar_lea.vmem %s4, %s2299
      %p2301 = scmp.lt.s32.totalorder %s17, 1
      %s2302 = scalar_select %p2301, %s17, 1
      %s2303 = smul.addr %s2302, 2
      %s2304 = scalar_lea.vmem %s5, %s2303
      // Predicated region
      $region37: #{residual_block_pallas.4} parent=35 // pred_check
        %p2305 = pneg %p124
      $region38: #{residual_block_pallas.4} parent=35 // pred_check_branch
        %2307 = sbr.rel (%p2305) target = $region40
      $region39: #{residual_block_pallas.4} parent=35 // pred_region
        _
      $region40: #{residual_block_pallas.4} parent=35 // pred_fallthru
        _
      // Predicated region
      $region41: #{residual_block_pallas.4} parent=35 // pred_check
        %p2308 = pneg %p150
      $region42: #{residual_block_pallas.4} parent=35 // pred_check_branch
        %2310 = sbr.rel (%p2308) target = $region44
      $region43: #{residual_block_pallas.4} parent=35 // pred_region
        _
      $region44: #{residual_block_pallas.4} parent=35 // pred_fallthru
        _
    $region36: #{residual_block_pallas.4} parent=5 // pred_fallthru
      _
    %p2311 = scmp.le.s32.totalorder 2, %s12
    // Predicated region
    $region45: #{residual_block_pallas.4} parent=5 // pred_check
      %p2312 = pneg %p2311
    $region46: #{residual_block_pallas.4} parent=5 // pred_check_branch
      %2314 = sbr.rel (%p2312) target = $region48
    $region47: #{residual_block_pallas.4} parent=5 // pred_region
      %s2315 = ssub.s32 %s12, 2
      // Predicated region
      $region49: #{residual_block_pallas.4} parent=47 // pred_check
        %p2316 = pneg %p130
      $region50: #{residual_block_pallas.4} parent=47 // pred_check_branch
        %2318 = sbr.rel (%p2316) target = $region52
      $region51: #{residual_block_pallas.4} parent=47 // pred_region
        %p2319 = scmp.lt.s32.totalorder %s18, 1
        %s2320 = scalar_select %p2319, %s18, 1
        %s2321 = smul.addr %s2320, 8
        %s2322 = smul.addr %s2321, 8
        %s2323 = scalar_lea.vmem %s4, %s2322
      $region52: #{residual_block_pallas.4} parent=47 // pred_fallthru
        _
      // Predicated region
      $region53: #{residual_block_pallas.4} parent=47 // pred_check
        %p2324 = pneg %p156
      $region54: #{residual_block_pallas.4} parent=47 // pred_check_branch
        %2326 = sbr.rel (%p2324) target = $region56
      $region55: #{residual_block_pallas.4} parent=47 // pred_region
        %p2327 = scmp.lt.s32.totalorder %s18, 1
        %s2328 = scalar_select %p2327, %s18, 1
        %s2329 = smul.addr %s2328, 2
        %s2330 = scalar_lea.vmem %s5, %s2329
      $region56: #{residual_block_pallas.4} parent=47 // pred_fallthru
        _
    $region48: #{residual_block_pallas.4} parent=5 // pred_fallthru
      _
  $region6: #{residual_block_pallas.4} parent=0 // loop_footer
    %s16 = sadd.s32 1, %s12
  $region7: #{residual_block_pallas.4} parent=0 // loop_footer_branch
    %11 = sbr.rel target = $region3
  $region8: #{residual_block_pallas.4} parent=0 // loop_exit
    _

// kernel: residual_block_pallas.3
$region0: #{residual_block_pallas.3}
  #allocation0 [shape = 'u32[]', space=smem, size = 0x4, offset = 0x4, fixed_abs, tag = 'smem constant byte address 0x4 - core index']
  #allocation1 [shape = 'u32[144,128]{1,0:T(1,128)}', space=vmem, size = 0x12000, scoped, tag = 'internal scratch']
  #allocation2 [shape = 'bf16[64,1152]{1,0:T(16,128)(2,1)}', space=vmem, size = 0x24000, scoped, tag = 'scratch operand']
  %s0 = inlined_call_operand.vmem [shape: bf16[4,2,9,9,128], index: 0, kind: input, shape index: {}]
  %s1 = inlined_call_operand.vmem [shape: bf16[1152,128], index: 1, kind: input, shape index: {}]
  %s2 = inlined_call_operand.vmem [shape: bf16[128,128], index: 2, kind: input, shape index: {}]
  %s3 = inlined_call_operand.vmem [shape: f32[2,8,8,128], index: 3, kind: output, shape index: {0}]
  %s4 = inlined_call_operand.vmem [shape: f32[2,8,8,128], index: 4, kind: output, shape index: {1}]
  %s5 = inlined_call_operand.vmem [shape: f32[2,4,128], index: 5, kind: output, shape index: {2}]
  %6 = xla_tuple %s3, %s4, %s5
  %s7 = sld [smem:[#allocation0]]
  $region102: #{residual_block_pallas.3} parent=0
    _
  %s9 = ssub.s32 1, %s7
  %s10 = scalar_select 0, %s9, %s7
  $region1: #{residual_block_pallas.3} parent=0
    #allocation3 [shape = 'u8[294912]{0}', space=vmem, size = 0x48000, scoped, tag = 'input window, operand 0']
    loop: start=0, step=1, limit=4
    $region2: #{residual_block_pallas.3} parent=1 // loop_pre_header
      _
    $region3: #{residual_block_pallas.3} parent=1 // loop_header
      %s12 = sphi 0, %s16
      %p13 = scmp.ge.s32.totalorder %s12, 4
      %s22 = sphi 0, %s24
      %s25 = sphi 0, %s22
      %s26 = sphi 0, %s25
      %s42 = sphi 0, %s26
      %s46 = sphi 0, %s46
      %s48 = sphi 0, %s46
      %s49 = sphi 0, %s48
      %s63 = sphi 0, %s49
      %s67 = sphi 0, %s67
      %s69 = sphi 0, %s67
      %s70 = sphi 0, %s69
      %s84 = sphi 0, %s70
      %s90 = sphi 0, %s92
      %s93 = sphi 0, %s90
      %s94 = sphi 0, %s93
      %s110 = sphi 0, %s94
      %s116 = sphi 0, %s118
      %s119 = sphi 0, %s116
      %s120 = sphi 0, %s119
      %s136 = sphi 0, %s120
      %s142 = sphi 0, %s144
      %s145 = sphi 0, %s142
      %s146 = sphi 0, %s145
      %s162 = sphi 0, %s146
    $region4: #{residual_block_pallas.3} parent=1 // loop_header_branch
      %15 = sbr.rel (%p13) target = $region8
    $region5: #{residual_block_pallas.3} parent=1 // loop_body
      %s17 = ssub.s32 %s12, 1
      %s18 = ssub.s32 %s12, 2
      %s19 = sadd.s32 %s12, 1
      %s20 = ssub.s32 %s12, %s19
      %p21 = scmp.eq.s32.totalorder %s20, 0
      %s23 = sadd.s32 %s22, 1
      %s24 = scalar_select %p21, %s22, %s23
      %p27 = pneg %p21
      %p28 = scmp.eq.s32.totalorder %s12, 1
      %p29 = por %p27, %p28
      %p30 = scmp.ne.s32.totalorder %s22, %s25
      %p31 = scmp.eq.s32.totalorder %s12, 0
      %p32 = por %p30, %p31
      %p33 = scmp.ne.s32.totalorder %s22, %s25
      %p34 = scmp.eq.s32.totalorder %s17, 1
      %p35 = por %p33, %p34
      %p36 = scmp.ne.s32.totalorder %s25, %s26
      %p37 = scmp.eq.s32.totalorder %s17, 0
      %p38 = por %p36, %p37
      %p39 = scmp.ne.s32.totalorder %s25, %s26
      %p40 = scmp.eq.s32.totalorder %s18, 1
      %p41 = por %p39, %p40
      %p43 = scmp.ne.s32.totalorder %s26, %s42
      %p44 = scmp.eq.s32.totalorder %s18, 0
      %p45 = por %p43, %p44
      %s47 = sadd.s32 %s46, 1
      %p50 = scmp.eq.s32.totalorder %s12, 1
      %p51 = scmp.ne.s32.totalorder %s46, %s48
      %p52 = scmp.eq.s32.totalorder %s12, 0
      %p53 = por %p51, %p52
      %p54 = scmp.ne.s32.totalorder %s46, %s48
      %p55 = scmp.eq.s32.totalorder %s17, 1
      %p56 = por %p54, %p55
      %p57 = scmp.ne.s32.totalorder %s48, %s49
      %p58 = scmp.eq.s32.totalorder %s17, 0
      %p59 = por %p57, %p58
      %p60 = scmp.ne.s32.totalorder %s48, %s49
      %p61 = scmp.eq.s32.totalorder %s18, 1
      %p62 = por %p60, %p61
      %p64 = scmp.ne.s32.totalorder %s49, %s63
      %p65 = scmp.eq.s32.totalorder %s18, 0
      %p66 = por %p64, %p65
      %s68 = sadd.s32 %s67, 1
      %p71 = scmp.eq.s32.totalorder %s12, 1
      %p72 = scmp.ne.s32.totalorder %s67, %s69
      %p73 = scmp.eq.s32.totalorder %s12, 0
      %p74 = por %p72, %p73
      %p75 = scmp.ne.s32.totalorder %s67, %s69
      %p76 = scmp.eq.s32.totalorder %s17, 1
      %p77 = por %p75, %p76
      %p78 = scmp.ne.s32.totalorder %s69, %s70
      %p79 = scmp.eq.s32.totalorder %s17, 0
      %p80 = por %p78, %p79
      %p81 = scmp.ne.s32.totalorder %s69, %s70
      %p82 = scmp.eq.s32.totalorder %s18, 1
      %p83 = por %p81, %p82
      %p85 = scmp.ne.s32.totalorder %s70, %s84
      %p86 = scmp.eq.s32.totalorder %s18, 0
      %p87 = por %p85, %p86
      %s88 = ssub.s32 %s12, %s19
      %p89 = scmp.eq.s32.totalorder %s88, 0
      %s91 = sadd.s32 %s90, 1
      %s92 = scalar_select %p89, %s90, %s91
      %p95 = pneg %p89
      %p96 = scmp.eq.s32.totalorder %s12, 1
      %p97 = por %p95, %p96
      %p98 = scmp.ne.s32.totalorder %s90, %s93
      %p99 = scmp.eq.s32.totalorder %s12, 0
      %p100 = por %p98, %p99
      %p101 = scmp.ne.s32.totalorder %s90, %s93
      %p102 = scmp.eq.s32.totalorder %s17, 1
      %p103 = por %p101, %p102
      %p104 = scmp.ne.s32.totalorder %s93, %s94
      %p105 = scmp.eq.s32.totalorder %s17, 0
      %p106 = por %p104, %p105
      %p107 = scmp.ne.s32.totalorder %s93, %s94
      %p108 = scmp.eq.s32.totalorder %s18, 1
      %p109 = por %p107, %p108
      %p111 = scmp.ne.s32.totalorder %s94, %s110
      %p112 = scmp.eq.s32.totalorder %s18, 0
      %p113 = por %p111, %p112
      %s114 = ssub.s32 %s12, %s19
      %p115 = scmp.eq.s32.totalorder %s114, 0
      %s117 = sadd.s32 %s116, 1
      %s118 = scalar_select %p115, %s116, %s117
      %p121 = pneg %p115
      %p122 = scmp.eq.s32.totalorder %s12, 1
      %p123 = por %p121, %p122
      %p124 = scmp.ne.s32.totalorder %s116, %s119
      %p125 = scmp.eq.s32.totalorder %s12, 0
      %p126 = por %p124, %p125
      %p127 = scmp.ne.s32.totalorder %s116, %s119
      %p128 = scmp.eq.s32.totalorder %s17, 1
      %p129 = por %p127, %p128
      %p130 = scmp.ne.s32.totalorder %s119, %s120
      %p131 = scmp.eq.s32.totalorder %s17, 0
      %p132 = por %p130, %p131
      %p133 = scmp.ne.s32.totalorder %s119, %s120
      %p134 = scmp.eq.s32.totalorder %s18, 1
      %p135 = por %p133, %p134
      %p137 = scmp.ne.s32.totalorder %s120, %s136
      %p138 = scmp.eq.s32.totalorder %s18, 0
      %p139 = por %p137, %p138
      %s140 = ssub.s32 %s12, %s19
      %p141 = scmp.eq.s32.totalorder %s140, 0
      %s143 = sadd.s32 %s142, 1
      %s144 = scalar_select %p141, %s142, %s143
      %p147 = pneg %p141
      %p148 = scmp.eq.s32.totalorder %s12, 1
      %p149 = por %p147, %p148
      %p150 = scmp.ne.s32.totalorder %s142, %s145
      %p151 = scmp.eq.s32.totalorder %s12, 0
      %p152 = por %p150, %p151
      %p153 = scmp.ne.s32.totalorder %s142, %s145
      %p154 = scmp.eq.s32.totalorder %s17, 1
      %p155 = por %p153, %p154
      %p156 = scmp.ne.s32.totalorder %s145, %s146
      %p157 = scmp.eq.s32.totalorder %s17, 0
      %p158 = por %p156, %p157
      %p159 = scmp.ne.s32.totalorder %s145, %s146
      %p160 = scmp.eq.s32.totalorder %s18, 1
      %p161 = por %p159, %p160
      %p163 = scmp.ne.s32.totalorder %s146, %s162
      %p164 = scmp.eq.s32.totalorder %s18, 0
      %p165 = por %p163, %p164
      %p166 = scmp.le.s32.totalorder 1, %s12
      %p167 = scmp.lt.s32.totalorder %s12, 3
      %p168 = pnand %p166, %p167
      %p169 = pneg %p168
      // Predicated region
      $region9: #{residual_block_pallas.3} parent=5 // pred_check
        _
      $region10: #{residual_block_pallas.3} parent=5 // pred_check_branch
        %171 = sbr.rel (%p168) target = $region12
      $region11: #{residual_block_pallas.3} parent=5 // pred_region
        %s172 = ssub.s32 %s12, 1
        // Predicated region
        $region13: #{residual_block_pallas.3} parent=11 // pred_check
          %p173 = pneg %p59
        $region14: #{residual_block_pallas.3} parent=11 // pred_check_branch
          %175 = sbr.rel (%p173) target = $region16
        $region15: #{residual_block_pallas.3} parent=11 // pred_region
          _
        $region16: #{residual_block_pallas.3} parent=11 // pred_fallthru
          _
        // Predicated region
        $region17: #{residual_block_pallas.3} parent=11 // pred_check
          %p176 = pneg %p80
        $region18: #{residual_block_pallas.3} parent=11 // pred_check_branch
          %178 = sbr.rel (%p176) target = $region20
        $region19: #{residual_block_pallas.3} parent=11 // pred_region
          _
        $region20: #{residual_block_pallas.3} parent=11 // pred_fallthru
          _
      $region12: #{residual_block_pallas.3} parent=5 // pred_fallthru
        _
      %p179 = scmp.lt.s32.totalorder %s12, 2
      // Predicated region
      $region21: #{residual_block_pallas.3} parent=5 // pred_check
        %p180 = pneg %p179
      $region22: #{residual_block_pallas.3} parent=5 // pred_check_branch
        %182 = sbr.rel (%p180) target = $region24
      $region23: #{residual_block_pallas.3} parent=5 // pred_region
        // Predicated region
        $region25: #{residual_block_pallas.3} parent=23 // pred_check
          %p183 = pneg %p32
        $region26: #{residual_block_pallas.3} parent=23 // pred_check_branch
          %185 = sbr.rel (%p183) target = $region28
        $region27: #{residual_block_pallas.3} parent=23 // pred_region
          %s186 = sand.u32 %s22, 1
          %s187 = sand.u32 %s22, 1
          %s188 = smul.addr %s187, 288
          %s189 = scalar_lea.vmem [#allocation3], %s188
          %s190 = smul.addr %s12, 18
          %s191 = smul.addr %s190, 4
          %s192 = scalar_lea.vmem %s0, %s191
          // Predicated region
          $region29: #{residual_block_pallas.3} parent=27 // pred_check
            _
          $region30: #{residual_block_pallas.3} parent=27 // pred_check_branch
            %194 = sbr.rel (0) target = $region32
          $region31: #{residual_block_pallas.3} parent=27 // pred_region
            // Predicated region
            $region33: #{residual_block_pallas.3} parent=31 // pred_check
              _
            $region34: #{residual_block_pallas.3} parent=31 // pred_check_branch
              %196 = sbr.rel target = $region36
            $region35: #{residual_block_pallas.3} parent=31 // pred_region
              // Predicated region
              $region48: #{residual_block_pallas.3} parent=35 // pred_check
                _
              $region49: #{residual_block_pallas.3} parent=35 // pred_check_branch
                %353 = sbr.rel (0) target = $region51
              $region50: #{residual_block_pallas.3} parent=35 // pred_region
                loop: start=0, step=1, limit=1
                $region52: #{residual_block_pallas.3} parent=50 // loop_pre_header
                  _
                $region53: #{residual_block_pallas.3} parent=50 // loop_header
                  %s355 = sphi 0, %s359
                  %p356 = scmp.ge.s32.totalorder %s355, 1
                  %s360 = sphi %s192, %s192
                  %s361 = sphi %s189, %s189
                $region54: #{residual_block_pallas.3} parent=50 // loop_header_branch
                  %358 = sbr.rel (%p356) target = $region58
                $region55: #{residual_block_pallas.3} parent=50 // loop_body
                  _
                $region56: #{residual_block_pallas.3} parent=50 // loop_footer
                  %s359 = sadd.s32 1, %s355
                $region57: #{residual_block_pallas.3} parent=50 // loop_footer_branch
                  %354 = sbr.rel target = $region53
                $region58: #{residual_block_pallas.3} parent=50 // loop_exit
                  _
                loop: start=0, step=1, limit=1
                $region59: #{residual_block_pallas.3} parent=50 // loop_pre_header
                  _
                $region60: #{residual_block_pallas.3} parent=50 // loop_header
                  %s364 = sphi 0, %s368
                  %p365 = scmp.ge.s32.totalorder %s364, 1
                  %s369 = sphi %s192, %s192
                  %s370 = sphi %s189, %s189
                $region61: #{residual_block_pallas.3} parent=50 // loop_header_branch
                  %367 = sbr.rel (%p365) target = $region65
                $region62: #{residual_block_pallas.3} parent=50 // loop_body
                  %v371 = vld [vmem:[%s369] sm:$0xf]
                  %372 = vst [vmem:[%s370] sm:$0xf] %v371
                  %v373 = vld [vmem:[%s369 + $0x4] sm:$0xf]
                  %374 = vst [vmem:[%s370 + $0x4] sm:$0xf] %v373
                  %v375 = vld [vmem:[%s369 + $0x8] sm:$0xf]
                  %376 = vst [vmem:[%s370 + $0x8] sm:$0xf] %v375
                  %v377 = vld [vmem:[%s369 + $0xc] sm:$0xf]
                  %378 = vst [vmem:[%s370 + $0xc] sm:$0xf] %v377
                  %v379 = vld [vmem:[%s369 + $0x10] sm:$0xf]
                  %380 = vst [vmem:[%s370 + $0x10] sm:$0xf] %v379
                  %v381 = vld [vmem:[%s369 + $0x14] sm:$0xf]
                  %382 = vst [vmem:[%s370 + $0x14] sm:$0xf] %v381
                  %v383 = vld [vmem:[%s369 + $0x18] sm:$0xf]
                  %384 = vst [vmem:[%s370 + $0x18] sm:$0xf] %v383
                  %v385 = vld [vmem:[%s369 + $0x1c] sm:$0xf]
                  %386 = vst [vmem:[%s370 + $0x1c] sm:$0xf] %v385
                  %v387 = vld [vmem:[%s369 + $0x20] sm:$0xf]
                  %388 = vst [vmem:[%s370 + $0x20] sm:$0xf] %v387
                  %v389 = vld [vmem:[%s369 + $0x24] sm:$0xf]
                  %390 = vst [vmem:[%s370 + $0x24] sm:$0xf] %v389
                  %v391 = vld [vmem:[%s369 + $0x28] sm:$0xf]
                  %392 = vst [vmem:[%s370 + $0x28] sm:$0xf] %v391
                  %v393 = vld [vmem:[%s369 + $0x2c] sm:$0xf]
                  %394 = vst [vmem:[%s370 + $0x2c] sm:$0xf] %v393
                  %v395 = vld [vmem:[%s369 + $0x30] sm:$0xf]
                  %396 = vst [vmem:[%s370 + $0x30] sm:$0xf] %v395
                  %v397 = vld [vmem:[%s369 + $0x34] sm:$0xf]
                  %398 = vst [vmem:[%s370 + $0x34] sm:$0xf] %v397
                  %v399 = vld [vmem:[%s369 + $0x38] sm:$0xf]
                  %400 = vst [vmem:[%s370 + $0x38] sm:$0xf] %v399
                  %v401 = vld [vmem:[%s369 + $0x3c] sm:$0xf]
                  %402 = vst [vmem:[%s370 + $0x3c] sm:$0xf] %v401
                  %v403 = vld [vmem:[%s369 + $0x40] sm:$0xf]
                  %404 = vst [vmem:[%s370 + $0x40] sm:$0xf] %v403
                  %v405 = vld [vmem:[%s369 + $0x44] sm:$0xf]
                  %406 = vst [vmem:[%s370 + $0x44] sm:$0xf] %v405
                  %v407 = vld [vmem:[%s369 + $0x90] sm:$0xf]
                  %408 = vst [vmem:[%s370 + $0x48] sm:$0xf] %v407
                  %v409 = vld [vmem:[%s369 + $0x94] sm:$0xf]
                  %410 = vst [vmem:[%s370 + $0x4c] sm:$0xf] %v409
                  %v411 = vld [vmem:[%s369 + $0x98] sm:$0xf]
                  %412 = vst [vmem:[%s370 + $0x50] sm:$0xf] %v411
                  %v413 = vld [vmem:[%s369 + $0x9c] sm:$0xf]
                  %414 = vst [vmem:[%s370 + $0x54] sm:$0xf] %v413
                  %v415 = vld [vmem:[%s369 + $0xa0] sm:$0xf]
                  %416 = vst [vmem:[%s370 + $0x58] sm:$0xf] %v415
                  %v417 = vld [vmem:[%s369 + $0xa4] sm:$0xf]
                  %418 = vst [vmem:[%s370 + $0x5c] sm:$0xf] %v417
                  %v419 = vld [vmem:[%s369 + $0xa8] sm:$0xf]
                  %420 = vst [vmem:[%s370 + $0x60] sm:$0xf] %v419
                  %v421 = vld [vmem:[%s369 + $0xac] sm:$0xf]
                  %422 = vst [vmem:[%s370 + $0x64] sm:$0xf] %v421
                  %v423 = vld [vmem:[%s369 + $0xb0] sm:$0xf]
                  %424 = vst [vmem:[%s370 + $0x68] sm:$0xf] %v423
                  %v425 = vld [vmem:[%s369 + $0xb4] sm:$0xf]
                  %426 = vst [vmem:[%s370 + $0x6c] sm:$0xf] %v425
                  %v427 = vld [vmem:[%s369 + $0xb8] sm:$0xf]
                  %428 = vst [vmem:[%s370 + $0x70] sm:$0xf] %v427
                  %v429 = vld [vmem:[%s369 + $0xbc] sm:$0xf]
                  %430 = vst [vmem:[%s370 + $0x74] sm:$0xf] %v429
                  %v431 = vld [vmem:[%s369 + $0xc0] sm:$0xf]
                  %432 = vst [vmem:[%s370 + $0x78] sm:$0xf] %v431
                  %v433 = vld [vmem:[%s369 + $0xc4] sm:$0xf]
                  %434 = vst [vmem:[%s370 + $0x7c] sm:$0xf] %v433
                  %v435 = vld [vmem:[%s369 + $0xc8] sm:$0xf]
                  %436 = vst [vmem:[%s370 + $0x80] sm:$0xf] %v435
                  %v437 = vld [vmem:[%s369 + $0xcc] sm:$0xf]
                  %438 = vst [vmem:[%s370 + $0x84] sm:$0xf] %v437
                  %v439 = vld [vmem:[%s369 + $0xd0] sm:$0xf]
                  %440 = vst [vmem:[%s370 + $0x88] sm:$0xf] %v439
                  %v441 = vld [vmem:[%s369 + $0xd4] sm:$0xf]
                  %442 = vst [vmem:[%s370 + $0x8c] sm:$0xf] %v441
                  %v443 = vld [vmem:[%s369 + $0x120] sm:$0xf]
                  %444 = vst [vmem:[%s370 + $0x90] sm:$0xf] %v443
                  %v445 = vld [vmem:[%s369 + $0x124] sm:$0xf]
                  %446 = vst [vmem:[%s370 + $0x94] sm:$0xf] %v445
                  %v447 = vld [vmem:[%s369 + $0x128] sm:$0xf]
                  %448 = vst [vmem:[%s370 + $0x98] sm:$0xf] %v447
                  %v449 = vld [vmem:[%s369 + $0x12c] sm:$0xf]
                  %450 = vst [vmem:[%s370 + $0x9c] sm:$0xf] %v449
                  %v451 = vld [vmem:[%s369 + $0x130] sm:$0xf]
                  %452 = vst [vmem:[%s370 + $0xa0] sm:$0xf] %v451
                  %v453 = vld [vmem:[%s369 + $0x134] sm:$0xf]
                  %454 = vst [vmem:[%s370 + $0xa4] sm:$0xf] %v453
                  %v455 = vld [vmem:[%s369 + $0x138] sm:$0xf]
                  %456 = vst [vmem:[%s370 + $0xa8] sm:$0xf] %v455
                  %v457 = vld [vmem:[%s369 + $0x13c] sm:$0xf]
                  %458 = vst [vmem:[%s370 + $0xac] sm:$0xf] %v457
                  %v459 = vld [vmem:[%s369 + $0x140] sm:$0xf]
                  %460 = vst [vmem:[%s370 + $0xb0] sm:$0xf] %v459
                  %v461 = vld [vmem:[%s369 + $0x144] sm:$0xf]
                  %462 = vst [vmem:[%s370 + $0xb4] sm:$0xf] %v461
                  %v463 = vld [vmem:[%s369 + $0x148] sm:$0xf]
                  %464 = vst [vmem:[%s370 + $0xb8] sm:$0xf] %v463
                  %v465 = vld [vmem:[%s369 + $0x14c] sm:$0xf]
                  %466 = vst [vmem:[%s370 + $0xbc] sm:$0xf] %v465
                  %v467 = vld [vmem:[%s369 + $0x150] sm:$0xf]
                  %468 = vst [vmem:[%s370 + $0xc0] sm:$0xf] %v467
                  %v469 = vld [vmem:[%s369 + $0x154] sm:$0xf]
                  %470 = vst [vmem:[%s370 + $0xc4] sm:$0xf] %v469
                  %v471 = vld [vmem:[%s369 + $0x158] sm:$0xf]
                  %472 = vst [vmem:[%s370 + $0xc8] sm:$0xf] %v471
                  %v473 = vld [vmem:[%s369 + $0x15c] sm:$0xf]
                  %474 = vst [vmem:[%s370 + $0xcc] sm:$0xf] %v473
                  %v475 = vld [vmem:[%s369 + $0x160] sm:$0xf]
                  %476 = vst [vmem:[%s370 + $0xd0] sm:$0xf] %v475
                  %v477 = vld [vmem:[%s369 + $0x164] sm:$0xf]
                  %478 = vst [vmem:[%s370 + $0xd4] sm:$0xf] %v477
                  %v479 = vld [vmem:[%s369 + $0x1b0] sm:$0xf]
                  %480 = vst [vmem:[%s370 + $0xd8] sm:$0xf] %v479
                  %v481 = vld [vmem:[%s369 + $0x1b4] sm:$0xf]
                  %482 = vst [vmem:[%s370 + $0xdc] sm:$0xf] %v481
                  %v483 = vld [vmem:[%s369 + $0x1b8] sm:$0xf]
                  %484 = vst [vmem:[%s370 + $0xe0] sm:$0xf] %v483
                  %v485 = vld [vmem:[%s369 + $0x1bc] sm:$0xf]
                  %486 = vst [vmem:[%s370 + $0xe4] sm:$0xf] %v485
                  %v487 = vld [vmem:[%s369 + $0x1c0] sm:$0xf]
                  %488 = vst [vmem:[%s370 + $0xe8] sm:$0xf] %v487
                  %v489 = vld [vmem:[%s369 + $0x1c4] sm:$0xf]
                  %490 = vst [vmem:[%s370 + $0xec] sm:$0xf] %v489
                  %v491 = vld [vmem:[%s369 + $0x1c8] sm:$0xf]
                  %492 = vst [vmem:[%s370 + $0xf0] sm:$0xf] %v491
                  %v493 = vld [vmem:[%s369 + $0x1cc] sm:$0xf]
                  %494 = vst [vmem:[%s370 + $0xf4] sm:$0xf] %v493
                  %v495 = vld [vmem:[%s369 + $0x1d0] sm:$0xf]
                  %496 = vst [vmem:[%s370 + $0xf8] sm:$0xf] %v495
                  %v497 = vld [vmem:[%s369 + $0x1d4] sm:$0xf]
                  %498 = vst [vmem:[%s370 + $0xfc] sm:$0xf] %v497
                  %v499 = vld [vmem:[%s369 + $0x1d8] sm:$0xf]
                  %500 = vst [vmem:[%s370 + $0x100] sm:$0xf] %v499
                  %v501 = vld [vmem:[%s369 + $0x1dc] sm:$0xf]
                  %502 = vst [vmem:[%s370 + $0x104] sm:$0xf] %v501
                  %v503 = vld [vmem:[%s369 + $0x1e0] sm:$0xf]
                  %504 = vst [vmem:[%s370 + $0x108] sm:$0xf] %v503
                  %v505 = vld [vmem:[%s369 + $0x1e4] sm:$0xf]
                  %506 = vst [vmem:[%s370 + $0x10c] sm:$0xf] %v505
                  %v507 = vld [vmem:[%s369 + $0x1e8] sm:$0xf]
                  %508 = vst [vmem:[%s370 + $0x110] sm:$0xf] %v507
                  %v509 = vld [vmem:[%s369 + $0x1ec] sm:$0xf]
                  %510 = vst [vmem:[%s370 + $0x114] sm:$0xf] %v509
                  %v511 = vld [vmem:[%s369 + $0x1f0] sm:$0xf]
                  %512 = vst [vmem:[%s370 + $0x118] sm:$0xf] %v511
                  %v513 = vld [vmem:[%s369 + $0x1f4] sm:$0xf]
                  %514 = vst [vmem:[%s370 + $0x11c] sm:$0xf] %v513
                $region63: #{residual_block_pallas.3} parent=50 // loop_footer
                  %s368 = sadd.s32 1, %s364
                $region64: #{residual_block_pallas.3} parent=50 // loop_footer_branch
                  %363 = sbr.rel target = $region60
                $region65: #{residual_block_pallas.3} parent=50 // loop_exit
                  _
              $region51: #{residual_block_pallas.3} parent=35 // pred_fallthru
                _
            $region36: #{residual_block_pallas.3} parent=31 // pred_fallthru
              _
            // Predicated region
            $region37: #{residual_block_pallas.3} parent=31 // pred_check
              _
            $region38: #{residual_block_pallas.3} parent=31 // pred_check_branch
              %198 = sbr.rel (0) target = $region40
            $region39: #{residual_block_pallas.3} parent=31 // pred_region
              loop: start=0, step=1, limit=1
              $region41: #{residual_block_pallas.3} parent=39 // loop_pre_header
                _
              $region42: #{residual_block_pallas.3} parent=39 // loop_header
                %s201 = sphi 0, %s205
                %p202 = scmp.ge.s32.totalorder %s201, 1
                %s206 = sphi %s192, %s192
                %s207 = sphi %s189, %s189
              $region43: #{residual_block_pallas.3} parent=39 // loop_header_branch
                %204 = sbr.rel (%p202) target = $region47
              $region44: #{residual_block_pallas.3} parent=39 // loop_body
                %v208 = vld [vmem:[%s206] sm:$0xf]
                %209 = vst [vmem:[%s207] sm:$0xf] %v208
                %v210 = vld [vmem:[%s206 + $0x4] sm:$0xf]
                %211 = vst [vmem:[%s207 + $0x4] sm:$0xf] %v210
                %v212 = vld [vmem:[%s206 + $0x8] sm:$0xf]
                %213 = vst [vmem:[%s207 + $0x8] sm:$0xf] %v212
                %v214 = vld [vmem:[%s206 + $0xc] sm:$0xf]
                %215 = vst [vmem:[%s207 + $0xc] sm:$0xf] %v214
                %v216 = vld [vmem:[%s206 + $0x10] sm:$0xf]
                %217 = vst [vmem:[%s207 + $0x10] sm:$0xf] %v216
                %v218 = vld [vmem:[%s206 + $0x14] sm:$0xf]
                %219 = vst [vmem:[%s207 + $0x14] sm:$0xf] %v218
                %v220 = vld [vmem:[%s206 + $0x18] sm:$0xf]
                %221 = vst [vmem:[%s207 + $0x18] sm:$0xf] %v220
                %v222 = vld [vmem:[%s206 + $0x1c] sm:$0xf]
                %223 = vst [vmem:[%s207 + $0x1c] sm:$0xf] %v222
                %v224 = vld [vmem:[%s206 + $0x20] sm:$0xf]
                %225 = vst [vmem:[%s207 + $0x20] sm:$0xf] %v224
                %v226 = vld [vmem:[%s206 + $0x24] sm:$0xf]
                %227 = vst [vmem:[%s207 + $0x24] sm:$0xf] %v226
                %v228 = vld [vmem:[%s206 + $0x28] sm:$0xf]
                %229 = vst [vmem:[%s207 + $0x28] sm:$0xf] %v228
                %v230 = vld [vmem:[%s206 + $0x2c] sm:$0xf]
                %231 = vst [vmem:[%s207 + $0x2c] sm:$0xf] %v230
                %v232 = vld [vmem:[%s206 + $0x30] sm:$0xf]
                %233 = vst [vmem:[%s207 + $0x30] sm:$0xf] %v232
                %v234 = vld [vmem:[%s206 + $0x34] sm:$0xf]
                %235 = vst [vmem:[%s207 + $0x34] sm:$0xf] %v234
                %v236 = vld [vmem:[%s206 + $0x38] sm:$0xf]
                %237 = vst [vmem:[%s207 + $0x38] sm:$0xf] %v236
                %v238 = vld [vmem:[%s206 + $0x3c] sm:$0xf]
                %239 = vst [vmem:[%s207 + $0x3c] sm:$0xf] %v238
                %v240 = vld [vmem:[%s206 + $0x40] sm:$0xf]
                %241 = vst [vmem:[%s207 + $0x40] sm:$0xf] %v240
                %v242 = vld [vmem:[%s206 + $0x44] sm:$0xf]
                %243 = vst [vmem:[%s207 + $0x44] sm:$0xf] %v242
                %v244 = vld [vmem:[%s206 + $0x90] sm:$0xf]
                %245 = vst [vmem:[%s207 + $0x48] sm:$0xf] %v244
                %v246 = vld [vmem:[%s206 + $0x94] sm:$0xf]
                %247 = vst [vmem:[%s207 + $0x4c] sm:$0xf] %v246
                %v248 = vld [vmem:[%s206 + $0x98] sm:$0xf]
                %249 = vst [vmem:[%s207 + $0x50] sm:$0xf] %v248
                %v250 = vld [vmem:[%s206 + $0x9c] sm:$0xf]
                %251 = vst [vmem:[%s207 + $0x54] sm:$0xf] %v250
                %v252 = vld [vmem:[%s206 + $0xa0] sm:$0xf]
                %253 = vst [vmem:[%s207 + $0x58] sm:$0xf] %v252
                %v254 = vld [vmem:[%s206 + $0xa4] sm:$0xf]
                %255 = vst [vmem:[%s207 + $0x5c] sm:$0xf] %v254
                %v256 = vld [vmem:[%s206 + $0xa8] sm:$0xf]
                %257 = vst [vmem:[%s207 + $0x60] sm:$0xf] %v256
                %v258 = vld [vmem:[%s206 + $0xac] sm:$0xf]
                %259 = vst [vmem:[%s207 + $0x64] sm:$0xf] %v258
                %v260 = vld [vmem:[%s206 + $0xb0] sm:$0xf]
                %261 = vst [vmem:[%s207 + $0x68] sm:$0xf] %v260
                %v262 = vld [vmem:[%s206 + $0xb4] sm:$0xf]
                %263 = vst [vmem:[%s207 + $0x6c] sm:$0xf] %v262
                %v264 = vld [vmem:[%s206 + $0xb8] sm:$0xf]
                %265 = vst [vmem:[%s207 + $0x70] sm:$0xf] %v264
                %v266 = vld [vmem:[%s206 + $0xbc] sm:$0xf]
                %267 = vst [vmem:[%s207 + $0x74] sm:$0xf] %v266
                %v268 = vld [vmem:[%s206 + $0xc0] sm:$0xf]
                %269 = vst [vmem:[%s207 + $0x78] sm:$0xf] %v268
                %v270 = vld [vmem:[%s206 + $0xc4] sm:$0xf]
                %271 = vst [vmem:[%s207 + $0x7c] sm:$0xf] %v270
                %v272 = vld [vmem:[%s206 + $0xc8] sm:$0xf]
                %273 = vst [vmem:[%s207 + $0x80] sm:$0xf] %v272
                %v274 = vld [vmem:[%s206 + $0xcc] sm:$0xf]
                %275 = vst [vmem:[%s207 + $0x84] sm:$0xf] %v274
                %v276 = vld [vmem:[%s206 + $0xd0] sm:$0xf]
                %277 = vst [vmem:[%s207 + $0x88] sm:$0xf] %v276
                %v278 = vld [vmem:[%s206 + $0xd4] sm:$0xf]
                %279 = vst [vmem:[%s207 + $0x8c] sm:$0xf] %v278
                %v280 = vld [vmem:[%s206 + $0x120] sm:$0xf]
                %281 = vst [vmem:[%s207 + $0x90] sm:$0xf] %v280
                %v282 = vld [vmem:[%s206 + $0x124] sm:$0xf]
                %283 = vst [vmem:[%s207 + $0x94] sm:$0xf] %v282
                %v284 = vld [vmem:[%s206 + $0x128] sm:$0xf]
                %285 = vst [vmem:[%s207 + $0x98] sm:$0xf] %v284
                %v286 = vld [vmem:[%s206 + $0x12c] sm:$0xf]
                %287 = vst [vmem:[%s207 + $0x9c] sm:$0xf] %v286
                %v288 = vld [vmem:[%s206 + $0x130] sm:$0xf]
                %289 = vst [vmem:[%s207 + $0xa0] sm:$0xf] %v288
                %v290 = vld [vmem:[%s206 + $0x134] sm:$0xf]
                %291 = vst [vmem:[%s207 + $0xa4] sm:$0xf] %v290
                %v292 = vld [vmem:[%s206 + $0x138] sm:$0xf]
                %293 = vst [vmem:[%s207 + $0xa8] sm:$0xf] %v292
                %v294 = vld [vmem:[%s206 + $0x13c] sm:$0xf]
                %295 = vst [vmem:[%s207 + $0xac] sm:$0xf] %v294
                %v296 = vld [vmem:[%s206 + $0x140] sm:$0xf]
                %297 = vst [vmem:[%s207 + $0xb0] sm:$0xf] %v296
                %v298 = vld [vmem:[%s206 + $0x144] sm:$0xf]
                %299 = vst [vmem:[%s207 + $0xb4] sm:$0xf] %v298
                %v300 = vld [vmem:[%s206 + $0x148] sm:$0xf]
                %301 = vst [vmem:[%s207 + $0xb8] sm:$0xf] %v300
                %v302 = vld [vmem:[%s206 + $0x14c] sm:$0xf]
                %303 = vst [vmem:[%s207 + $0xbc] sm:$0xf] %v302
                %v304 = vld [vmem:[%s206 + $0x150] sm:$0xf]
                %305 = vst [vmem:[%s207 + $0xc0] sm:$0xf] %v304
                %v306 = vld [vmem:[%s206 + $0x154] sm:$0xf]
                %307 = vst [vmem:[%s207 + $0xc4] sm:$0xf] %v306
                %v308 = vld [vmem:[%s206 + $0x158] sm:$0xf]
                %309 = vst [vmem:[%s207 + $0xc8] sm:$0xf] %v308
                %v310 = vld [vmem:[%s206 + $0x15c] sm:$0xf]
                %311 = vst [vmem:[%s207 + $0xcc] sm:$0xf] %v310
                %v312 = vld [vmem:[%s206 + $0x160] sm:$0xf]
                %313 = vst [vmem:[%s207 + $0xd0] sm:$0xf] %v312
                %v314 = vld [vmem:[%s206 + $0x164] sm:$0xf]
                %315 = vst [vmem:[%s207 + $0xd4] sm:$0xf] %v314
                %v316 = vld [vmem:[%s206 + $0x1b0] sm:$0xf]
                %317 = vst [vmem:[%s207 + $0xd8] sm:$0xf] %v316
                %v318 = vld [vmem:[%s206 + $0x1b4] sm:$0xf]
                %319 = vst [vmem:[%s207 + $0xdc] sm:$0xf] %v318
                %v320 = vld [vmem:[%s206 + $0x1b8] sm:$0xf]
                %321 = vst [vmem:[%s207 + $0xe0] sm:$0xf] %v320
                %v322 = vld [vmem:[%s206 + $0x1bc] sm:$0xf]
                %323 = vst [vmem:[%s207 + $0xe4] sm:$0xf] %v322
                %v324 = vld [vmem:[%s206 + $0x1c0] sm:$0xf]
                %325 = vst [vmem:[%s207 + $0xe8] sm:$0xf] %v324
                %v326 = vld [vmem:[%s206 + $0x1c4] sm:$0xf]
                %327 = vst [vmem:[%s207 + $0xec] sm:$0xf] %v326
                %v328 = vld [vmem:[%s206 + $0x1c8] sm:$0xf]
                %329 = vst [vmem:[%s207 + $0xf0] sm:$0xf] %v328
                %v330 = vld [vmem:[%s206 + $0x1cc] sm:$0xf]
                %331 = vst [vmem:[%s207 + $0xf4] sm:$0xf] %v330
                %v332 = vld [vmem:[%s206 + $0x1d0] sm:$0xf]
                %333 = vst [vmem:[%s207 + $0xf8] sm:$0xf] %v332
                %v334 = vld [vmem:[%s206 + $0x1d4] sm:$0xf]
                %335 = vst [vmem:[%s207 + $0xfc] sm:$0xf] %v334
                %v336 = vld [vmem:[%s206 + $0x1d8] sm:$0xf]
                %337 = vst [vmem:[%s207 + $0x100] sm:$0xf] %v336
                %v338 = vld [vmem:[%s206 + $0x1dc] sm:$0xf]
                %339 = vst [vmem:[%s207 + $0x104] sm:$0xf] %v338
                %v340 = vld [vmem:[%s206 + $0x1e0] sm:$0xf]
                %341 = vst [vmem:[%s207 + $0x108] sm:$0xf] %v340
                %v342 = vld [vmem:[%s206 + $0x1e4] sm:$0xf]
                %343 = vst [vmem:[%s207 + $0x10c] sm:$0xf] %v342
                %v344 = vld [vmem:[%s206 + $0x1e8] sm:$0xf]
                %345 = vst [vmem:[%s207 + $0x110] sm:$0xf] %v344
                %v346 = vld [vmem:[%s206 + $0x1ec] sm:$0xf]
                %347 = vst [vmem:[%s207 + $0x114] sm:$0xf] %v346
                %v348 = vld [vmem:[%s206 + $0x1f0] sm:$0xf]
                %349 = vst [vmem:[%s207 + $0x118] sm:$0xf] %v348
                %v350 = vld [vmem:[%s206 + $0x1f4] sm:$0xf]
                %351 = vst [vmem:[%s207 + $0x11c] sm:$0xf] %v350
              $region45: #{residual_block_pallas.3} parent=39 // loop_footer
                %s205 = sadd.s32 1, %s201
              $region46: #{residual_block_pallas.3} parent=39 // loop_footer_branch
                %200 = sbr.rel target = $region42
              $region47: #{residual_block_pallas.3} parent=39 // loop_exit
                _
            $region40: #{residual_block_pallas.3} parent=31 // pred_fallthru
              _
          $region32: #{residual_block_pallas.3} parent=27 // pred_fallthru
            _
          %515 = vnop
        $region28: #{residual_block_pallas.3} parent=23 // pred_fallthru
          _
      $region24: #{residual_block_pallas.3} parent=5 // pred_fallthru
        _
      %p516 = scmp.le.s32.totalorder 1, %s12
      %p517 = scmp.lt.s32.totalorder %s12, 3
      %p518 = pnand %p516, %p517
      %p519 = pneg %p518
      // Predicated region
      $region66: #{residual_block_pallas.3} parent=5 // pred_check
        _
      $region67: #{residual_block_pallas.3} parent=5 // pred_check_branch
        %521 = sbr.rel (%p518) target = $region69
      $region68: #{residual_block_pallas.3} parent=5 // pred_region
        %s522 = ssub.s32 %s12, 1
        %s523 = sand.u32 %s25, 1
        %s524 = sand.u32 %s25, 1
        %s525 = smul.addr %s524, 288
        %s526 = scalar_lea.vmem [#allocation3], %s525
        // Predicated region
        $region70: #{residual_block_pallas.3} parent=68 // pred_check
          %p527 = pneg %p38
        $region71: #{residual_block_pallas.3} parent=68 // pred_check_branch
          %529 = sbr.rel (%p527) target = $region73
        $region72: #{residual_block_pallas.3} parent=68 // pred_region
          _
        $region73: #{residual_block_pallas.3} parent=68 // pred_fallthru
          _
        %s530 = sand.u32 %s25, 1
        %s531 = sand.u32 %s25, 1
        %s532 = smul.addr %s531, 288
        %s533 = scalar_lea.vmem [#allocation3], %s532
        %p534 = pneg %p38
        %p535 = pneg %p35
        %p536 = pneg %p59
        %p537 = pneg %p56
        %p538 = pneg %p80
        %p539 = pneg %p77
        %p540 = pneg %p106
        %p541 = pneg %p103
        %p542 = scmp.lt.s32.totalorder %s17, 1
        %s543 = scalar_select %p542, %s17, 1
        %s544 = smul.addr %s543, 8
        %s545 = smul.addr %s544, 8
        %s546 = scalar_lea.vmem %s3, %s545
        %p547 = pneg %p132
        %p548 = pneg %p129
        %p549 = scmp.lt.s32.totalorder %s17, 1
        %s550 = scalar_select %p549, %s17, 1
        %s551 = smul.addr %s550, 8
        %s552 = smul.addr %s551, 8
        %s553 = scalar_lea.vmem %s4, %s552
        %p554 = pneg %p158
        %p555 = pneg %p155
        %p556 = scmp.lt.s32.totalorder %s17, 1
        %s557 = scalar_select %p556, %s17, 1
        %s558 = smul.addr %s557, 4
        %s559 = scalar_lea.vmem %s5, %s558
        %p560 = scmp.lt.s32.totalorder %s17, 1
        %s561 = scalar_select %p560, %s17, 1
        %s562 = smul.addr %s561, 8
        %s563 = smul.addr %s562, 8
        %s564 = scalar_lea.vmem %s3, %s563
        %p565 = scmp.lt.s32.totalorder %s17, 1
        %s566 = scalar_select %p565, %s17, 1
        %s567 = smul.addr %s566, 8
        %s568 = smul.addr %s567, 8
        %s569 = scalar_lea.vmem %s4, %s568
        %p570 = scmp.lt.s32.totalorder %s17, 1
        %s571 = scalar_select %p570, %s17, 1
        %s572 = smul.addr %s571, 4
        %s573 = scalar_lea.vmem %s5, %s572
        %v575 = vld [vmem:[%s526] sm:$0xf]
        %v576 = vld [vmem:[%s526 + $0x8] sm:$0xf]
        %v577 = vld [vmem:[%s526 + $0x10] sm:$0xf]
        %v578 = vld [vmem:[%s526 + $0x18] sm:$0xf]
        %v579 = vld [vmem:[%s526 + $0x20] sm:$0xf]
        %v580 = vld [vmem:[%s526 + $0x28] sm:$0xf]
        %v581 = vld [vmem:[%s526 + $0x30] sm:$0xf]
        %v582 = vld [vmem:[%s526 + $0x38] sm:$0xf]
        %v591 = vunpack.c.l.b16 %v575
        %v592 = vunpack.c.l.b16 %v576
        %v593 = vunpack.c.l.b16 %v577
        %v594 = vunpack.c.l.b16 %v578
        %v595 = vunpack.c.l.b16 %v579
        %v596 = vunpack.c.l.b16 %v580
        %v597 = vunpack.c.l.b16 %v581
        %v598 = vunpack.c.l.b16 %v582
        %v599 = vpack.c.b16 %v592, %v591
        %v600 = vpack.c.b16 %v594, %v593
        %v601 = vpack.c.b16 %v596, %v595
        %v602 = vpack.c.b16 %v598, %v597
        %607 = vst [vmem:[#allocation2] sm:$0xff] %v599
        %608 = vst [vmem:[#allocation2 + $0x48] sm:$0xff] %v600
        %609 = vst [vmem:[#allocation2 + $0x90] sm:$0xff] %v601
        %610 = vst [vmem:[#allocation2 + $0xd8] sm:$0xff] %v602
        %s611 = scalar_lea.vmem %s526, 72 [#allocation3]
        %v612 = vld [vmem:[%s611] sm:$0xf]
        %v613 = vld [vmem:[%s611 + $0x8] sm:$0xf]
        %v614 = vld [vmem:[%s611 + $0x10] sm:$0xf]
        %v615 = vld [vmem:[%s611 + $0x18] sm:$0xf]
        %v616 = vld [vmem:[%s611 + $0x20] sm:$0xf]
        %v617 = vld [vmem:[%s611 + $0x28] sm:$0xf]
        %v618 = vld [vmem:[%s611 + $0x30] sm:$0xf]
        %v619 = vld [vmem:[%s611 + $0x38] sm:$0xf]
        %v628 = vunpack.c.l.b16 %v612
        %v629 = vunpack.c.l.b16 %v613
        %v630 = vunpack.c.l.b16 %v614
        %v631 = vunpack.c.l.b16 %v615
        %v632 = vunpack.c.l.b16 %v616
        %v633 = vunpack.c.l.b16 %v617
        %v634 = vunpack.c.l.b16 %v618
        %v635 = vunpack.c.l.b16 %v619
        %v636 = vpack.c.b16 %v629, %v628
        %v637 = vpack.c.b16 %v631, %v630
        %v638 = vpack.c.b16 %v633, %v632
        %v639 = vpack.c.b16 %v635, %v634
        %644 = vst [vmem:[#allocation2 + $0x8] sm:$0xff] %v636
        %645 = vst [vmem:[#allocation2 + $0x50] sm:$0xff] %v637
        %646 = vst [vmem:[#allocation2 + $0x98] sm:$0xff] %v638
        %647 = vst [vmem:[#allocation2 + $0xe0] sm:$0xff] %v639
        %v648 = vld [vmem:[%s526] sm:$0xf]
        %v649 = vld [vmem:[%s526 + $0x4] sm:$0x1]
        %v650 = vld [vmem:[%s526 + $0x8] sm:$0xf]
        %v651 = vld [vmem:[%s526 + $0xc] sm:$0x1]
        %v652 = vld [vmem:[%s526 + $0x10] sm:$0xf]
        %v653 = vld [vmem:[%s526 + $0x14] sm:$0x1]
        %v654 = vld [vmem:[%s526 + $0x18] sm:$0xf]
        %v655 = vld [vmem:[%s526 + $0x1c] sm:$0x1]
        %v656 = vld [vmem:[%s526 + $0x20] sm:$0xf]
        %v657 = vld [vmem:[%s526 + $0x24] sm:$0x1]
        %v658 = vld [vmem:[%s526 + $0x28] sm:$0xf]
        %v659 = vld [vmem:[%s526 + $0x2c] sm:$0x1]
        %v660 = vld [vmem:[%s526 + $0x30] sm:$0xf]
        %v661 = vld [vmem:[%s526 + $0x34] sm:$0x1]
        %v662 = vld [vmem:[%s526 + $0x38] sm:$0xf]
        %v663 = vld [vmem:[%s526 + $0x3c] sm:$0x1]
        %vm664 = vsmask.f32 3328
        %vm665 = vsmask.f32 7440
        %vm666 = vmor %vm664, %vm665
        %v668 = vshrl.u32 %v648, 16
        %v670 = vrot.slane %v668, 4
        %v671 = vshll.u32 %v648, 16
        %v673 = vrot.slane %v671, 5
        %v674 = vor.u32 %v670, %v673
        %v675 = vrot.slane %v674, 4
        %v677 = vshll.u32 %v649, 16
        %v679 = vrot.slane %v677, 5
        %v680 = vsel %vm666, %v675, %v679
        %v682 = vshrl.u32 %v650, 16
        %v684 = vrot.slane %v682, 4
        %v685 = vshll.u32 %v650, 16
        %v687 = vrot.slane %v685, 5
        %v688 = vor.u32 %v684, %v687
        %v689 = vrot.slane %v688, 4
        %v691 = vshll.u32 %v651, 16
        %v693 = vrot.slane %v691, 5
        %v694 = vsel %vm666, %v689, %v693
        %v696 = vshrl.u32 %v652, 16
        %v698 = vrot.slane %v696, 4
        %v699 = vshll.u32 %v652, 16
        %v701 = vrot.slane %v699, 5
        %v702 = vor.u32 %v698, %v701
        %v703 = vrot.slane %v702, 4
        %v705 = vshll.u32 %v653, 16
        %v707 = vrot.slane %v705, 5
        %v708 = vsel %vm666, %v703, %v707
        %v710 = vshrl.u32 %v654, 16
        %v712 = vrot.slane %v710, 4
        %v713 = vshll.u32 %v654, 16
        %v715 = vrot.slane %v713, 5
        %v716 = vor.u32 %v712, %v715
        %v717 = vrot.slane %v716, 4
        %v719 = vshll.u32 %v655, 16
        %v721 = vrot.slane %v719, 5
        %v722 = vsel %vm666, %v717, %v721
        %v724 = vshrl.u32 %v656, 16
        %v726 = vrot.slane %v724, 4
        %v727 = vshll.u32 %v656, 16
        %v729 = vrot.slane %v727, 5
        %v730 = vor.u32 %v726, %v729
        %v731 = vrot.slane %v730, 4
        %v733 = vshll.u32 %v657, 16
        %v735 = vrot.slane %v733, 5
        %v736 = vsel %vm666, %v731, %v735
        %v738 = vshrl.u32 %v658, 16
        %v740 = vrot.slane %v738, 4
        %v741 = vshll.u32 %v658, 16
        %v743 = vrot.slane %v741, 5
        %v744 = vor.u32 %v740, %v743
        %v745 = vrot.slane %v744, 4
        %v747 = vshll.u32 %v659, 16
        %v749 = vrot.slane %v747, 5
        %v750 = vsel %vm666, %v745, %v749
        %v752 = vshrl.u32 %v660, 16
        %v754 = vrot.slane %v752, 4
        %v755 = vshll.u32 %v660, 16
        %v757 = vrot.slane %v755, 5
        %v758 = vor.u32 %v754, %v757
        %v759 = vrot.slane %v758, 4
        %v761 = vshll.u32 %v661, 16
        %v763 = vrot.slane %v761, 5
        %v764 = vsel %vm666, %v759, %v763
        %v766 = vshrl.u32 %v662, 16
        %v768 = vrot.slane %v766, 4
        %v769 = vshll.u32 %v662, 16
        %v771 = vrot.slane %v769, 5
        %v772 = vor.u32 %v768, %v771
        %v773 = vrot.slane %v772, 4
        %v775 = vshll.u32 %v663, 16
        %v777 = vrot.slane %v775, 5
        %v778 = vsel %vm666, %v773, %v777
        %v779 = vunpack.c.l.b16 %v680
        %v780 = vunpack.c.l.b16 %v694
        %v781 = vunpack.c.l.b16 %v708
        %v782 = vunpack.c.l.b16 %v722
        %v783 = vunpack.c.l.b16 %v736
        %v784 = vunpack.c.l.b16 %v750
        %v785 = vunpack.c.l.b16 %v764
        %v786 = vunpack.c.l.b16 %v778
        %v787 = vpack.c.b16 %v780, %v779
        %v788 = vpack.c.b16 %v782, %v781
        %v789 = vpack.c.b16 %v784, %v783
        %v790 = vpack.c.b16 %v786, %v785
        %795 = vst [vmem:[#allocation2 + $0x10] sm:$0xff] %v787
        %796 = vst [vmem:[#allocation2 + $0x58] sm:$0xff] %v788
        %797 = vst [vmem:[#allocation2 + $0xa0] sm:$0xff] %v789
        %798 = vst [vmem:[#allocation2 + $0xe8] sm:$0xff] %v790
        %s799 = scalar_lea.vmem %s526, 144 [#allocation3]
        %v800 = vld [vmem:[%s799] sm:$0xf]
        %v801 = vld [vmem:[%s799 + $0x8] sm:$0xf]
        %v802 = vld [vmem:[%s799 + $0x10] sm:$0xf]
        %v803 = vld [vmem:[%s799 + $0x18] sm:$0xf]
        %v804 = vld [vmem:[%s799 + $0x20] sm:$0xf]
        %v805 = vld [vmem:[%s799 + $0x28] sm:$0xf]
        %v806 = vld [vmem:[%s799 + $0x30] sm:$0xf]
        %v807 = vld [vmem:[%s799 + $0x38] sm:$0xf]
        %v816 = vunpack.c.l.b16 %v800
        %v817 = vunpack.c.l.b16 %v801
        %v818 = vunpack.c.l.b16 %v802
        %v819 = vunpack.c.l.b16 %v803
        %v820 = vunpack.c.l.b16 %v804
        %v821 = vunpack.c.l.b16 %v805
        %v822 = vunpack.c.l.b16 %v806
        %v823 = vunpack.c.l.b16 %v807
        %v824 = vpack.c.b16 %v817, %v816
        %v825 = vpack.c.b16 %v819, %v818
        %v826 = vpack.c.b16 %v821, %v820
        %v827 = vpack.c.b16 %v823, %v822
        %832 = vst [vmem:[#allocation2 + $0x18] sm:$0xff] %v824
        %833 = vst [vmem:[#allocation2 + $0x60] sm:$0xff] %v825
        %834 = vst [vmem:[#allocation2 + $0xa8] sm:$0xff] %v826
        %835 = vst [vmem:[#allocation2 + $0xf0] sm:$0xff] %v827
        %s836 = scalar_lea.vmem %s526, 216 [#allocation3]
        %v837 = vld [vmem:[%s836] sm:$0xf]
        %v838 = vld [vmem:[%s836 + $0x8] sm:$0xf]
        %v839 = vld [vmem:[%s836 + $0x10] sm:$0xf]
        %v840 = vld [vmem:[%s836 + $0x18] sm:$0xf]
        %v841 = vld [vmem:[%s836 + $0x20] sm:$0xf]
        %v842 = vld [vmem:[%s836 + $0x28] sm:$0xf]
        %v843 = vld [vmem:[%s836 + $0x30] sm:$0xf]
        %v844 = vld [vmem:[%s836 + $0x38] sm:$0xf]
        %v853 = vunpack.c.l.b16 %v837
        %v854 = vunpack.c.l.b16 %v838
        %v855 = vunpack.c.l.b16 %v839
        %v856 = vunpack.c.l.b16 %v840
        %v857 = vunpack.c.l.b16 %v841
        %v858 = vunpack.c.l.b16 %v842
        %v859 = vunpack.c.l.b16 %v843
        %v860 = vunpack.c.l.b16 %v844
        %v861 = vpack.c.b16 %v854, %v853
        %v862 = vpack.c.b16 %v856, %v855
        %v863 = vpack.c.b16 %v858, %v857
        %v864 = vpack.c.b16 %v860, %v859
        %869 = vst [vmem:[#allocation2 + $0x20] sm:$0xff] %v861
        %870 = vst [vmem:[#allocation2 + $0x68] sm:$0xff] %v862
        %871 = vst [vmem:[#allocation2 + $0xb0] sm:$0xff] %v863
        %872 = vst [vmem:[#allocation2 + $0xf8] sm:$0xff] %v864
        %v873 = vld [vmem:[%s799] sm:$0xf]
        %v874 = vld [vmem:[%s799 + $0x4] sm:$0x1]
        %v875 = vld [vmem:[%s799 + $0x8] sm:$0xf]
        %v876 = vld [vmem:[%s799 + $0xc] sm:$0x1]
        %v877 = vld [vmem:[%s799 + $0x10] sm:$0xf]
        %v878 = vld [vmem:[%s799 + $0x14] sm:$0x1]
        %v879 = vld [vmem:[%s799 + $0x18] sm:$0xf]
        %v880 = vld [vmem:[%s799 + $0x1c] sm:$0x1]
        %v881 = vld [vmem:[%s799 + $0x20] sm:$0xf]
        %v882 = vld [vmem:[%s799 + $0x24] sm:$0x1]
        %v883 = vld [vmem:[%s799 + $0x28] sm:$0xf]
        %v884 = vld [vmem:[%s799 + $0x2c] sm:$0x1]
        %v885 = vld [vmem:[%s799 + $0x30] sm:$0xf]
        %v886 = vld [vmem:[%s799 + $0x34] sm:$0x1]
        %v887 = vld [vmem:[%s799 + $0x38] sm:$0xf]
        %v888 = vld [vmem:[%s799 + $0x3c] sm:$0x1]
        %v890 = vshrl.u32 %v873, 16
        %v892 = vrot.slane %v890, 4
        %v893 = vshll.u32 %v873, 16
        %v895 = vrot.slane %v893, 5
        %v896 = vor.u32 %v892, %v895
        %v897 = vrot.slane %v896, 4
        %v899 = vshll.u32 %v874, 16
        %v901 = vrot.slane %v899, 5
        %v902 = vsel %vm666, %v897, %v901
        %v904 = vshrl.u32 %v875, 16
        %v906 = vrot.slane %v904, 4
        %v907 = vshll.u32 %v875, 16
        %v909 = vrot.slane %v907, 5
        %v910 = vor.u32 %v906, %v909
        %v911 = vrot.slane %v910, 4
        %v913 = vshll.u32 %v876, 16
        %v915 = vrot.slane %v913, 5
        %v916 = vsel %vm666, %v911, %v915
        %v918 = vshrl.u32 %v877, 16
        %v920 = vrot.slane %v918, 4
        %v921 = vshll.u32 %v877, 16
        %v923 = vrot.slane %v921, 5
        %v924 = vor.u32 %v920, %v923
        %v925 = vrot.slane %v924, 4
        %v927 = vshll.u32 %v878, 16
        %v929 = vrot.slane %v927, 5
        %v930 = vsel %vm666, %v925, %v929
        %v932 = vshrl.u32 %v879, 16
        %v934 = vrot.slane %v932, 4
        %v935 = vshll.u32 %v879, 16
        %v937 = vrot.slane %v935, 5
        %v938 = vor.u32 %v934, %v937
        %v939 = vrot.slane %v938, 4
        %v941 = vshll.u32 %v880, 16
        %v943 = vrot.slane %v941, 5
        %v944 = vsel %vm666, %v939, %v943
        %v946 = vshrl.u32 %v881, 16
        %v948 = vrot.slane %v946, 4
        %v949 = vshll.u32 %v881, 16
        %v951 = vrot.slane %v949, 5
        %v952 = vor.u32 %v948, %v951
        %v953 = vrot.slane %v952, 4
        %v955 = vshll.u32 %v882, 16
        %v957 = vrot.slane %v955, 5
        %v958 = vsel %vm666, %v953, %v957
        %v960 = vshrl.u32 %v883, 16
        %v962 = vrot.slane %v960, 4
        %v963 = vshll.u32 %v883, 16
        %v965 = vrot.slane %v963, 5
        %v966 = vor.u32 %v962, %v965
        %v967 = vrot.slane %v966, 4
        %v969 = vshll.u32 %v884, 16
        %v971 = vrot.slane %v969, 5
        %v972 = vsel %vm666, %v967, %v971
        %v974 = vshrl.u32 %v885, 16
        %v976 = vrot.slane %v974, 4
        %v977 = vshll.u32 %v885, 16
        %v979 = vrot.slane %v977, 5
        %v980 = vor.u32 %v976, %v979
        %v981 = vrot.slane %v980, 4
        %v983 = vshll.u32 %v886, 16
        %v985 = vrot.slane %v983, 5
        %v986 = vsel %vm666, %v981, %v985
        %v988 = vshrl.u32 %v887, 16
        %v990 = vrot.slane %v988, 4
        %v991 = vshll.u32 %v887, 16
        %v993 = vrot.slane %v991, 5
        %v994 = vor.u32 %v990, %v993
        %v995 = vrot.slane %v994, 4
        %v997 = vshll.u32 %v888, 16
        %v999 = vrot.slane %v997, 5
        %v1000 = vsel %vm666, %v995, %v999
        %v1001 = vunpack.c.l.b16 %v902
        %v1002 = vunpack.c.l.b16 %v916
        %v1003 = vunpack.c.l.b16 %v930
        %v1004 = vunpack.c.l.b16 %v944
        %v1005 = vunpack.c.l.b16 %v958
        %v1006 = vunpack.c.l.b16 %v972
        %v1007 = vunpack.c.l.b16 %v986
        %v1008 = vunpack.c.l.b16 %v1000
        %v1009 = vpack.c.b16 %v1002, %v1001
        %v1010 = vpack.c.b16 %v1004, %v1003
        %v1011 = vpack.c.b16 %v1006, %v1005
        %v1012 = vpack.c.b16 %v1008, %v1007
        %1017 = vst [vmem:[#allocation2 + $0x28] sm:$0xff] %v1009
        %1018 = vst [vmem:[#allocation2 + $0x70] sm:$0xff] %v1010
        %1019 = vst [vmem:[#allocation2 + $0xb8] sm:$0xff] %v1011
        %1020 = vst [vmem:[#allocation2 + $0x100] sm:$0xff] %v1012
        %s1021 = scalar_lea.vmem %s526, 8 [#allocation3]
        %v1022 = vld [vmem:[%s1021] sm:$0xf]
        %v1023 = vld [vmem:[%s1021 + $0x8] sm:$0xf]
        %v1024 = vld [vmem:[%s1021 + $0x10] sm:$0xf]
        %v1025 = vld [vmem:[%s1021 + $0x18] sm:$0xf]
        %v1026 = vld [vmem:[%s1021 + $0x20] sm:$0xf]
        %v1027 = vld [vmem:[%s1021 + $0x28] sm:$0xf]
        %v1028 = vld [vmem:[%s1021 + $0x30] sm:$0xf]
        %v1029 = vld [vmem:[%s1021 + $0x38] sm:$0xf]
        %v1038 = vunpack.c.l.b16 %v1022
        %v1039 = vunpack.c.l.b16 %v1023
        %v1040 = vunpack.c.l.b16 %v1024
        %v1041 = vunpack.c.l.b16 %v1025
        %v1042 = vunpack.c.l.b16 %v1026
        %v1043 = vunpack.c.l.b16 %v1027
        %v1044 = vunpack.c.l.b16 %v1028
        %v1045 = vunpack.c.l.b16 %v1029
        %v1046 = vpack.c.b16 %v1039, %v1038
        %v1047 = vpack.c.b16 %v1041, %v1040
        %v1048 = vpack.c.b16 %v1043, %v1042
        %v1049 = vpack.c.b16 %v1045, %v1044
        %1054 = vst [vmem:[#allocation2 + $0x30] sm:$0xff] %v1046
        %1055 = vst [vmem:[#allocation2 + $0x78] sm:$0xff] %v1047
        %1056 = vst [vmem:[#allocation2 + $0xc0] sm:$0xff] %v1048
        %1057 = vst [vmem:[#allocation2 + $0x108] sm:$0xff] %v1049
        %s1058 = scalar_lea.vmem %s526, 80 [#allocation3]
        %v1059 = vld [vmem:[%s1058] sm:$0xf]
        %v1060 = vld [vmem:[%s1058 + $0x8] sm:$0xf]
        %v1061 = vld [vmem:[%s1058 + $0x10] sm:$0xf]
        %v1062 = vld [vmem:[%s1058 + $0x18] sm:$0xf]
        %v1063 = vld [vmem:[%s1058 + $0x20] sm:$0xf]
        %v1064 = vld [vmem:[%s1058 + $0x28] sm:$0xf]
        %v1065 = vld [vmem:[%s1058 + $0x30] sm:$0xf]
        %v1066 = vld [vmem:[%s1058 + $0x38] sm:$0xf]
        %v1075 = vunpack.c.l.b16 %v1059
        %v1076 = vunpack.c.l.b16 %v1060
        %v1077 = vunpack.c.l.b16 %v1061
        %v1078 = vunpack.c.l.b16 %v1062
        %v1079 = vunpack.c.l.b16 %v1063
        %v1080 = vunpack.c.l.b16 %v1064
        %v1081 = vunpack.c.l.b16 %v1065
        %v1082 = vunpack.c.l.b16 %v1066
        %v1083 = vpack.c.b16 %v1076, %v1075
        %v1084 = vpack.c.b16 %v1078, %v1077
        %v1085 = vpack.c.b16 %v1080, %v1079
        %v1086 = vpack.c.b16 %v1082, %v1081
        %1091 = vst [vmem:[#allocation2 + $0x38] sm:$0xff] %v1083
        %1092 = vst [vmem:[#allocation2 + $0x80] sm:$0xff] %v1084
        %1093 = vst [vmem:[#allocation2 + $0xc8] sm:$0xff] %v1085
        %1094 = vst [vmem:[#allocation2 + $0x110] sm:$0xff] %v1086
        %v1095 = vld [vmem:[%s1021] sm:$0xf]
        %v1096 = vld [vmem:[%s1021 + $0x4] sm:$0x1]
        %v1097 = vld [vmem:[%s1021 + $0x8] sm:$0xf]
        %v1098 = vld [vmem:[%s1021 + $0xc] sm:$0x1]
        %v1099 = vld [vmem:[%s1021 + $0x10] sm:$0xf]
        %v1100 = vld [vmem:[%s1021 + $0x14] sm:$0x1]
        %v1101 = vld [vmem:[%s1021 + $0x18] sm:$0xf]
        %v1102 = vld [vmem:[%s1021 + $0x1c] sm:$0x1]
        %v1103 = vld [vmem:[%s1021 + $0x20] sm:$0xf]
        %v1104 = vld [vmem:[%s1021 + $0x24] sm:$0x1]
        %v1105 = vld [vmem:[%s1021 + $0x28] sm:$0xf]
        %v1106 = vld [vmem:[%s1021 + $0x2c] sm:$0x1]
        %v1107 = vld [vmem:[%s1021 + $0x30] sm:$0xf]
        %v1108 = vld [vmem:[%s1021 + $0x34] sm:$0x1]
        %v1109 = vld [vmem:[%s1021 + $0x38] sm:$0xf]
        %v1110 = vld [vmem:[%s1021 + $0x3c] sm:$0x1]
        %v1112 = vshrl.u32 %v1095, 16
        %v1114 = vrot.slane %v1112, 4
        %v1115 = vshll.u32 %v1095, 16
        %v1117 = vrot.slane %v1115, 5
        %v1118 = vor.u32 %v1114, %v1117
        %v1119 = vrot.slane %v1118, 4
        %v1121 = vshll.u32 %v1096, 16
        %v1123 = vrot.slane %v1121, 5
        %v1124 = vsel %vm666, %v1119, %v1123
        %v1126 = vshrl.u32 %v1097, 16
        %v1128 = vrot.slane %v1126, 4
        %v1129 = vshll.u32 %v1097, 16
        %v1131 = vrot.slane %v1129, 5
        %v1132 = vor.u32 %v1128, %v1131
        %v1133 = vrot.slane %v1132, 4
        %v1135 = vshll.u32 %v1098, 16
        %v1137 = vrot.slane %v1135, 5
        %v1138 = vsel %vm666, %v1133, %v1137
        %v1140 = vshrl.u32 %v1099, 16
        %v1142 = vrot.slane %v1140, 4
        %v1143 = vshll.u32 %v1099, 16
        %v1145 = vrot.slane %v1143, 5
        %v1146 = vor.u32 %v1142, %v1145
        %v1147 = vrot.slane %v1146, 4
        %v1149 = vshll.u32 %v1100, 16
        %v1151 = vrot.slane %v1149, 5
        %v1152 = vsel %vm666, %v1147, %v1151
        %v1154 = vshrl.u32 %v1101, 16
        %v1156 = vrot.slane %v1154, 4
        %v1157 = vshll.u32 %v1101, 16
        %v1159 = vrot.slane %v1157, 5
        %v1160 = vor.u32 %v1156, %v1159
        %v1161 = vrot.slane %v1160, 4
        %v1163 = vshll.u32 %v1102, 16
        %v1165 = vrot.slane %v1163, 5
        %v1166 = vsel %vm666, %v1161, %v1165
        %v1168 = vshrl.u32 %v1103, 16
        %v1170 = vrot.slane %v1168, 4
        %v1171 = vshll.u32 %v1103, 16
        %v1173 = vrot.slane %v1171, 5
        %v1174 = vor.u32 %v1170, %v1173
        %v1175 = vrot.slane %v1174, 4
        %v1177 = vshll.u32 %v1104, 16
        %v1179 = vrot.slane %v1177, 5
        %v1180 = vsel %vm666, %v1175, %v1179
        %v1182 = vshrl.u32 %v1105, 16
        %v1184 = vrot.slane %v1182, 4
        %v1185 = vshll.u32 %v1105, 16
        %v1187 = vrot.slane %v1185, 5
        %v1188 = vor.u32 %v1184, %v1187
        %v1189 = vrot.slane %v1188, 4
        %v1191 = vshll.u32 %v1106, 16
        %v1193 = vrot.slane %v1191, 5
        %v1194 = vsel %vm666, %v1189, %v1193
        %v1196 = vshrl.u32 %v1107, 16
        %v1198 = vrot.slane %v1196, 4
        %v1199 = vshll.u32 %v1107, 16
        %v1201 = vrot.slane %v1199, 5
        %v1202 = vor.u32 %v1198, %v1201
        %v1203 = vrot.slane %v1202, 4
        %v1205 = vshll.u32 %v1108, 16
        %v1207 = vrot.slane %v1205, 5
        %v1208 = vsel %vm666, %v1203, %v1207
        %v1210 = vshrl.u32 %v1109, 16
        %v1212 = vrot.slane %v1210, 4
        %v1213 = vshll.u32 %v1109, 16
        %v1215 = vrot.slane %v1213, 5
        %v1216 = vor.u32 %v1212, %v1215
        %v1217 = vrot.slane %v1216, 4
        %v1219 = vshll.u32 %v1110, 16
        %v1221 = vrot.slane %v1219, 5
        %v1222 = vsel %vm666, %v1217, %v1221
        %v1223 = vunpack.c.l.b16 %v1124
        %v1224 = vunpack.c.l.b16 %v1138
        %v1225 = vunpack.c.l.b16 %v1152
        %v1226 = vunpack.c.l.b16 %v1166
        %v1227 = vunpack.c.l.b16 %v1180
        %v1228 = vunpack.c.l.b16 %v1194
        %v1229 = vunpack.c.l.b16 %v1208
        %v1230 = vunpack.c.l.b16 %v1222
        %v1231 = vpack.c.b16 %v1224, %v1223
        %v1232 = vpack.c.b16 %v1226, %v1225
        %v1233 = vpack.c.b16 %v1228, %v1227
        %v1234 = vpack.c.b16 %v1230, %v1229
        %1239 = vst [vmem:[#allocation2 + $0x40] sm:$0xff] %v1231
        %1240 = vst [vmem:[#allocation2 + $0x88] sm:$0xff] %v1232
        %1241 = vst [vmem:[#allocation2 + $0xd0] sm:$0xff] %v1233
        %1242 = vst [vmem:[#allocation2 + $0x118] sm:$0xff] %v1234
        %v1243 = vld [vmem:[#allocation2] sm:$0xff]
        %v1244 = vld [vmem:[#allocation2 + $0x8] sm:$0xff]
        %v1245 = vld [vmem:[#allocation2 + $0x10] sm:$0xff]
        %v1246 = vld [vmem:[#allocation2 + $0x18] sm:$0xff]
        %v1247 = vld [vmem:[#allocation2 + $0x20] sm:$0xff]
        %v1248 = vld [vmem:[#allocation2 + $0x28] sm:$0xff]
        %v1249 = vld [vmem:[#allocation2 + $0x30] sm:$0xff]
        %v1250 = vld [vmem:[#allocation2 + $0x38] sm:$0xff]
        %v1251 = vld [vmem:[#allocation2 + $0x40] sm:$0xff]
        %v1252 = vld [vmem:[#allocation2 + $0x48] sm:$0xff]
        %v1253 = vld [vmem:[#allocation2 + $0x50] sm:$0xff]
        %v1254 = vld [vmem:[#allocation2 + $0x58] sm:$0xff]
        %v1255 = vld [vmem:[#allocation2 + $0x60] sm:$0xff]
        %v1256 = vld [vmem:[#allocation2 + $0x68] sm:$0xff]
        %v1257 = vld [vmem:[#allocation2 + $0x70] sm:$0xff]
        %v1258 = vld [vmem:[#allocation2 + $0x78] sm:$0xff]
        %v1259 = vld [vmem:[#allocation2 + $0x80] sm:$0xff]
        %v1260 = vld [vmem:[#allocation2 + $0x88] sm:$0xff]
        %v1261 = vld [vmem:[#allocation2 + $0x90] sm:$0xff]
        %v1262 = vld [vmem:[#allocation2 + $0x98] sm:$0xff]
        %v1263 = vld [vmem:[#allocation2 + $0xa0] sm:$0xff]
        %v1264 = vld [vmem:[#allocation2 + $0xa8] sm:$0xff]
        %v1265 = vld [vmem:[#allocation2 + $0xb0] sm:$0xff]
        %v1266 = vld [vmem:[#allocation2 + $0xb8] sm:$0xff]
        %v1267 = vld [vmem:[#allocation2 + $0xc0] sm:$0xff]
        %v1268 = vld [vmem:[#allocation2 + $0xc8] sm:$0xff]
        %v1269 = vld [vmem:[#allocation2 + $0xd0] sm:$0xff]
        %v1270 = vld [vmem:[#allocation2 + $0xd8] sm:$0xff]
        %v1271 = vld [vmem:[#allocation2 + $0xe0] sm:$0xff]
        %v1272 = vld [vmem:[#allocation2 + $0xe8] sm:$0xff]
        %v1273 = vld [vmem:[#allocation2 + $0xf0] sm:$0xff]
        %v1274 = vld [vmem:[#allocation2 + $0xf8] sm:$0xff]
        %v1275 = vld [vmem:[#allocation2 + $0x100] sm:$0xff]
        %v1276 = vld [vmem:[#allocation2 + $0x108] sm:$0xff]
        %v1277 = vld [vmem:[#allocation2 + $0x110] sm:$0xff]
        %v1278 = vld [vmem:[#allocation2 + $0x118] sm:$0xff]
        %v1279 = vld [vmem:[%s1] sm:$0xf]
        %v1280 = vld [vmem:[%s1 + $0x4] sm:$0xf]
        %v1281 = vld [vmem:[%s1 + $0x8] sm:$0xf]
        %v1282 = vld [vmem:[%s1 + $0xc] sm:$0xf]
        %v1283 = vld [vmem:[%s1 + $0x10] sm:$0xf]
        %v1284 = vld [vmem:[%s1 + $0x14] sm:$0xf]
        %v1285 = vld [vmem:[%s1 + $0x18] sm:$0xf]
        %v1286 = vld [vmem:[%s1 + $0x1c] sm:$0xf]
        %v1287 = vld [vmem:[%s1 + $0x20] sm:$0xf]
        %v1288 = vld [vmem:[%s1 + $0x24] sm:$0xf]
        %v1289 = vld [vmem:[%s1 + $0x28] sm:$0xf]
        %v1290 = vld [vmem:[%s1 + $0x2c] sm:$0xf]
        %v1291 = vld [vmem:[%s1 + $0x30] sm:$0xf]
        %v1292 = vld [vmem:[%s1 + $0x34] sm:$0xf]
        %v1293 = vld [vmem:[%s1 + $0x38] sm:$0xf]
        %v1294 = vld [vmem:[%s1 + $0x3c] sm:$0xf]
        %v1295 = vld [vmem:[%s1 + $0x40] sm:$0xf]
        %v1296 = vld [vmem:[%s1 + $0x44] sm:$0xf]
        %v1297 = vld [vmem:[%s1 + $0x48] sm:$0xf]
        %v1298 = vld [vmem:[%s1 + $0x4c] sm:$0xf]
        %v1299 = vld [vmem:[%s1 + $0x50] sm:$0xf]
        %v1300 = vld [vmem:[%s1 + $0x54] sm:$0xf]
        %v1301 = vld [vmem:[%s1 + $0x58] sm:$0xf]
        %v1302 = vld [vmem:[%s1 + $0x5c] sm:$0xf]
        %v1303 = vld [vmem:[%s1 + $0x60] sm:$0xf]
        %v1304 = vld [vmem:[%s1 + $0x64] sm:$0xf]
        %v1305 = vld [vmem:[%s1 + $0x68] sm:$0xf]
        %v1306 = vld [vmem:[%s1 + $0x6c] sm:$0xf]
        %v1307 = vld [vmem:[%s1 + $0x70] sm:$0xf]
        %v1308 = vld [vmem:[%s1 + $0x74] sm:$0xf]
        %v1309 = vld [vmem:[%s1 + $0x78] sm:$0xf]
        %v1310 = vld [vmem:[%s1 + $0x7c] sm:$0xf]
        %v1311 = vld [vmem:[%s1 + $0x80] sm:$0xf]
        %v1312 = vld [vmem:[%s1 + $0x84] sm:$0xf]
        %v1313 = vld [vmem:[%s1 + $0x88] sm:$0xf]
        %v1314 = vld [vmem:[%s1 + $0x8c] sm:$0xf]
        %v1315 = vld [vmem:[%s1 + $0x90] sm:$0xf]
        %v1316 = vld [vmem:[%s1 + $0x94] sm:$0xf]
        %v1317 = vld [vmem:[%s1 + $0x98] sm:$0xf]
        %v1318 = vld [vmem:[%s1 + $0x9c] sm:$0xf]
        %v1319 = vld [vmem:[%s1 + $0xa0] sm:$0xf]
        %v1320 = vld [vmem:[%s1 + $0xa4] sm:$0xf]
        %v1321 = vld [vmem:[%s1 + $0xa8] sm:$0xf]
        %v1322 = vld [vmem:[%s1 + $0xac] sm:$0xf]
        %v1323 = vld [vmem:[%s1 + $0xb0] sm:$0xf]
        %v1324 = vld [vmem:[%s1 + $0xb4] sm:$0xf]
        %v1325 = vld [vmem:[%s1 + $0xb8] sm:$0xf]
        %v1326 = vld [vmem:[%s1 + $0xbc] sm:$0xf]
        %v1327 = vld [vmem:[%s1 + $0xc0] sm:$0xf]
        %v1328 = vld [vmem:[%s1 + $0xc4] sm:$0xf]
        %v1329 = vld [vmem:[%s1 + $0xc8] sm:$0xf]
        %v1330 = vld [vmem:[%s1 + $0xcc] sm:$0xf]
        %v1331 = vld [vmem:[%s1 + $0xd0] sm:$0xf]
        %v1332 = vld [vmem:[%s1 + $0xd4] sm:$0xf]
        %v1333 = vld [vmem:[%s1 + $0xd8] sm:$0xf]
        %v1334 = vld [vmem:[%s1 + $0xdc] sm:$0xf]
        %v1335 = vld [vmem:[%s1 + $0xe0] sm:$0xf]
        %v1336 = vld [vmem:[%s1 + $0xe4] sm:$0xf]
        %v1337 = vld [vmem:[%s1 + $0xe8] sm:$0xf]
        %v1338 = vld [vmem:[%s1 + $0xec] sm:$0xf]
        %v1339 = vld [vmem:[%s1 + $0xf0] sm:$0xf]
        %v1340 = vld [vmem:[%s1 + $0xf4] sm:$0xf]
        %v1341 = vld [vmem:[%s1 + $0xf8] sm:$0xf]
        %v1342 = vld [vmem:[%s1 + $0xfc] sm:$0xf]
        %v1343 = vld [vmem:[%s1 + $0x100] sm:$0xf]
        %v1344 = vld [vmem:[%s1 + $0x104] sm:$0xf]
        %v1345 = vld [vmem:[%s1 + $0x108] sm:$0xf]
        %v1346 = vld [vmem:[%s1 + $0x10c] sm:$0xf]
        %v1347 = vld [vmem:[%s1 + $0x110] sm:$0xf]
        %v1348 = vld [vmem:[%s1 + $0x114] sm:$0xf]
        %v1349 = vld [vmem:[%s1 + $0x118] sm:$0xf]
        %v1350 = vld [vmem:[%s1 + $0x11c] sm:$0xf]
        %v1351 = vld [vmem:[%s1 + $0x120] sm:$0xf]
        %v1352 = vld [vmem:[%s1 + $0x124] sm:$0xf]
        %v1353 = vld [vmem:[%s1 + $0x128] sm:$0xf]
        %v1354 = vld [vmem:[%s1 + $0x12c] sm:$0xf]
        %v1355 = vld [vmem:[%s1 + $0x130] sm:$0xf]
        %v1356 = vld [vmem:[%s1 + $0x134] sm:$0xf]
        %v1357 = vld [vmem:[%s1 + $0x138] sm:$0xf]
        %v1358 = vld [vmem:[%s1 + $0x13c] sm:$0xf]
        %v1359 = vld [vmem:[%s1 + $0x140] sm:$0xf]
        %v1360 = vld [vmem:[%s1 + $0x144] sm:$0xf]
        %v1361 = vld [vmem:[%s1 + $0x148] sm:$0xf]
        %v1362 = vld [vmem:[%s1 + $0x14c] sm:$0xf]
        %v1363 = vld [vmem:[%s1 + $0x150] sm:$0xf]
        %v1364 = vld [vmem:[%s1 + $0x154] sm:$0xf]
        %v1365 = vld [vmem:[%s1 + $0x158] sm:$0xf]
        %v1366 = vld [vmem:[%s1 + $0x15c] sm:$0xf]
        %v1367 = vld [vmem:[%s1 + $0x160] sm:$0xf]
        %v1368 = vld [vmem:[%s1 + $0x164] sm:$0xf]
        %v1369 = vld [vmem:[%s1 + $0x168] sm:$0xf]
        %v1370 = vld [vmem:[%s1 + $0x16c] sm:$0xf]
        %v1371 = vld [vmem:[%s1 + $0x170] sm:$0xf]
        %v1372 = vld [vmem:[%s1 + $0x174] sm:$0xf]
        %v1373 = vld [vmem:[%s1 + $0x178] sm:$0xf]
        %v1374 = vld [vmem:[%s1 + $0x17c] sm:$0xf]
        %v1375 = vld [vmem:[%s1 + $0x180] sm:$0xf]
        %v1376 = vld [vmem:[%s1 + $0x184] sm:$0xf]
        %v1377 = vld [vmem:[%s1 + $0x188] sm:$0xf]
        %v1378 = vld [vmem:[%s1 + $0x18c] sm:$0xf]
        %v1379 = vld [vmem:[%s1 + $0x190] sm:$0xf]
        %v1380 = vld [vmem:[%s1 + $0x194] sm:$0xf]
        %v1381 = vld [vmem:[%s1 + $0x198] sm:$0xf]
        %v1382 = vld [vmem:[%s1 + $0x19c] sm:$0xf]
        %v1383 = vld [vmem:[%s1 + $0x1a0] sm:$0xf]
        %v1384 = vld [vmem:[%s1 + $0x1a4] sm:$0xf]
        %v1385 = vld [vmem:[%s1 + $0x1a8] sm:$0xf]
        %v1386 = vld [vmem:[%s1 + $0x1ac] sm:$0xf]
        %v1387 = vld [vmem:[%s1 + $0x1b0] sm:$0xf]
        %v1388 = vld [vmem:[%s1 + $0x1b4] sm:$0xf]
        %v1389 = vld [vmem:[%s1 + $0x1b8] sm:$0xf]
        %v1390 = vld [vmem:[%s1 + $0x1bc] sm:$0xf]
        %v1391 = vld [vmem:[%s1 + $0x1c0] sm:$0xf]
        %v1392 = vld [vmem:[%s1 + $0x1c4] sm:$0xf]
        %v1393 = vld [vmem:[%s1 + $0x1c8] sm:$0xf]
        %v1394 = vld [vmem:[%s1 + $0x1cc] sm:$0xf]
        %v1395 = vld [vmem:[%s1 + $0x1d0] sm:$0xf]
        %v1396 = vld [vmem:[%s1 + $0x1d4] sm:$0xf]
        %v1397 = vld [vmem:[%s1 + $0x1d8] sm:$0xf]
        %v1398 = vld [vmem:[%s1 + $0x1dc] sm:$0xf]
        %v1399 = vld [vmem:[%s1 + $0x1e0] sm:$0xf]
        %v1400 = vld [vmem:[%s1 + $0x1e4] sm:$0xf]
        %v1401 = vld [vmem:[%s1 + $0x1e8] sm:$0xf]
        %v1402 = vld [vmem:[%s1 + $0x1ec] sm:$0xf]
        %v1403 = vld [vmem:[%s1 + $0x1f0] sm:$0xf]
        %v1404 = vld [vmem:[%s1 + $0x1f4] sm:$0xf]
        %v1405 = vld [vmem:[%s1 + $0x1f8] sm:$0xf]
        %v1406 = vld [vmem:[%s1 + $0x1fc] sm:$0xf]
        %v1407 = vld [vmem:[%s1 + $0x200] sm:$0xf]
        %v1408 = vld [vmem:[%s1 + $0x204] sm:$0xf]
        %v1409 = vld [vmem:[%s1 + $0x208] sm:$0xf]
        %v1410 = vld [vmem:[%s1 + $0x20c] sm:$0xf]
        %v1411 = vld [vmem:[%s1 + $0x210] sm:$0xf]
        %v1412 = vld [vmem:[%s1 + $0x214] sm:$0xf]
        %v1413 = vld [vmem:[%s1 + $0x218] sm:$0xf]
        %v1414 = vld [vmem:[%s1 + $0x21c] sm:$0xf]
        %v1415 = vld [vmem:[%s1 + $0x220] sm:$0xf]
        %v1416 = vld [vmem:[%s1 + $0x224] sm:$0xf]
        %v1417 = vld [vmem:[%s1 + $0x228] sm:$0xf]
        %v1418 = vld [vmem:[%s1 + $0x22c] sm:$0xf]
        %v1419 = vld [vmem:[%s1 + $0x230] sm:$0xf]
        %v1420 = vld [vmem:[%s1 + $0x234] sm:$0xf]
        %v1421 = vld [vmem:[%s1 + $0x238] sm:$0xf]
        %v1422 = vld [vmem:[%s1 + $0x23c] sm:$0xf]
        %v1567 = vunpack.c.l.b16 %v1279
        %v1568 = vunpack.c.l.b16 %v1280
        %v1569 = vunpack.c.l.b16 %v1281
        %v1570 = vunpack.c.l.b16 %v1282
        %v1571 = vunpack.c.l.b16 %v1283
        %v1572 = vunpack.c.l.b16 %v1284
        %v1573 = vunpack.c.l.b16 %v1285
        %v1574 = vunpack.c.l.b16 %v1286
        %v1575 = vunpack.c.l.b16 %v1287
        %v1576 = vunpack.c.l.b16 %v1288
        %v1577 = vunpack.c.l.b16 %v1289
        %v1578 = vunpack.c.l.b16 %v1290
        %v1579 = vunpack.c.l.b16 %v1291
        %v1580 = vunpack.c.l.b16 %v1292
        %v1581 = vunpack.c.l.b16 %v1293
        %v1582 = vunpack.c.l.b16 %v1294
        %v1583 = vunpack.c.l.b16 %v1295
        %v1584 = vunpack.c.l.b16 %v1296
        %v1585 = vunpack.c.l.b16 %v1297
        %v1586 = vunpack.c.l.b16 %v1298
        %v1587 = vunpack.c.l.b16 %v1299
        %v1588 = vunpack.c.l.b16 %v1300
        %v1589 = vunpack.c.l.b16 %v1301
        %v1590 = vunpack.c.l.b16 %v1302
        %v1591 = vunpack.c.l.b16 %v1303
        %v1592 = vunpack.c.l.b16 %v1304
        %v1593 = vunpack.c.l.b16 %v1305
        %v1594 = vunpack.c.l.b16 %v1306
        %v1595 = vunpack.c.l.b16 %v1307
        %v1596 = vunpack.c.l.b16 %v1308
        %v1597 = vunpack.c.l.b16 %v1309
        %v1598 = vunpack.c.l.b16 %v1310
        %v1599 = vunpack.c.l.b16 %v1311
        %v1600 = vunpack.c.l.b16 %v1312
        %v1601 = vunpack.c.l.b16 %v1313
        %v1602 = vunpack.c.l.b16 %v1314
        %v1603 = vunpack.c.l.b16 %v1315
        %v1604 = vunpack.c.l.b16 %v1316
        %v1605 = vunpack.c.l.b16 %v1317
        %v1606 = vunpack.c.l.b16 %v1318
        %v1607 = vunpack.c.l.b16 %v1319
        %v1608 = vunpack.c.l.b16 %v1320
        %v1609 = vunpack.c.l.b16 %v1321
        %v1610 = vunpack.c.l.b16 %v1322
        %v1611 = vunpack.c.l.b16 %v1323
        %v1612 = vunpack.c.l.b16 %v1324
        %v1613 = vunpack.c.l.b16 %v1325
        %v1614 = vunpack.c.l.b16 %v1326
        %v1615 = vunpack.c.l.b16 %v1327
        %v1616 = vunpack.c.l.b16 %v1328
        %v1617 = vunpack.c.l.b16 %v1329
        %v1618 = vunpack.c.l.b16 %v1330
        %v1619 = vunpack.c.l.b16 %v1331
        %v1620 = vunpack.c.l.b16 %v1332
        %v1621 = vunpack.c.l.b16 %v1333
        %v1622 = vunpack.c.l.b16 %v1334
        %v1623 = vunpack.c.l.b16 %v1335
        %v1624 = vunpack.c.l.b16 %v1336
        %v1625 = vunpack.c.l.b16 %v1337
        %v1626 = vunpack.c.l.b16 %v1338
        %v1627 = vunpack.c.l.b16 %v1339
        %v1628 = vunpack.c.l.b16 %v1340
        %v1629 = vunpack.c.l.b16 %v1341
        %v1630 = vunpack.c.l.b16 %v1342
        %v1631 = vunpack.c.l.b16 %v1343
        %v1632 = vunpack.c.l.b16 %v1344
        %v1633 = vunpack.c.l.b16 %v1345
        %v1634 = vunpack.c.l.b16 %v1346
        %v1635 = vunpack.c.l.b16 %v1347
        %v1636 = vunpack.c.l.b16 %v1348
        %v1637 = vunpack.c.l.b16 %v1349
        %v1638 = vunpack.c.l.b16 %v1350
        %v1639 = vunpack.c.l.b16 %v1351
        %v1640 = vunpack.c.l.b16 %v1352
        %v1641 = vunpack.c.l.b16 %v1353
        %v1642 = vunpack.c.l.b16 %v1354
        %v1643 = vunpack.c.l.b16 %v1355
        %v1644 = vunpack.c.l.b16 %v1356
        %v1645 = vunpack.c.l.b16 %v1357
        %v1646 = vunpack.c.l.b16 %v1358
        %v1647 = vunpack.c.l.b16 %v1359
        %v1648 = vunpack.c.l.b16 %v1360
        %v1649 = vunpack.c.l.b16 %v1361
        %v1650 = vunpack.c.l.b16 %v1362
        %v1651 = vunpack.c.l.b16 %v1363
        %v1652 = vunpack.c.l.b16 %v1364
        %v1653 = vunpack.c.l.b16 %v1365
        %v1654 = vunpack.c.l.b16 %v1366
        %v1655 = vunpack.c.l.b16 %v1367
        %v1656 = vunpack.c.l.b16 %v1368
        %v1657 = vunpack.c.l.b16 %v1369
        %v1658 = vunpack.c.l.b16 %v1370
        %v1659 = vunpack.c.l.b16 %v1371
        %v1660 = vunpack.c.l.b16 %v1372
        %v1661 = vunpack.c.l.b16 %v1373
        %v1662 = vunpack.c.l.b16 %v1374
        %v1663 = vunpack.c.l.b16 %v1375
        %v1664 = vunpack.c.l.b16 %v1376
        %v1665 = vunpack.c.l.b16 %v1377
        %v1666 = vunpack.c.l.b16 %v1378
        %v1667 = vunpack.c.l.b16 %v1379
        %v1668 = vunpack.c.l.b16 %v1380
        %v1669 = vunpack.c.l.b16 %v1381
        %v1670 = vunpack.c.l.b16 %v1382
        %v1671 = vunpack.c.l.b16 %v1383
        %v1672 = vunpack.c.l.b16 %v1384
        %v1673 = vunpack.c.l.b16 %v1385
        %v1674 = vunpack.c.l.b16 %v1386
        %v1675 = vunpack.c.l.b16 %v1387
        %v1676 = vunpack.c.l.b16 %v1388
        %v1677 = vunpack.c.l.b16 %v1389
        %v1678 = vunpack.c.l.b16 %v1390
        %v1679 = vunpack.c.l.b16 %v1391
        %v1680 = vunpack.c.l.b16 %v1392
        %v1681 = vunpack.c.l.b16 %v1393
        %v1682 = vunpack.c.l.b16 %v1394
        %v1683 = vunpack.c.l.b16 %v1395
        %v1684 = vunpack.c.l.b16 %v1396
        %v1685 = vunpack.c.l.b16 %v1397
        %v1686 = vunpack.c.l.b16 %v1398
        %v1687 = vunpack.c.l.b16 %v1399
        %v1688 = vunpack.c.l.b16 %v1400
        %v1689 = vunpack.c.l.b16 %v1401
        %v1690 = vunpack.c.l.b16 %v1402
        %v1691 = vunpack.c.l.b16 %v1403
        %v1692 = vunpack.c.l.b16 %v1404
        %v1693 = vunpack.c.l.b16 %v1405
        %v1694 = vunpack.c.l.b16 %v1406
        %v1695 = vunpack.c.l.b16 %v1407
        %v1696 = vunpack.c.l.b16 %v1408
        %v1697 = vunpack.c.l.b16 %v1409
        %v1698 = vunpack.c.l.b16 %v1410
        %v1699 = vunpack.c.l.b16 %v1411
        %v1700 = vunpack.c.l.b16 %v1412
        %v1701 = vunpack.c.l.b16 %v1413
        %v1702 = vunpack.c.l.b16 %v1414
        %v1703 = vunpack.c.l.b16 %v1415
        %v1704 = vunpack.c.l.b16 %v1416
        %v1705 = vunpack.c.l.b16 %v1417
        %v1706 = vunpack.c.l.b16 %v1418
        %v1707 = vunpack.c.l.b16 %v1419
        %v1708 = vunpack.c.l.b16 %v1420
        %v1709 = vunpack.c.l.b16 %v1421
        %v1710 = vunpack.c.l.b16 %v1422
        %v1711 = vpack.c.b16 %v1568, %v1567
        %v1712 = vpack.c.b16 %v1570, %v1569
        %v1713 = vpack.c.b16 %v1572, %v1571
        %v1714 = vpack.c.b16 %v1574, %v1573
        %v1715 = vpack.c.b16 %v1576, %v1575
        %v1716 = vpack.c.b16 %v1578, %v1577
        %v1717 = vpack.c.b16 %v1580, %v1579
        %v1718 = vpack.c.b16 %v1582, %v1581
        %v1719 = vpack.c.b16 %v1584, %v1583
        %v1720 = vpack.c.b16 %v1586, %v1585
        %v1721 = vpack.c.b16 %v1588, %v1587
        %v1722 = vpack.c.b16 %v1590, %v1589
        %v1723 = vpack.c.b16 %v1592, %v1591
        %v1724 = vpack.c.b16 %v1594, %v1593
        %v1725 = vpack.c.b16 %v1596, %v1595
        %v1726 = vpack.c.b16 %v1598, %v1597
        %v1727 = vpack.c.b16 %v1600, %v1599
        %v1728 = vpack.c.b16 %v1602, %v1601
        %v1729 = vpack.c.b16 %v1604, %v1603
        %v1730 = vpack.c.b16 %v1606, %v1605
        %v1731 = vpack.c.b16 %v1608, %v1607
        %v1732 = vpack.c.b16 %v1610, %v1609
        %v1733 = vpack.c.b16 %v1612, %v1611
        %v1734 = vpack.c.b16 %v1614, %v1613
        %v1735 = vpack.c.b16 %v1616, %v1615
        %v1736 = vpack.c.b16 %v1618, %v1617
        %v1737 = vpack.c.b16 %v1620, %v1619
        %v1738 = vpack.c.b16 %v1622, %v1621
        %v1739 = vpack.c.b16 %v1624, %v1623
        %v1740 = vpack.c.b16 %v1626, %v1625
        %v1741 = vpack.c.b16 %v1628, %v1627
        %v1742 = vpack.c.b16 %v1630, %v1629
        %v1743 = vpack.c.b16 %v1632, %v1631
        %v1744 = vpack.c.b16 %v1634, %v1633
        %v1745 = vpack.c.b16 %v1636, %v1635
        %v1746 = vpack.c.b16 %v1638, %v1637
        %v1747 = vpack.c.b16 %v1640, %v1639
        %v1748 = vpack.c.b16 %v1642, %v1641
        %v1749 = vpack.c.b16 %v1644, %v1643
        %v1750 = vpack.c.b16 %v1646, %v1645
        %v1751 = vpack.c.b16 %v1648, %v1647
        %v1752 = vpack.c.b16 %v1650, %v1649
        %v1753 = vpack.c.b16 %v1652, %v1651
        %v1754 = vpack.c.b16 %v1654, %v1653
        %v1755 = vpack.c.b16 %v1656, %v1655
        %v1756 = vpack.c.b16 %v1658, %v1657
        %v1757 = vpack.c.b16 %v1660, %v1659
        %v1758 = vpack.c.b16 %v1662, %v1661
        %v1759 = vpack.c.b16 %v1664, %v1663
        %v1760 = vpack.c.b16 %v1666, %v1665
        %v1761 = vpack.c.b16 %v1668, %v1667
        %v1762 = vpack.c.b16 %v1670, %v1669
        %v1763 = vpack.c.b16 %v1672, %v1671
        %v1764 = vpack.c.b16 %v1674, %v1673
        %v1765 = vpack.c.b16 %v1676, %v1675
        %v1766 = vpack.c.b16 %v1678, %v1677
        %v1767 = vpack.c.b16 %v1680, %v1679
        %v1768 = vpack.c.b16 %v1682, %v1681
        %v1769 = vpack.c.b16 %v1684, %v1683
        %v1770 = vpack.c.b16 %v1686, %v1685
        %v1771 = vpack.c.b16 %v1688, %v1687
        %v1772 = vpack.c.b16 %v1690, %v1689
        %v1773 = vpack.c.b16 %v1692, %v1691
        %v1774 = vpack.c.b16 %v1694, %v1693
        %v1775 = vpack.c.b16 %v1696, %v1695
        %v1776 = vpack.c.b16 %v1698, %v1697
        %v1777 = vpack.c.b16 %v1700, %v1699
        %v1778 = vpack.c.b16 %v1702, %v1701
        %v1779 = vpack.c.b16 %v1704, %v1703
        %v1780 = vpack.c.b16 %v1706, %v1705
        %v1781 = vpack.c.b16 %v1708, %v1707
        %v1782 = vpack.c.b16 %v1710, %v1709
        %1855 = vmatprep.subr.bf16.mxu0 0
        %1856 = vmatpush1.bf16.msra.mxu0 %v1711
        %1857 = vmatprep.subr.bf16.mxu0 0
        %1858 = vmatpush1.bf16.msra.mxu0 %v1712
        %1859 = vmatprep.subr.bf16.mxu0 0
        %1860 = vmatpush1.bf16.msra.mxu0 %v1713
        %1861 = vmatprep.subr.bf16.mxu0 0
        %1862 = vmatpush1.bf16.msra.mxu0 %v1714
        %1863 = vmatprep.subr.bf16.mxu0 0
        %1864 = vmatpush1.bf16.msra.mxu0 %v1715
        %1865 = vmatprep.subr.bf16.mxu0 0
        %1866 = vmatpush1.bf16.msra.mxu0 %v1716
        %1867 = vmatprep.subr.bf16.mxu0 0
        %1868 = vmatpush1.bf16.msra.mxu0 %v1717
        %1869 = vmatprep.subr.bf16.mxu0 0
        %1870 = vmatpush1.bf16.msra.mxu0 %v1718
        %1871 = vmatprep.subr.bf16.mxu0 0
        %1872 = vmatpush1.bf16.msra.mxu0 %v1719
        %1873 = vmatprep.subr.bf16.mxu0 0
        %1874 = vmatpush1.bf16.msra.mxu0 %v1720
        %1875 = vmatprep.subr.bf16.mxu0 0
        %1876 = vmatpush1.bf16.msra.mxu0 %v1721
        %1877 = vmatprep.subr.bf16.mxu0 0
        %1878 = vmatpush1.bf16.msra.mxu0 %v1722
        %1879 = vmatprep.subr.bf16.mxu0 0
        %1880 = vmatpush1.bf16.msra.mxu0 %v1723
        %1881 = vmatprep.subr.bf16.mxu0 0
        %1882 = vmatpush1.bf16.msra.mxu0 %v1724
        %1883 = vmatprep.subr.bf16.mxu0 0
        %1884 = vmatpush1.bf16.msra.mxu0 %v1725
        %1885 = vmatprep.subr.bf16.mxu0 0
        %1886 = vmatpush1.bf16.msra.mxu0 %v1726
        %1887 = vmatprep.mubr.bf16.mxu0 %v1244
        %1888 = vmatmul.mubr.bf16.gmra.mrb[0].mxu0 %v1243
        %v1889 = vpop.f32.mrb[0].mxu0
        %v1890 = vadd.f32 0.0, %v1889
        %v1891 = vpop.f32.mrb[0].mxu0
        %v1892 = vpop.f32.mrb[0].mxu0
        %v1893 = vadd.f32 0.0, %v1892
        %v1894 = vpop.f32.mrb[0].mxu0
        %1895 = vmatprep.mubr.bf16.mxu0 %v1253
        %1896 = vmatmul.mubr.bf16.gmra.mrb[0].mxu0 %v1252
        %v1897 = vpop.f32.mrb[0].mxu0
        %v1898 = vadd.f32 0.0, %v1897
        %v1899 = vpop.f32.mrb[0].mxu0
        %v1900 = vpop.f32.mrb[0].mxu0
        %v1901 = vadd.f32 0.0, %v1900
        %v1902 = vpop.f32.mrb[0].mxu0
        %1903 = vmatprep.mubr.bf16.mxu0 %v1262
        %1904 = vmatmul.mubr.bf16.gmra.mrb[0].mxu0 %v1261
        %v1905 = vpop.f32.mrb[0].mxu0
        %v1906 = vadd.f32 0.0, %v1905
        %v1907 = vpop.f32.mrb[0].mxu0
        %v1908 = vpop.f32.mrb[0].mxu0
        %v1909 = vadd.f32 0.0, %v1908
        %v1910 = vpop.f32.mrb[0].mxu0
        %1911 = vmatprep.mubr.bf16.mxu0 %v1271
        %1912 = vmatmul.mubr.bf16.gmra.mrb[0].mxu0 %v1270
        %v1913 = vpop.f32.mrb[0].mxu0
        %v1914 = vadd.f32 0.0, %v1913
        %v1915 = vpop.f32.mrb[0].mxu0
        %v1916 = vpop.f32.mrb[0].mxu0
        %v1917 = vadd.f32 0.0, %v1916
        %v1918 = vpop.f32.mrb[0].mxu0
        %1919 = vdwg.mxu0
        %1920 = vmatprep.subr.bf16.mxu0 0
        %1921 = vmatpush1.bf16.msra.mxu0 %v1727
        %1922 = vmatprep.subr.bf16.mxu0 0
        %1923 = vmatpush1.bf16.msra.mxu0 %v1728
        %1924 = vmatprep.subr.bf16.mxu0 0
        %1925 = vmatpush1.bf16.msra.mxu0 %v1729
        %1926 = vmatprep.subr.bf16.mxu0 0
        %1927 = vmatpush1.bf16.msra.mxu0 %v1730
        %1928 = vmatprep.subr.bf16.mxu0 0
        %1929 = vmatpush1.bf16.msra.mxu0 %v1731
        %1930 = vmatprep.subr.bf16.mxu0 0
        %1931 = vmatpush1.bf16.msra.mxu0 %v1732
        %1932 = vmatprep.subr.bf16.mxu0 0
        %1933 = vmatpush1.bf16.msra.mxu0 %v1733
        %1934 = vmatprep.subr.bf16.mxu0 0
        %1935 = vmatpush1.bf16.msra.mxu0 %v1734
        %1936 = vmatprep.subr.bf16.mxu0 0
        %1937 = vmatpush1.bf16.msra.mxu0 %v1735
        %1938 = vmatprep.subr.bf16.mxu0 0
        %1939 = vmatpush1.bf16.msra.mxu0 %v1736
        %1940 = vmatprep.subr.bf16.mxu0 0
        %1941 = vmatpush1.bf16.msra.mxu0 %v1737
        %1942 = vmatprep.subr.bf16.mxu0 0
        %1943 = vmatpush1.bf16.msra.mxu0 %v1738
        %1944 = vmatprep.subr.bf16.mxu0 0
        %1945 = vmatpush1.bf16.msra.mxu0 %v1739
        %1946 = vmatprep.subr.bf16.mxu0 0
        %1947 = vmatpush1.bf16.msra.mxu0 %v1740
        %1948 = vmatprep.subr.bf16.mxu0 0
        %1949 = vmatpush1.bf16.msra.mxu0 %v1741
        %1950 = vmatprep.subr.bf16.mxu0 0
        %1951 = vmatpush1.bf16.msra.mxu0 %v1742
        %1952 = vmatprep.mubr.bf16.mxu0 %v1246
        %1953 = vmatmul.mubr.bf16.gmra.mrb[0].mxu0 %v1245
        %v1954 = vpop.f32.mrb[0].mxu0
        %v1955 = vadd.f32 %v1890, %v1954
        %v1956 = vpop.f32.mrb[0].mxu0
        %v1957 = vpop.f32.mrb[0].mxu0
        %v1958 = vadd.f32 %v1893, %v1957
        %v1959 = vpop.f32.mrb[0].mxu0
        %1960 = vmatprep.mubr.bf16.mxu0 %v1255
        %1961 = vmatmul.mubr.bf16.gmra.mrb[0].mxu0 %v1254
        %v1962 = vpop.f32.mrb[0].mxu0
        %v1963 = vadd.f32 %v1898, %v1962
        %v1964 = vpop.f32.mrb[0].mxu0
        %v1965 = vpop.f32.mrb[0].mxu0
        %v1966 = vadd.f32 %v1901, %v1965
        %v1967 = vpop.f32.mrb[0].mxu0
        %1968 = vmatprep.mubr.bf16.mxu0 %v1264
        %1969 = vmatmul.mubr.bf16.gmra.mrb[0].mxu0 %v1263
        %v1970 = vpop.f32.mrb[0].mxu0
        %v1971 = vadd.f32 %v1906, %v1970
        %v1972 = vpop.f32.mrb[0].mxu0
        %v1973 = vpop.f32.mrb[0].mxu0
        %v1974 = vadd.f32 %v1909, %v1973
        %v1975 = vpop.f32.mrb[0].mxu0
        %1976 = vmatprep.mubr.bf16.mxu0 %v1273
        %1977 = vmatmul.mubr.bf16.gmra.mrb[0].mxu0 %v1272
        %v1978 = vpop.f32.mrb[0].mxu0
        %v1979 = vadd.f32 %v1914, %v1978
        %v1980 = vpop.f32.mrb[0].mxu0
        %v1981 = vpop.f32.mrb[0].mxu0
        %v1982 = vadd.f32 %v1917, %v1981
        %v1983 = vpop.f32.mrb[0].mxu0
        %1984 = vdwg.mxu0
        %1985 = vmatprep.subr.bf16.mxu0 0
        %1986 = vmatpush1.bf16.msra.mxu0 %v1743
        %1987 = vmatprep.subr.bf16.mxu0 0
        %1988 = vmatpush1.bf16.msra.mxu0 %v1744
        %1989 = vmatprep.subr.bf16.mxu0 0
        %1990 = vmatpush1.bf16.msra.mxu0 %v1745
        %1991 = vmatprep.subr.bf16.mxu0 0
        %1992 = vmatpush1.bf16.msra.mxu0 %v1746
        %1993 = vmatprep.subr.bf16.mxu0 0
        %1994 = vmatpush1.bf16.msra.mxu0 %v1747
        %1995 = vmatprep.subr.bf16.mxu0 0
        %1996 = vmatpush1.bf16.msra.mxu0 %v1748
        %1997 = vmatprep.subr.bf16.mxu0 0
        %1998 = vmatpush1.bf16.msra.mxu0 %v1749
        %1999 = vmatprep.subr.bf16.mxu0 0
        %2000 = vmatpush1.bf16.msra.mxu0 %v1750
        %2001 = vmatprep.subr.bf16.mxu0 0
        %2002 = vmatpush1.bf16.msra.mxu0 %v1751
        %2003 = vmatprep.subr.bf16.mxu0 0
        %2004 = vmatpush1.bf16.msra.mxu0 %v1752
        %2005 = vmatprep.subr.bf16.mxu0 0
        %2006 = vmatpush1.bf16.msra.mxu0 %v1753
        %2007 = vmatprep.subr.bf16.mxu0 0
        %2008 = vmatpush1.bf16.msra.mxu0 %v1754
        %2009 = vmatprep.subr.bf16.mxu0 0
        %2010 = vmatpush1.bf16.msra.mxu0 %v1755
        %2011 = vmatprep.subr.bf16.mxu0 0
        %2012 = vmatpush1.bf16.msra.mxu0 %v1756
        %2013 = vmatprep.subr.bf16.mxu0 0
        %2014 = vmatpush1.bf16.msra.mxu0 %v1757
        %2015 = vmatprep.subr.bf16.mxu0 0
        %2016 = vmatpush1.bf16.msra.mxu0 %v1758
        %2017 = vmatprep.mubr.bf16.mxu0 %v1248
        %2018 = vmatmul.mubr.bf16.gmra.mrb[0].mxu0 %v1247
        %v2019 = vpop.f32.mrb[0].mxu0
        %v2020 = vadd.f32 %v1955, %v2019
        %v2021 = vpop.f32.mrb[0].mxu0
        %v2022 = vpop.f32.mrb[0].mxu0
        %v2023 = vadd.f32 %v1958, %v2022
        %v2024 = vpop.f32.mrb[0].mxu0
        %2025 = vmatprep.mubr.bf16.mxu0 %v1257
        %2026 = vmatmul.mubr.bf16.gmra.mrb[0].mxu0 %v1256
        %v2027 = vpop.f32.mrb[0].mxu0
        %v2028 = vadd.f32 %v1963, %v2027
        %v2029 = vpop.f32.mrb[0].mxu0
        %v2030 = vpop.f32.mrb[0].mxu0
        %v2031 = vadd.f32 %v1966, %v2030
        %v2032 = vpop.f32.mrb[0].mxu0
        %2033 = vmatprep.mubr.bf16.mxu0 %v1266
        %2034 = vmatmul.mubr.bf16.gmra.mrb[0].mxu0 %v1265
        %v2035 = vpop.f32.mrb[0].mxu0
        %v2036 = vadd.f32 %v1971, %v2035
        %v2037 = vpop.f32.mrb[0].mxu0
        %v2038 = vpop.f32.mrb[0].mxu0
        %v2039 = vadd.f32 %v1974, %v2038
        %v2040 = vpop.f32.mrb[0].mxu0
        %2041 = vmatprep.mubr.bf16.mxu0 %v1275
        %2042 = vmatmul.mubr.bf16.gmra.mrb[0].mxu0 %v1274
        %v2043 = vpop.f32.mrb[0].mxu0
        %v2044 = vadd.f32 %v1979, %v2043
        %v2045 = vpop.f32.mrb[0].mxu0
        %v2046 = vpop.f32.mrb[0].mxu0
        %v2047 = vadd.f32 %v1982, %v2046
        %v2048 = vpop.f32.mrb[0].mxu0
        %2049 = vdwg.mxu0
        %2050 = vmatprep.subr.bf16.mxu0 0
        %2051 = vmatpush1.bf16.msra.mxu0 %v1759
        %2052 = vmatprep.subr.bf16.mxu0 0
        %2053 = vmatpush1.bf16.msra.mxu0 %v1760
        %2054 = vmatprep.subr.bf16.mxu0 0
        %2055 = vmatpush1.bf16.msra.mxu0 %v1761
        %2056 = vmatprep.subr.bf16.mxu0 0
        %2057 = vmatpush1.bf16.msra.mxu0 %v1762
        %2058 = vmatprep.subr.bf16.mxu0 0
        %2059 = vmatpush1.bf16.msra.mxu0 %v1763
        %2060 = vmatprep.subr.bf16.mxu0 0
        %2061 = vmatpush1.bf16.msra.mxu0 %v1764
        %2062 = vmatprep.subr.bf16.mxu0 0
        %2063 = vmatpush1.bf16.msra.mxu0 %v1765
        %2064 = vmatprep.subr.bf16.mxu0 0
        %2065 = vmatpush1.bf16.msra.mxu0 %v1766
        %2066 = vmatprep.subr.bf16.mxu0 0
        %2067 = vmatpush1.bf16.msra.mxu0 %v1767
        %2068 = vmatprep.subr.bf16.mxu0 0
        %2069 = vmatpush1.bf16.msra.mxu0 %v1768
        %2070 = vmatprep.subr.bf16.mxu0 0
        %2071 = vmatpush1.bf16.msra.mxu0 %v1769
        %2072 = vmatprep.subr.bf16.mxu0 0
        %2073 = vmatpush1.bf16.msra.mxu0 %v1770
        %2074 = vmatprep.subr.bf16.mxu0 0
        %2075 = vmatpush1.bf16.msra.mxu0 %v1771
        %2076 = vmatprep.subr.bf16.mxu0 0
        %2077 = vmatpush1.bf16.msra.mxu0 %v1772
        %2078 = vmatprep.subr.bf16.mxu0 0
        %2079 = vmatpush1.bf16.msra.mxu0 %v1773
        %2080 = vmatprep.subr.bf16.mxu0 0
        %2081 = vmatpush1.bf16.msra.mxu0 %v1774
        %2082 = vmatprep.mubr.bf16.mxu0 %v1250
        %2083 = vmatmul.mubr.bf16.gmra.mrb[0].mxu0 %v1249
        %v2084 = vpop.f32.mrb[0].mxu0
        %v2085 = vadd.f32 %v2020, %v2084
        %v2086 = vpop.f32.mrb[0].mxu0
        %v2087 = vpop.f32.mrb[0].mxu0
        %v2088 = vadd.f32 %v2023, %v2087
        %v2089 = vpop.f32.mrb[0].mxu0
        %2090 = vmatprep.mubr.bf16.mxu0 %v1259
        %2091 = vmatmul.mubr.bf16.gmra.mrb[0].mxu0 %v1258
        %v2092 = vpop.f32.mrb[0].mxu0
        %v2093 = vadd.f32 %v2028, %v2092
        %v2094 = vpop.f32.mrb[0].mxu0
        %v2095 = vpop.f32.mrb[0].mxu0
        %v2096 = vadd.f32 %v2031, %v2095
        %v2097 = vpop.f32.mrb[0].mxu0
        %2098 = vmatprep.mubr.bf16.mxu0 %v1268
        %2099 = vmatmul.mubr.bf16.gmra.mrb[0].mxu0 %v1267
        %v2100 = vpop.f32.mrb[0].mxu0
        %v2101 = vadd.f32 %v2036, %v2100
        %v2102 = vpop.f32.mrb[0].mxu0
        %v2103 = vpop.f32.mrb[0].mxu0
        %v2104 = vadd.f32 %v2039, %v2103
        %v2105 = vpop.f32.mrb[0].mxu0
        %2106 = vmatprep.mubr.bf16.mxu0 %v1277
        %2107 = vmatmul.mubr.bf16.gmra.mrb[0].mxu0 %v1276
        %v2108 = vpop.f32.mrb[0].mxu0
        %v2109 = vadd.f32 %v2044, %v2108
        %v2110 = vpop.f32.mrb[0].mxu0
        %v2111 = vpop.f32.mrb[0].mxu0
        %v2112 = vadd.f32 %v2047, %v2111
        %v2113 = vpop.f32.mrb[0].mxu0
        %2114 = vdwg.mxu0
        %2115 = vmatprep.subr.bf16.mxu0 0
        %2116 = vmatpush1.bf16.msra.mxu0 %v1775
        %2117 = vmatprep.subr.bf16.mxu0 0
        %2118 = vmatpush1.bf16.msra.mxu0 %v1776
        %2119 = vmatprep.subr.bf16.mxu0 0
        %2120 = vmatpush1.bf16.msra.mxu0 %v1777
        %2121 = vmatprep.subr.bf16.mxu0 0
        %2122 = vmatpush1.bf16.msra.mxu0 %v1778
        %2123 = vmatprep.subr.bf16.mxu0 0
        %2124 = vmatpush1.bf16.msra.mxu0 %v1779
        %2125 = vmatprep.subr.bf16.mxu0 0
        %2126 = vmatpush1.bf16.msra.mxu0 %v1780
        %2127 = vmatprep.subr.bf16.mxu0 0
        %2128 = vmatpush1.bf16.msra.mxu0 %v1781
        %2129 = vmatprep.subr.bf16.mxu0 0
        %2130 = vmatpush1.bf16.msra.mxu0 %v1782
        %2131 = vmatprep.subr.bf16.mxu0 0
        %2132 = vmatpush1.bf16.msra.mxu0 0
        %2133 = vmatprep.subr.bf16.mxu0 0
        %2134 = vmatpush1.bf16.msra.mxu0 0
        %2135 = vmatprep.subr.bf16.mxu0 0
        %2136 = vmatpush1.bf16.msra.mxu0 0
        %2137 = vmatprep.subr.bf16.mxu0 0
        %2138 = vmatpush1.bf16.msra.mxu0 0
        %2139 = vmatprep.subr.bf16.mxu0 0
        %2140 = vmatpush1.bf16.msra.mxu0 0
        %2141 = vmatprep.subr.bf16.mxu0 0
        %2142 = vmatpush1.bf16.msra.mxu0 0
        %2143 = vmatprep.subr.bf16.mxu0 0
        %2144 = vmatpush1.bf16.msra.mxu0 0
        %2145 = vmatprep.subr.bf16.mxu0 0
        %2146 = vmatpush1.bf16.msra.mxu0 0
        %2147 = vmatprep.mubr.bf16.mxu0 0
        %2148 = vmatmul.mubr.bf16.gmra.mrb[0].mxu0 %v1251
        %v2149 = vpop.f32.mrb[0].mxu0
        %v2150 = vadd.f32 %v2085, %v2149
        %v2151 = vpop.f32.mrb[0].mxu0
        %v2152 = vpop.f32.mrb[0].mxu0
        %v2153 = vadd.f32 %v2088, %v2152
        %v2154 = vpop.f32.mrb[0].mxu0
        %2155 = vmatprep.mubr.bf16.mxu0 0
        %2156 = vmatmul.mubr.bf16.gmra.mrb[0].mxu0 %v1260
        %v2157 = vpop.f32.mrb[0].mxu0
        %v2158 = vadd.f32 %v2093, %v2157
        %v2159 = vpop.f32.mrb[0].mxu0
        %v2160 = vpop.f32.mrb[0].mxu0
        %v2161 = vadd.f32 %v2096, %v2160
        %v2162 = vpop.f32.mrb[0].mxu0
        %2163 = vmatprep.mubr.bf16.mxu0 0
        %2164 = vmatmul.mubr.bf16.gmra.mrb[0].mxu0 %v1269
        %v2165 = vpop.f32.mrb[0].mxu0
        %v2166 = vadd.f32 %v2101, %v2165
        %v2167 = vpop.f32.mrb[0].mxu0
        %v2168 = vpop.f32.mrb[0].mxu0
        %v2169 = vadd.f32 %v2104, %v2168
        %v2170 = vpop.f32.mrb[0].mxu0
        %2171 = vmatprep.mubr.bf16.mxu0 0
        %2172 = vmatmul.mubr.bf16.gmra.mrb[0].mxu0 %v1278
        %v2173 = vpop.f32.mrb[0].mxu0
        %v2174 = vadd.f32 %v2109, %v2173
        %v2175 = vpop.f32.mrb[0].mxu0
        %v2176 = vpop.f32.mrb[0].mxu0
        %v2177 = vadd.f32 %v2112, %v2176
        %v2178 = vpop.f32.mrb[0].mxu0
        %2179 = vdwg.mxu0
        %2180 = vst [vmem:[%s564] sm:$0xff] %v2150
        %2181 = vst [vmem:[%s564 + $0x8] sm:$0xff] %v2153
        %2182 = vst [vmem:[%s564 + $0x10] sm:$0xff] %v2158
        %2183 = vst [vmem:[%s564 + $0x18] sm:$0xff] %v2161
        %2184 = vst [vmem:[%s564 + $0x20] sm:$0xff] %v2166
        %2185 = vst [vmem:[%s564 + $0x28] sm:$0xff] %v2169
        %2186 = vst [vmem:[%s564 + $0x30] sm:$0xff] %v2174
        %2187 = vst [vmem:[%s564 + $0x38] sm:$0xff] %v2177
        %v2188 = vadd.f32 %v2150, %v2153
        %v2189 = vadd.f32 %v2188, %v2158
        %v2190 = vadd.f32 %v2189, %v2161
        %v2191 = vadd.f32 %v2190, %v2166
        %v2192 = vadd.f32 %v2191, %v2169
        %v2193 = vadd.f32 %v2192, %v2174
        %v2194 = vadd.f32 %v2193, %v2177
        %v2195 = vrot.slane %v2194, 4
        %v2196 = vadd.f32 %v2194, %v2195
        %v2197 = vrot.slane %v2196, 2
        %v2198 = vadd.f32 %v2196, %v2197
        %v2199 = vrot.slane %v2198, 1
        %v2200 = vadd.f32 %v2198, %v2199
        %2201 = vst [vmem:[%s573] sm:$0x1] %v2200
        %v2202 = vmul.f32 %v2150, %v2150
        %v2203 = vmul.f32 %v2153, %v2153
        %v2204 = vmul.f32 %v2158, %v2158
        %v2205 = vmul.f32 %v2161, %v2161
        %v2206 = vmul.f32 %v2166, %v2166
        %v2207 = vmul.f32 %v2169, %v2169
        %v2208 = vmul.f32 %v2174, %v2174
        %v2209 = vmul.f32 %v2177, %v2177
        %v2210 = vadd.f32 %v2202, %v2203
        %v2211 = vadd.f32 %v2210, %v2204
        %v2212 = vadd.f32 %v2211, %v2205
        %v2213 = vadd.f32 %v2212, %v2206
        %v2214 = vadd.f32 %v2213, %v2207
        %v2215 = vadd.f32 %v2214, %v2208
        %v2216 = vadd.f32 %v2215, %v2209
        %v2217 = vrot.slane %v2216, 4
        %v2218 = vadd.f32 %v2216, %v2217
        %v2219 = vrot.slane %v2218, 2
        %v2220 = vadd.f32 %v2218, %v2219
        %v2221 = vrot.slane %v2220, 1
        %v2222 = vadd.f32 %v2220, %v2221
        %2223 = vst [vmem:[%s573 + $0x1] sm:$0x1] %v2222
        %v2224 = vld [vmem:[%s836] sm:$0xf]
        %v2225 = vld [vmem:[%s836 + $0x8] sm:$0xf]
        %v2226 = vld [vmem:[%s836 + $0x10] sm:$0xf]
        %v2227 = vld [vmem:[%s836 + $0x18] sm:$0xf]
        %v2228 = vld [vmem:[%s836 + $0x20] sm:$0xf]
        %v2229 = vld [vmem:[%s836 + $0x28] sm:$0xf]
        %v2230 = vld [vmem:[%s836 + $0x30] sm:$0xf]
        %v2231 = vld [vmem:[%s836 + $0x38] sm:$0xf]
        %v2232 = vld [vmem:[%s2] sm:$0xf]
        %v2233 = vld [vmem:[%s2 + $0x4] sm:$0xf]
        %v2234 = vld [vmem:[%s2 + $0x8] sm:$0xf]
        %v2235 = vld [vmem:[%s2 + $0xc] sm:$0xf]
        %v2236 = vld [vmem:[%s2 + $0x10] sm:$0xf]
        %v2237 = vld [vmem:[%s2 + $0x14] sm:$0xf]
        %v2238 = vld [vmem:[%s2 + $0x18] sm:$0xf]
        %v2239 = vld [vmem:[%s2 + $0x1c] sm:$0xf]
        %v2240 = vld [vmem:[%s2 + $0x20] sm:$0xf]
        %v2241 = vld [vmem:[%s2 + $0x24] sm:$0xf]
        %v2242 = vld [vmem:[%s2 + $0x28] sm:$0xf]
        %v2243 = vld [vmem:[%s2 + $0x2c] sm:$0xf]
        %v2244 = vld [vmem:[%s2 + $0x30] sm:$0xf]
        %v2245 = vld [vmem:[%s2 + $0x34] sm:$0xf]
        %v2246 = vld [vmem:[%s2 + $0x38] sm:$0xf]
        %v2247 = vld [vmem:[%s2 + $0x3c] sm:$0xf]
        %v2256 = vunpack.c.l.b16 %v2224
        %v2257 = vunpack.c.l.b16 %v2225
        %v2258 = vunpack.c.l.b16 %v2226
        %v2259 = vunpack.c.l.b16 %v2227
        %v2260 = vunpack.c.l.b16 %v2228
        %v2261 = vunpack.c.l.b16 %v2229
        %v2262 = vunpack.c.l.b16 %v2230
        %v2263 = vunpack.c.l.b16 %v2231
        %v2264 = vpack.c.b16 %v2257, %v2256
        %v2265 = vpack.c.b16 %v2259, %v2258
        %v2266 = vpack.c.b16 %v2261, %v2260
        %v2267 = vpack.c.b16 %v2263, %v2262
        %v2288 = vunpack.c.l.b16 %v2232
        %v2289 = vunpack.c.l.b16 %v2233
        %v2290 = vunpack.c.l.b16 %v2234
        %v2291 = vunpack.c.l.b16 %v2235
        %v2292 = vunpack.c.l.b16 %v2236
        %v2293 = vunpack.c.l.b16 %v2237
        %v2294 = vunpack.c.l.b16 %v2238
        %v2295 = vunpack.c.l.b16 %v2239
        %v2296 = vunpack.c.l.b16 %v2240
        %v2297 = vunpack.c.l.b16 %v2241
        %v2298 = vunpack.c.l.b16 %v2242
        %v2299 = vunpack.c.l.b16 %v2243
        %v2300 = vunpack.c.l.b16 %v2244
        %v2301 = vunpack.c.l.b16 %v2245
        %v2302 = vunpack.c.l.b16 %v2246
        %v2303 = vunpack.c.l.b16 %v2247
        %v2304 = vpack.c.b16 %v2289, %v2288
        %v2305 = vpack.c.b16 %v2291, %v2290
        %v2306 = vpack.c.b16 %v2293, %v2292
        %v2307 = vpack.c.b16 %v2295, %v2294
        %v2308 = vpack.c.b16 %v2297, %v2296
        %v2309 = vpack.c.b16 %v2299, %v2298
        %v2310 = vpack.c.b16 %v2301, %v2300
        %v2311 = vpack.c.b16 %v2303, %v2302
        %2320 = vmatprep.subr.bf16.mxu0 0
        %2321 = vmatpush1.bf16.msra.mxu0 %v2304
        %2322 = vmatprep.subr.bf16.mxu0 0
        %2323 = vmatpush1.bf16.msra.mxu0 %v2305
        %2324 = vmatprep.subr.bf16.mxu0 0
        %2325 = vmatpush1.bf16.msra.mxu0 %v2306
        %2326 = vmatprep.subr.bf16.mxu0 0
        %2327 = vmatpush1.bf16.msra.mxu0 %v2307
        %2328 = vmatprep.subr.bf16.mxu0 0
        %2329 = vmatpush1.bf16.msra.mxu0 %v2308
        %2330 = vmatprep.subr.bf16.mxu0 0
        %2331 = vmatpush1.bf16.msra.mxu0 %v2309
        %2332 = vmatprep.subr.bf16.mxu0 0
        %2333 = vmatpush1.bf16.msra.mxu0 %v2310
        %2334 = vmatprep.subr.bf16.mxu0 0
        %2335 = vmatpush1.bf16.msra.mxu0 %v2311
        %2336 = vmatprep.subr.bf16.mxu0 0
        %2337 = vmatpush1.bf16.msra.mxu0 0
        %2338 = vmatprep.subr.bf16.mxu0 0
        %2339 = vmatpush1.bf16.msra.mxu0 0
        %2340 = vmatprep.subr.bf16.mxu0 0
        %2341 = vmatpush1.bf16.msra.mxu0 0
        %2342 = vmatprep.subr.bf16.mxu0 0
        %2343 = vmatpush1.bf16.msra.mxu0 0
        %2344 = vmatprep.subr.bf16.mxu0 0
        %2345 = vmatpush1.bf16.msra.mxu0 0
        %2346 = vmatprep.subr.bf16.mxu0 0
        %2347 = vmatpush1.bf16.msra.mxu0 0
        %2348 = vmatprep.subr.bf16.mxu0 0
        %2349 = vmatpush1.bf16.msra.mxu0 0
        %2350 = vmatprep.subr.bf16.mxu0 0
        %2351 = vmatpush1.bf16.msra.mxu0 0
        %2352 = vmatprep.mubr.bf16.mxu0 0
        %2353 = vmatmul.mubr.bf16.gmra.mrb[0].mxu0 %v2264
        %v2354 = vpop.f32.mrb[0].mxu0
        %v2355 = vadd.f32 0.0, %v2354
        %v2356 = vpop.f32.mrb[0].mxu0
        %v2357 = vpop.f32.mrb[0].mxu0
        %v2358 = vadd.f32 0.0, %v2357
        %v2359 = vpop.f32.mrb[0].mxu0
        %2360 = vmatprep.mubr.bf16.mxu0 0
        %2361 = vmatmul.mubr.bf16.gmra.mrb[0].mxu0 %v2265
        %v2362 = vpop.f32.mrb[0].mxu0
        %v2363 = vadd.f32 0.0, %v2362
        %v2364 = vpop.f32.mrb[0].mxu0
        %v2365 = vpop.f32.mrb[0].mxu0
        %v2366 = vadd.f32 0.0, %v2365
        %v2367 = vpop.f32.mrb[0].mxu0
        %2368 = vmatprep.mubr.bf16.mxu0 0
        %2369 = vmatmul.mubr.bf16.gmra.mrb[0].mxu0 %v2266
        %v2370 = vpop.f32.mrb[0].mxu0
        %v2371 = vadd.f32 0.0, %v2370
        %v2372 = vpop.f32.mrb[0].mxu0
        %v2373 = vpop.f32.mrb[0].mxu0
        %v2374 = vadd.f32 0.0, %v2373
        %v2375 = vpop.f32.mrb[0].mxu0
        %2376 = vmatprep.mubr.bf16.mxu0 0
        %2377 = vmatmul.mubr.bf16.gmra.mrb[0].mxu0 %v2267
        %v2378 = vpop.f32.mrb[0].mxu0
        %v2379 = vadd.f32 0.0, %v2378
        %v2380 = vpop.f32.mrb[0].mxu0
        %v2381 = vpop.f32.mrb[0].mxu0
        %v2382 = vadd.f32 0.0, %v2381
        %v2383 = vpop.f32.mrb[0].mxu0
        %2384 = vdwg.mxu0
        %2385 = vst [vmem:[%s569] sm:$0xff] %v2355
        %2386 = vst [vmem:[%s569 + $0x8] sm:$0xff] %v2358
        %2387 = vst [vmem:[%s569 + $0x10] sm:$0xff] %v2363
        %2388 = vst [vmem:[%s569 + $0x18] sm:$0xff] %v2366
        %2389 = vst [vmem:[%s569 + $0x20] sm:$0xff] %v2371
        %2390 = vst [vmem:[%s569 + $0x28] sm:$0xff] %v2374
        %2391 = vst [vmem:[%s569 + $0x30] sm:$0xff] %v2379
        %2392 = vst [vmem:[%s569 + $0x38] sm:$0xff] %v2382
        %v2393 = vadd.f32 %v2355, %v2358
        %v2394 = vadd.f32 %v2393, %v2363
        %v2395 = vadd.f32 %v2394, %v2366
        %v2396 = vadd.f32 %v2395, %v2371
        %v2397 = vadd.f32 %v2396, %v2374
        %v2398 = vadd.f32 %v2397, %v2379
        %v2399 = vadd.f32 %v2398, %v2382
        %v2400 = vrot.slane %v2399, 4
        %v2401 = vadd.f32 %v2399, %v2400
        %v2402 = vrot.slane %v2401, 2
        %v2403 = vadd.f32 %v2401, %v2402
        %v2404 = vrot.slane %v2403, 1
        %v2405 = vadd.f32 %v2403, %v2404
        %2406 = vst [vmem:[%s573 + $0x2] sm:$0x1] %v2405
        %v2407 = vmul.f32 %v2355, %v2355
        %v2408 = vmul.f32 %v2358, %v2358
        %v2409 = vmul.f32 %v2363, %v2363
        %v2410 = vmul.f32 %v2366, %v2366
        %v2411 = vmul.f32 %v2371, %v2371
        %v2412 = vmul.f32 %v2374, %v2374
        %v2413 = vmul.f32 %v2379, %v2379
        %v2414 = vmul.f32 %v2382, %v2382
        %v2415 = vadd.f32 %v2407, %v2408
        %v2416 = vadd.f32 %v2415, %v2409
        %v2417 = vadd.f32 %v2416, %v2410
        %v2418 = vadd.f32 %v2417, %v2411
        %v2419 = vadd.f32 %v2418, %v2412
        %v2420 = vadd.f32 %v2419, %v2413
        %v2421 = vadd.f32 %v2420, %v2414
        %v2422 = vrot.slane %v2421, 4
        %v2423 = vadd.f32 %v2421, %v2422
        %v2424 = vrot.slane %v2423, 2
        %v2425 = vadd.f32 %v2423, %v2424
        %v2426 = vrot.slane %v2425, 1
        %v2427 = vadd.f32 %v2425, %v2426
        %2428 = vst [vmem:[%s573 + $0x3] sm:$0x1] %v2427
        %p2429 = scmp.lt.s32.totalorder %s17, 1
        %s2430 = scalar_select %p2429, %s17, 1
        %s2431 = smul.addr %s2430, 8
        %s2432 = smul.addr %s2431, 8
        %s2433 = scalar_lea.vmem %s3, %s2432
        %p2434 = scmp.lt.s32.totalorder %s17, 1
        %s2435 = scalar_select %p2434, %s17, 1
        %s2436 = smul.addr %s2435, 8
        %s2437 = smul.addr %s2436, 8
        %s2438 = scalar_lea.vmem %s4, %s2437
        %p2439 = scmp.lt.s32.totalorder %s17, 1
        %s2440 = scalar_select %p2439, %s17, 1
        %s2441 = smul.addr %s2440, 4
        %s2442 = scalar_lea.vmem %s5, %s2441
        // Predicated region
        $region74: #{residual_block_pallas.3} parent=68 // pred_check
          %p2443 = pneg %p103
        $region75: #{residual_block_pallas.3} parent=68 // pred_check_branch
          %2445 = sbr.rel (%p2443) target = $region77
        $region76: #{residual_block_pallas.3} parent=68 // pred_region
          _
        $region77: #{residual_block_pallas.3} parent=68 // pred_fallthru
          _
        // Predicated region
        $region78: #{residual_block_pallas.3} parent=68 // pred_check
          %p2446 = pneg %p129
        $region79: #{residual_block_pallas.3} parent=68 // pred_check_branch
          %2448 = sbr.rel (%p2446) target = $region81
        $region80: #{residual_block_pallas.3} parent=68 // pred_region
          _
        $region81: #{residual_block_pallas.3} parent=68 // pred_fallthru
          _
        // Predicated region
        $region82: #{residual_block_pallas.3} parent=68 // pred_check
          %p2449 = pneg %p155
        $region83: #{residual_block_pallas.3} parent=68 // pred_check_branch
          %2451 = sbr.rel (%p2449) target = $region85
        $region84: #{residual_block_pallas.3} parent=68 // pred_region
          _
        $region85: #{residual_block_pallas.3} parent=68 // pred_fallthru
          _
      $region69: #{residual_block_pallas.3} parent=5 // pred_fallthru
        _
      %p2452 = scmp.le.s32.totalorder 2, %s12
      // Predicated region
      $region86: #{residual_block_pallas.3} parent=5 // pred_check
        %p2453 = pneg %p2452
      $region87: #{residual_block_pallas.3} parent=5 // pred_check_branch
        %2455 = sbr.rel (%p2453) target = $region89
      $region88: #{residual_block_pallas.3} parent=5 // pred_region
        %s2456 = ssub.s32 %s12, 2
        // Predicated region
        $region90: #{residual_block_pallas.3} parent=88 // pred_check
          %p2457 = pneg %p109
        $region91: #{residual_block_pallas.3} parent=88 // pred_check_branch
          %2459 = sbr.rel (%p2457) target = $region93
        $region92: #{residual_block_pallas.3} parent=88 // pred_region
          %p2460 = scmp.lt.s32.totalorder %s18, 1
          %s2461 = scalar_select %p2460, %s18, 1
          %s2462 = smul.addr %s2461, 8
          %s2463 = smul.addr %s2462, 8
          %s2464 = scalar_lea.vmem %s3, %s2463
        $region93: #{residual_block_pallas.3} parent=88 // pred_fallthru
          _
        // Predicated region
        $region94: #{residual_block_pallas.3} parent=88 // pred_check
          %p2465 = pneg %p135
        $region95: #{residual_block_pallas.3} parent=88 // pred_check_branch
          %2467 = sbr.rel (%p2465) target = $region97
        $region96: #{residual_block_pallas.3} parent=88 // pred_region
          %p2468 = scmp.lt.s32.totalorder %s18, 1
          %s2469 = scalar_select %p2468, %s18, 1
          %s2470 = smul.addr %s2469, 8
          %s2471 = smul.addr %s2470, 8
          %s2472 = scalar_lea.vmem %s4, %s2471
        $region97: #{residual_block_pallas.3} parent=88 // pred_fallthru
          _
        // Predicated region
        $region98: #{residual_block_pallas.3} parent=88 // pred_check
          %p2473 = pneg %p161
        $region99: #{residual_block_pallas.3} parent=88 // pred_check_branch
          %2475 = sbr.rel (%p2473) target = $region101
        $region100: #{residual_block_pallas.3} parent=88 // pred_region
          %p2476 = scmp.lt.s32.totalorder %s18, 1
          %s2477 = scalar_select %p2476, %s18, 1
          %s2478 = smul.addr %s2477, 4
          %s2479 = scalar_lea.vmem %s5, %s2478
        $region101: #{residual_block_pallas.3} parent=88 // pred_fallthru
          _
      $region89: #{residual_block_pallas.3} parent=5 // pred_fallthru
        _
    $region6: #{residual_block_pallas.3} parent=1 // loop_footer
      %s16 = sadd.s32 1, %s12
    $region7: #{residual_block_pallas.3} parent=1 // loop_footer_branch
      %11 = sbr.rel target = $region3
    $region8: #{residual_block_pallas.3} parent=1 // loop_exit
      _

</llo_original>
